<compile_context>
chip_gen: v5e
topology: v5e:2x2
jax: 0.10.0
libtpu: 0.0.40
codegen_flags: <defaults>
</compile_context>

<pallas_src>
import functools

import numpy as np

import jax
import jax.numpy as jnp
from jax.experimental import pallas as pl
from jax.experimental.pallas import tpu as pltpu


# ---------------------------------------------------------------------------
# In-kernel helpers (traced into the kernel body)
# ---------------------------------------------------------------------------
def _squash(s, axis):
    # Matches the PyTorch reference exactly.  The +1e-8 also keeps the
    # zero-padded batch lanes finite (0 / sqrt(0)).
    sq = jnp.sum(s * s, axis=axis, keepdims=True)
    return sq / (1.0 + sq) * s / (jnp.sqrt(sq) + 1e-8)


def _softmax_over_caps(logits, *, approx):
    # softmax over the output-capsule axis (axis=1) of (ni_chunk, Nc, TB)
    m = jnp.max(logits, axis=1, keepdims=True)
    e = jnp.exp(logits - m)
    denom = jnp.sum(e, axis=1, keepdims=True)
    if approx:
        return e * pl.reciprocal(denom, approx=True)   # EUP, nearly free
    return e / denom


# ---------------------------------------------------------------------------
# Pallas kernel: one batch tile (TB on the lane axis) per grid step
# ---------------------------------------------------------------------------
def _routing_caps_kernel(x_ref, w_ref, out_ref, *, num_iter, ni_chunk,
                         w_lane_dense):
    # x_ref   : (Ni, Di, TB)                    batch on lanes
    # w_ref   : (Ni, Di, Nc*Dc)   lane-dense    (or (Ni, Nc*Dc, Di) fallback)
    # out_ref : (Nc, Dc, TB)
    nc, dc, tb = out_ref.shape
    ni, di, _ = x_ref.shape
    ncd = nc * dc

    chunks = [(s, min(ni_chunk, ni - s)) for s in range(0, ni, ni_chunk)]

    def compute_u_hat(st, sz):
        # u_hat[i, j*Dc+d, b] = sum_k W[j, i, d, k] * x[b, i, k]
        xc = x_ref[st:st + sz, :, :]                       # (sz, Di, TB)
        wc = w_ref[st:st + sz, :, :]
        if w_lane_dense:
            # wc (sz, Di, Ncd): contract Di, batch over the input-capsule axis.
            uh = jax.lax.dot_general(
                wc, xc, (((1,), (1,)), ((0,), (0,))),
                preferred_element_type=jnp.float32)        # (sz, Ncd, TB)
        else:
            # legacy layout wc (sz, Ncd, Di): standard batched matmul.
            uh = jax.lax.dot_general(
                wc, xc, (((2,), (1,)), ((0,), (0,))),
                preferred_element_type=jnp.float32)        # (sz, Ncd, TB)
        return uh.reshape(sz, nc, dc, tb)                  # (sz, Nc, Dc, TB)

    # Hold u_hat only when it is a single small chunk; otherwise recompute per
    # chunk inside every routing pass (bounds live VMEM to O(chunk)).
    hold = (len(chunks) == 1) and (num_iter > 1)
    if hold:
        u_hat_held = compute_u_hat(0, ni)
        u_hat_at = lambda st, sz: u_hat_held
    else:
        u_hat_at = compute_u_hat

    # ---- Routing iteration 0: zero logits -> coupling is exactly 1/Nc ------
    if w_lane_dense and di % 8 == 0:
        # One dense MXU dot contracting BOTH Ni and Di (K = Ni*Di) replaces a
        # full VPU reduction over u_hat while the MXU is otherwise idle.
        w2d = w_ref[...].reshape(ni * di, ncd)
        x2d = x_ref[...].reshape(ni * di, tb)
        s = jax.lax.dot_general(
            w2d, x2d, (((0,), (0,)), ((), ())),
            preferred_element_type=jnp.float32)            # (Ncd, TB)
        s = s.reshape(nc, dc, tb) * (1.0 / nc)
    else:
        s = jnp.zeros((nc, dc, tb), jnp.float32)
        for st, sz in chunks:
            s = s + jnp.sum(u_hat_at(st, sz), axis=0)
        s = s * (1.0 / nc)

    if num_iter > 1:
        def coupled_sum(logits, approx):
            # softmax over Nc fused with the weighted sum, per Ni chunk.
            acc = jnp.zeros((nc, dc, tb), jnp.float32)
            for (st, sz), lg in zip(chunks, logits):
                c = _softmax_over_caps(lg, approx=approx)              # (sz, Nc, TB)
                acc = acc + jnp.sum(c[:, :, None, :] * u_hat_at(st, sz), axis=0)
            return acc

        def agreement(v):
            # v: (Nc, Dc, TB) -> per-chunk logit increments (sz, Nc, TB)
            return [jnp.sum(u_hat_at(st, sz) * v[None, :, :, :], axis=2)
                    for st, sz in chunks]

        v = _squash(s, axis=1)
        logits = agreement(v)            # b started at zero, so b + agree == agree

        # Middle iterations: approx (EUP) softmax / weighted sum / squash / agree.
        for _ in range(num_iter - 2):
            v = _squash(coupled_sum(logits, approx=True), axis=1)
            upd = agreement(v)
            logits = [lg + u for lg, u in zip(logits, upd)]

        # Final pass: exact softmax, weighted sum, NO squash (matches reference).
        s = coupled_sum(logits, approx=False)

    out_ref[...] = s.astype(out_ref.dtype)


# ---------------------------------------------------------------------------
# Wrapper
# ---------------------------------------------------------------------------
def _fold_weights(W, lane_dense):
    Nc, Ni, Dc, Di = W.shape
    if lane_dense:
        # (Ni, Di, Nc*Dc): lane axis is Nc*Dc -> raw-sized VMEM block, dense DMA.
        return (jnp.transpose(W, (1, 3, 0, 2))
                .reshape(Ni, Di, Nc * Dc).astype(jnp.float32))
    # Legacy layout (Ni, Nc*Dc, Di): Di on lanes (padded).  Fallback only.
    return (jnp.transpose(W, (1, 0, 2, 3))
            .reshape(Ni, Nc * Dc, Di).astype(jnp.float32))


def _routing_capsules_impl(x, W, num_iter, *, batch_tile=None, ni_chunk=128,
                           w_lane_dense=True):
    """x: (B, Ni, Di) f32, W: (Nc, Ni, Dc, Di) f32 -> (B, Nc, Dc) f32."""
    B, Ni, Di = x.shape
    Nc, Ni_w, Dc, Di_w = W.shape
    assert (Ni, Di) == (Ni_w, Di_w)
    Ncd = Nc * Dc
    ni_chunk = max(1, min(int(ni_chunk), Ni))

    # Batch tile: 256 lanes for small configs (amortize per-step overhead),
    # 128 for large Ni (bounds the u_hat chunk).  On v7x prefer shapes giving
    # >=2 grid steps on this "parallel" axis so both TensorCores are used.
    if batch_tile is None:
        batch_tile = 256 if Ni * Ncd <= 16 * 1024 else 128
    if B < 128:
        tb, bp = B, B                       # tiny batch: full-extent lane block
    else:
        bp128 = ((B + 127) // 128) * 128
        tb = min(((batch_tile + 127) // 128) * 128, bp128)
        bp = ((B + tb - 1) // tb) * tb

    # Batch on the lane axis.  (Feeding natural (B, Ni, Di) blocks would put
    # Di=8 on the kernel's lane axis -> 16x padded x block + in-kernel
    # relayout, worse than this single wrapper-side HBM pass.)
    xt = jnp.transpose(x.astype(jnp.float32), (1, 2, 0))             # (Ni, Di, B)
    if bp != B:
        xt = jnp.pad(xt, ((0, 0), (0, 0), (0, bp - B)))
    w2 = _fold_weights(W, w_lane_dense)

    # Explicit VMEM budget from the actual live set (only when the default
    # scoped limit would not fit; cap leaves headroom on v5e/v6e).
    def rup(n, m):
        return ((n + m - 1) // m) * m
    f32 = 4
    x_blk = Ni * rup(Di, 8) * rup(tb, 128) * f32
    w_blk = (Ni * rup(Di, 8) * rup(Ncd, 128) if w_lane_dense
             else Ni * rup(Ncd, 8) * rup(Di, 128)) * f32
    o_blk = Nc * rup(Dc, 8) * rup(tb, 128) * f32
    uh_chunk = ni_chunk * Nc * rup(Dc, 8) * rup(tb, 128) * f32
    logit_b = Ni * rup(Nc, 8) * rup(tb, 128) * f32
    est = 2 * (x_blk + w_blk + o_blk) + 3 * uh_chunk + 2 * logit_b + (8 << 20)
    vmem_limit = None if est <= (32 << 20) else min(est, 100 << 20)

    kernel = functools.partial(_routing_caps_kernel, num_iter=int(num_iter),
                               ni_chunk=ni_chunk, w_lane_dense=w_lane_dense)
    w_block = (Ni, Di, Ncd) if w_lane_dense else (Ni, Ncd, Di)

    out = pl.pallas_call(
        kernel,
        out_shape=jax.ShapeDtypeStruct((Nc, Dc, bp), jnp.float32),
        grid=(bp // tb,),
        in_specs=[
            pl.BlockSpec((Ni, Di, tb), lambda t: (0, 0, t)),
            # Constant index_map: W is DMA'd once and stays resident across
            # batch tiles.  (Could be single-buffered via pipeline_mode for
            # very large Ni; left at the default for compatibility.)
            pl.BlockSpec(w_block, lambda t: (0, 0, 0)),
        ],
        out_specs=pl.BlockSpec((Nc, Dc, tb), lambda t: (0, 0, t)),
        compiler_params=pltpu.CompilerParams(
            dimension_semantics=("parallel",),
            vmem_limit_bytes=vmem_limit,
        ),
    )(xt, w2)

    return jnp.transpose(out, (2, 0, 1))[:B]                         # (B, Nc, Dc)


_LANE_DENSE_SUPPORTED = None   # probed once: lane-dense W dot lowering available?


def routing_capsules(x, W, num_iter, **kwargs):
    """Forward pass of RoutingCapsules. x: (B, Ni, Di), W: (Nc, Ni, Dc, Di)."""
    global _LANE_DENSE_SUPPORTED
    if _LANE_DENSE_SUPPORTED is None:
        try:
            out = jax.block_until_ready(
                _routing_capsules_impl(x, W, num_iter, w_lane_dense=True, **kwargs))
            _LANE_DENSE_SUPPORTED = True
            return out
        except Exception:
            # Lowering for the lane-dense W contraction unavailable: fall back
            # to the previously validated (Ni, Nc*Dc, Di) weight layout.
            _LANE_DENSE_SUPPORTED = False
    return _routing_capsules_impl(
        x, W, num_iter, w_lane_dense=_LANE_DENSE_SUPPORTED, **kwargs)


# ---------------------------------------------------------------------------
# float64 numpy reference (mirrors the PyTorch forward) for verification
# ---------------------------------------------------------------------------
def routing_capsules_ref_np(x, W, num_iter):
    x = np.asarray(x, np.float64)
    W = np.asarray(W, np.float64)
    u_hat = np.einsum("jidk,bik->bjid", W, x)          # (B, Nc, Ni, Dc)
    b = np.zeros(u_hat.shape[:3] + (1,), np.float64)

    def softmax_caps(b):
        e = np.exp(b - b.max(axis=1, keepdims=True))
        return e / e.sum(axis=1, keepdims=True)

    def squash_np(s):
        sq = np.sum(s * s, axis=-1, keepdims=True)
        return sq / (1.0 + sq) * s / (np.sqrt(sq) + 1e-8)

    for _ in range(num_iter - 1):
        c = softmax_caps(b)
        s = (c * u_hat).sum(axis=2)
        v = squash_np(s)
        b = b + np.einsum("bjid,bjd->bji", u_hat, v)[..., None]
    c = softmax_caps(b)
    return (c * u_hat).sum(axis=2)


# ---------------------------------------------------------------------------
if __name__ == "__main__":
    # Shapes consistent with the module: input (B, Ni, Di), num_caps=4, dim_caps=16.
    B, Ni, Di = 2, 8, 8
    Nc, Dc = 4, 16
    num_iter = 3

    key = jax.random.PRNGKey(0)
    kx, kw = jax.random.split(key)
    x = jax.random.normal(kx, (B, Ni, Di), dtype=jnp.float32)
    # W = 0.01 * randn(1, num_caps, Ni, dim_caps, Di)  (leading 1 dropped)
    W = 0.01 * jax.random.normal(kw, (Nc, Ni, Dc, Di), dtype=jnp.float32)

    out = jax.block_until_ready(routing_capsules(x, W, num_iter))
    assert out.shape == (B, Nc, Dc), out.shape
    ref = routing_capsules_ref_np(x, W, num_iter)
    # Tolerance accounts for the MXU default-precision f32 path vs f64 reference.
    err = float(np.max(np.abs(np.asarray(out) - ref)))
    assert err < 2e-3, f"mismatch vs reference: max abs err = {err}"

    # Larger batch exercising the 128-lane batch tiling + padding path.
    B2 = 200
    x2 = jax.random.normal(jax.random.PRNGKey(1), (B2, Ni, Di), dtype=jnp.float32)
    out2 = jax.block_until_ready(routing_capsules(x2, W, num_iter))
    assert out2.shape == (B2, Nc, Dc), out2.shape
    ref2 = routing_capsules_ref_np(x2, W, num_iter)
    err2 = float(np.max(np.abs(np.asarray(out2) - ref2)))
    assert err2 < 2e-3, f"mismatch (tiled) vs reference: max abs err = {err2}"

    # Exercise the Ni-chunked recompute path (multiple chunks of u_hat).
    B3, Ni3 = 64, 40
    x3 = jax.random.normal(jax.random.PRNGKey(2), (B3, Ni3, Di), dtype=jnp.float32)
    W3 = 0.01 * jax.random.normal(jax.random.PRNGKey(3), (Nc, Ni3, Dc, Di),
                                  dtype=jnp.float32)
    out3 = jax.block_until_ready(routing_capsules(x3, W3, num_iter, ni_chunk=16))
    assert out3.shape == (B3, Nc, Dc), out3.shape
    ref3 = routing_capsules_ref_np(x3, W3, num_iter)
    err3 = float(np.max(np.abs(np.asarray(out3) - ref3)))
    assert err3 < 2e-3, f"mismatch (chunked) vs reference: max abs err = {err3}"

    print("KERNEL_OK")
</pallas_src>

<mosaic_0001>
module attributes {stable_mosaic.version = 11 : i64} {
  func.func @_routing_caps_kernel(%arg0: i32, %arg1: memref<8x8x2xf32, #tpu.memory_space<vmem>>, %arg2: memref<8x8x64xf32, #tpu.memory_space<vmem>>, %arg3: memref<4x16x2xf32, #tpu.memory_space<vmem>>) attributes {dimension_semantics = [#tpu.dimension_semantics<parallel>], iteration_bounds = array<i64: 1>, scalar_prefetch = 0 : i64, scratch_operands = 0 : i64, tpu.core_type = #tpu.core_type<tc>, window_params = [{transform_indices = @transform_0, window_bounds = array<i64: 8, 8, 2>}, {pipeline_mode = #tpu.pipeline_mode<synchronous>, transform_indices = @transform_1, window_bounds = array<i64: 8, 8, 64>}, {transform_indices = @transform_2, window_bounds = array<i64: 4, 16, 2>}]} {
    %c0 = arith.constant 0 : index
    %c0_0 = arith.constant 0 : index
    %c0_1 = arith.constant 0 : index
    %0 = vector.load %arg1[%c0, %c0_0, %c0_1] : memref<8x8x2xf32, #tpu.memory_space<vmem>>, vector<8x8x2xf32>
    %c0_2 = arith.constant 0 : index
    %c0_3 = arith.constant 0 : index
    %c0_4 = arith.constant 0 : index
    %1 = vector.load %arg2[%c0_2, %c0_3, %c0_4] : memref<8x8x64xf32, #tpu.memory_space<vmem>>, vector<8x8x64xf32>
    %cst = arith.constant dense<0.000000e+00> : vector<8x64x2xf32>
    %2 = tpu.matmul %1, %0, %cst {dimension_numbers = #tpu.dot_dimension_numbers<[1], [1], [2], [2], [0, 0, 0, 2, 1, 2], [0], [0]>} : vector<8x8x64xf32>, vector<8x8x2xf32>, vector<8x64x2xf32> -> vector<8x64x2xf32>
    %3 = vector.shape_cast %2 : vector<8x64x2xf32> to vector<8x4x16x2xf32>
    %c0_5 = arith.constant 0 : index
    %c0_6 = arith.constant 0 : index
    %c0_7 = arith.constant 0 : index
    %4 = vector.load %arg2[%c0_5, %c0_6, %c0_7] : memref<8x8x64xf32, #tpu.memory_space<vmem>>, vector<8x8x64xf32>
    %5 = vector.shape_cast %4 : vector<8x8x64xf32> to vector<64x64xf32>
    %c0_8 = arith.constant 0 : index
    %c0_9 = arith.constant 0 : index
    %c0_10 = arith.constant 0 : index
    %6 = vector.load %arg1[%c0_8, %c0_9, %c0_10] : memref<8x8x2xf32, #tpu.memory_space<vmem>>, vector<8x8x2xf32>
    %7 = vector.shape_cast %6 : vector<8x8x2xf32> to vector<64x2xf32>
    %cst_11 = arith.constant dense<0.000000e+00> : vector<64x2xf32>
    %8 = tpu.matmul %5, %7, %cst_11 {dimension_numbers = #tpu.dot_dimension_numbers<[0], [0], [1], [1], [0, 1, 1, 1], [], []>} : vector<64x64xf32>, vector<64x2xf32>, vector<64x2xf32> -> vector<64x2xf32>
    %9 = vector.shape_cast %8 : vector<64x2xf32> to vector<4x16x2xf32>
    %cst_12 = arith.constant 2.500000e-01 : f32
    %10 = vector.broadcast %cst_12 : f32 to vector<4x16x2xf32>
    %11 = arith.mulf %9, %10 : vector<4x16x2xf32>
    %12 = arith.mulf %11, %11 : vector<4x16x2xf32>
    %cst_13 = arith.constant dense<0.000000e+00> : vector<4x2xf32>
    %13 = vector.multi_reduction <add>, %12, %cst_13 [1] : vector<4x16x2xf32> to vector<4x2xf32>
    %14 = vector.shape_cast %13 : vector<4x2xf32> to vector<4x1x2xf32>
    %cst_14 = arith.constant 1.000000e+00 : f32
    %15 = vector.broadcast %cst_14 : f32 to vector<4x1x2xf32>
    %16 = arith.addf %15, %14 : vector<4x1x2xf32>
    %17 = arith.divf %14, %16 : vector<4x1x2xf32>
    %18 = vector.broadcast %17 : vector<4x1x2xf32> to vector<4x16x2xf32>
    %19 = arith.mulf %18, %11 : vector<4x16x2xf32>
    %20 = math.sqrt %14 : vector<4x1x2xf32>
    %cst_15 = arith.constant 9.99999993E-9 : f32
    %21 = vector.broadcast %cst_15 : f32 to vector<4x1x2xf32>
    %22 = arith.addf %20, %21 : vector<4x1x2xf32>
    %23 = vector.broadcast %22 : vector<4x1x2xf32> to vector<4x16x2xf32>
    %24 = arith.divf %19, %23 : vector<4x16x2xf32>
    %25 = vector.shape_cast %24 : vector<4x16x2xf32> to vector<1x4x16x2xf32>
    %26 = vector.broadcast %25 : vector<1x4x16x2xf32> to vector<8x4x16x2xf32>
    %27 = arith.mulf %3, %26 : vector<8x4x16x2xf32>
    %cst_16 = arith.constant dense<0.000000e+00> : vector<8x4x2xf32>
    %28 = vector.multi_reduction <add>, %27, %cst_16 [2] : vector<8x4x16x2xf32> to vector<8x4x2xf32>
    %cst_17 = arith.constant 0.000000e+00 : f32
    %29 = vector.broadcast %cst_17 : f32 to vector<4x16x2xf32>
    %cst_18 = arith.constant dense<0xFF800000> : vector<8x2xf32>
    %30 = vector.multi_reduction <maximumf>, %28, %cst_18 [1] : vector<8x4x2xf32> to vector<8x2xf32>
    %31 = vector.shape_cast %30 : vector<8x2xf32> to vector<8x1x2xf32>
    %32 = vector.broadcast %31 : vector<8x1x2xf32> to vector<8x4x2xf32>
    %33 = arith.subf %28, %32 : vector<8x4x2xf32>
    %34 = math.exp %33 : vector<8x4x2xf32>
    %cst_19 = arith.constant dense<0.000000e+00> : vector<8x2xf32>
    %35 = vector.multi_reduction <add>, %34, %cst_19 [1] : vector<8x4x2xf32> to vector<8x2xf32>
    %36 = vector.shape_cast %35 : vector<8x2xf32> to vector<8x1x2xf32>
    %37 = tpu.reciprocal %36 {approx = true} : vector<8x1x2xf32> -> vector<8x1x2xf32>
    %38 = vector.broadcast %37 : vector<8x1x2xf32> to vector<8x4x2xf32>
    %39 = arith.mulf %34, %38 : vector<8x4x2xf32>
    %40 = vector.shape_cast %39 : vector<8x4x2xf32> to vector<8x4x1x2xf32>
    %41 = vector.broadcast %40 : vector<8x4x1x2xf32> to vector<8x4x16x2xf32>
    %42 = arith.mulf %41, %3 : vector<8x4x16x2xf32>
    %cst_20 = arith.constant dense<0.000000e+00> : vector<4x16x2xf32>
    %43 = vector.multi_reduction <add>, %42, %cst_20 [0] : vector<8x4x16x2xf32> to vector<4x16x2xf32>
    %44 = arith.addf %29, %43 : vector<4x16x2xf32>
    %45 = arith.mulf %44, %44 : vector<4x16x2xf32>
    %cst_21 = arith.constant dense<0.000000e+00> : vector<4x2xf32>
    %46 = vector.multi_reduction <add>, %45, %cst_21 [1] : vector<4x16x2xf32> to vector<4x2xf32>
    %47 = vector.shape_cast %46 : vector<4x2xf32> to vector<4x1x2xf32>
    %cst_22 = arith.constant 1.000000e+00 : f32
    %48 = vector.broadcast %cst_22 : f32 to vector<4x1x2xf32>
    %49 = arith.addf %48, %47 : vector<4x1x2xf32>
    %50 = arith.divf %47, %49 : vector<4x1x2xf32>
    %51 = vector.broadcast %50 : vector<4x1x2xf32> to vector<4x16x2xf32>
    %52 = arith.mulf %51, %44 : vector<4x16x2xf32>
    %53 = math.sqrt %47 : vector<4x1x2xf32>
    %cst_23 = arith.constant 9.99999993E-9 : f32
    %54 = vector.broadcast %cst_23 : f32 to vector<4x1x2xf32>
    %55 = arith.addf %53, %54 : vector<4x1x2xf32>
    %56 = vector.broadcast %55 : vector<4x1x2xf32> to vector<4x16x2xf32>
    %57 = arith.divf %52, %56 : vector<4x16x2xf32>
    %58 = vector.shape_cast %57 : vector<4x16x2xf32> to vector<1x4x16x2xf32>
    %59 = vector.broadcast %58 : vector<1x4x16x2xf32> to vector<8x4x16x2xf32>
    %60 = arith.mulf %3, %59 : vector<8x4x16x2xf32>
    %cst_24 = arith.constant dense<0.000000e+00> : vector<8x4x2xf32>
    %61 = vector.multi_reduction <add>, %60, %cst_24 [2] : vector<8x4x16x2xf32> to vector<8x4x2xf32>
    %62 = arith.addf %28, %61 : vector<8x4x2xf32>
    %cst_25 = arith.constant 0.000000e+00 : f32
    %63 = vector.broadcast %cst_25 : f32 to vector<4x16x2xf32>
    %cst_26 = arith.constant dense<0xFF800000> : vector<8x2xf32>
    %64 = vector.multi_reduction <maximumf>, %62, %cst_26 [1] : vector<8x4x2xf32> to vector<8x2xf32>
    %65 = vector.shape_cast %64 : vector<8x2xf32> to vector<8x1x2xf32>
    %66 = vector.broadcast %65 : vector<8x1x2xf32> to vector<8x4x2xf32>
    %67 = arith.subf %62, %66 : vector<8x4x2xf32>
    %68 = math.exp %67 : vector<8x4x2xf32>
    %cst_27 = arith.constant dense<0.000000e+00> : vector<8x2xf32>
    %69 = vector.multi_reduction <add>, %68, %cst_27 [1] : vector<8x4x2xf32> to vector<8x2xf32>
    %70 = vector.shape_cast %69 : vector<8x2xf32> to vector<8x1x2xf32>
    %71 = vector.broadcast %70 : vector<8x1x2xf32> to vector<8x4x2xf32>
    %72 = arith.divf %68, %71 : vector<8x4x2xf32>
    %73 = vector.shape_cast %72 : vector<8x4x2xf32> to vector<8x4x1x2xf32>
    %74 = vector.broadcast %73 : vector<8x4x1x2xf32> to vector<8x4x16x2xf32>
    %75 = arith.mulf %74, %3 : vector<8x4x16x2xf32>
    %cst_28 = arith.constant dense<0.000000e+00> : vector<4x16x2xf32>
    %76 = vector.multi_reduction <add>, %75, %cst_28 [0] : vector<8x4x16x2xf32> to vector<4x16x2xf32>
    %77 = arith.addf %63, %76 : vector<4x16x2xf32>
    %c0_29 = arith.constant 0 : index
    %c0_30 = arith.constant 0 : index
    %c0_31 = arith.constant 0 : index
    %78 = vector.load %arg3[%c0_29, %c0_30, %c0_31] : memref<4x16x2xf32, #tpu.memory_space<vmem>>, vector<4x16x2xf32>
    tpu.vector_store %arg3[%c0_29, %c0_30, %c0_31], %77 {strides = array<i32>} : memref<4x16x2xf32, #tpu.memory_space<vmem>>, vector<4x16x2xf32>,
    return
  }
  func.func @transform_0(%arg0: i32) -> (i32, i32, i32) {
    %c0_i32 = arith.constant 0 : i32
    %c0_i32_0 = arith.constant 0 : i32
    %c0_i32_1 = arith.constant 0 : i32
    return %c0_i32, %c0_i32_0, %arg0 : i32, i32, i32
  }
  func.func @transform_1(%arg0: i32) -> (i32, i32, i32) {
    %c0_i32 = arith.constant 0 : i32
    %c0_i32_0 = arith.constant 0 : i32
    %c0_i32_1 = arith.constant 0 : i32
    %c0_i32_2 = arith.constant 0 : i32
    return %c0_i32, %c0_i32_0, %c0_i32_1 : i32, i32, i32
  }
  func.func @transform_2(%arg0: i32) -> (i32, i32, i32) {
    %c0_i32 = arith.constant 0 : i32
    %c0_i32_0 = arith.constant 0 : i32
    %c0_i32_1 = arith.constant 0 : i32
    return %c0_i32, %c0_i32_0, %arg0 : i32, i32, i32
  }
}

module attributes {stable_mosaic.version = 11 : i64} {
  func.func @_routing_caps_kernel(%arg0: i32, %arg1: memref<8x8x2xf32, #tpu.memory_space<vmem>>, %arg2: memref<8x64x8xf32, #tpu.memory_space<vmem>>, %arg3: memref<4x16x2xf32, #tpu.memory_space<vmem>>) attributes {dimension_semantics = [#tpu.dimension_semantics<parallel>], iteration_bounds = array<i64: 1>, scalar_prefetch = 0 : i64, scratch_operands = 0 : i64, tpu.core_type = #tpu.core_type<tc>, window_params = [{transform_indices = @transform_0, window_bounds = array<i64: 8, 8, 2>}, {pipeline_mode = #tpu.pipeline_mode<synchronous>, transform_indices = @transform_1, window_bounds = array<i64: 8, 64, 8>}, {transform_indices = @transform_2, window_bounds = array<i64: 4, 16, 2>}]} {
    %c0 = arith.constant 0 : index
    %c0_0 = arith.constant 0 : index
    %c0_1 = arith.constant 0 : index
    %0 = vector.load %arg1[%c0, %c0_0, %c0_1] : memref<8x8x2xf32, #tpu.memory_space<vmem>>, vector<8x8x2xf32>
    %c0_2 = arith.constant 0 : index
    %c0_3 = arith.constant 0 : index
    %c0_4 = arith.constant 0 : index
    %1 = vector.load %arg2[%c0_2, %c0_3, %c0_4] : memref<8x64x8xf32, #tpu.memory_space<vmem>>, vector<8x64x8xf32>
    %cst = arith.constant dense<0.000000e+00> : vector<8x64x2xf32>
    %2 = tpu.matmul %1, %0, %cst {dimension_numbers = #tpu.dot_dimension_numbers<[2], [1], [1], [2], [0, 0, 0, 1, 1, 2], [0], [0]>} : vector<8x64x8xf32>, vector<8x8x2xf32>, vector<8x64x2xf32> -> vector<8x64x2xf32>
    %3 = vector.shape_cast %2 : vector<8x64x2xf32> to vector<8x4x16x2xf32>
    %cst_5 = arith.constant 0.000000e+00 : f32
    %4 = vector.broadcast %cst_5 : f32 to vector<4x16x2xf32>
    %cst_6 = arith.constant dense<0.000000e+00> : vector<4x16x2xf32>
    %5 = vector.multi_reduction <add>, %3, %cst_6 [0] : vector<8x4x16x2xf32> to vector<4x16x2xf32>
    %6 = arith.addf %4, %5 : vector<4x16x2xf32>
    %cst_7 = arith.constant 2.500000e-01 : f32
    %7 = vector.broadcast %cst_7 : f32 to vector<4x16x2xf32>
    %8 = arith.mulf %6, %7 : vector<4x16x2xf32>
    %9 = arith.mulf %8, %8 : vector<4x16x2xf32>
    %cst_8 = arith.constant dense<0.000000e+00> : vector<4x2xf32>
    %10 = vector.multi_reduction <add>, %9, %cst_8 [1] : vector<4x16x2xf32> to vector<4x2xf32>
    %11 = vector.shape_cast %10 : vector<4x2xf32> to vector<4x1x2xf32>
    %cst_9 = arith.constant 1.000000e+00 : f32
    %12 = vector.broadcast %cst_9 : f32 to vector<4x1x2xf32>
    %13 = arith.addf %12, %11 : vector<4x1x2xf32>
    %14 = arith.divf %11, %13 : vector<4x1x2xf32>
    %15 = vector.broadcast %14 : vector<4x1x2xf32> to vector<4x16x2xf32>
    %16 = arith.mulf %15, %8 : vector<4x16x2xf32>
    %17 = math.sqrt %11 : vector<4x1x2xf32>
    %cst_10 = arith.constant 9.99999993E-9 : f32
    %18 = vector.broadcast %cst_10 : f32 to vector<4x1x2xf32>
    %19 = arith.addf %17, %18 : vector<4x1x2xf32>
    %20 = vector.broadcast %19 : vector<4x1x2xf32> to vector<4x16x2xf32>
    %21 = arith.divf %16, %20 : vector<4x16x2xf32>
    %22 = vector.shape_cast %21 : vector<4x16x2xf32> to vector<1x4x16x2xf32>
    %23 = vector.broadcast %22 : vector<1x4x16x2xf32> to vector<8x4x16x2xf32>
    %24 = arith.mulf %3, %23 : vector<8x4x16x2xf32>
    %cst_11 = arith.constant dense<0.000000e+00> : vector<8x4x2xf32>
    %25 = vector.multi_reduction <add>, %24, %cst_11 [2] : vector<8x4x16x2xf32> to vector<8x4x2xf32>
    %cst_12 = arith.constant 0.000000e+00 : f32
    %26 = vector.broadcast %cst_12 : f32 to vector<4x16x2xf32>
    %cst_13 = arith.constant dense<0xFF800000> : vector<8x2xf32>
    %27 = vector.multi_reduction <maximumf>, %25, %cst_13 [1] : vector<8x4x2xf32> to vector<8x2xf32>
    %28 = vector.shape_cast %27 : vector<8x2xf32> to vector<8x1x2xf32>
    %29 = vector.broadcast %28 : vector<8x1x2xf32> to vector<8x4x2xf32>
    %30 = arith.subf %25, %29 : vector<8x4x2xf32>
    %31 = math.exp %30 : vector<8x4x2xf32>
    %cst_14 = arith.constant dense<0.000000e+00> : vector<8x2xf32>
    %32 = vector.multi_reduction <add>, %31, %cst_14 [1] : vector<8x4x2xf32> to vector<8x2xf32>
    %33 = vector.shape_cast %32 : vector<8x2xf32> to vector<8x1x2xf32>
    %34 = tpu.reciprocal %33 {approx = true} : vector<8x1x2xf32> -> vector<8x1x2xf32>
    %35 = vector.broadcast %34 : vector<8x1x2xf32> to vector<8x4x2xf32>
    %36 = arith.mulf %31, %35 : vector<8x4x2xf32>
    %37 = vector.shape_cast %36 : vector<8x4x2xf32> to vector<8x4x1x2xf32>
    %38 = vector.broadcast %37 : vector<8x4x1x2xf32> to vector<8x4x16x2xf32>
    %39 = arith.mulf %38, %3 : vector<8x4x16x2xf32>
    %cst_15 = arith.constant dense<0.000000e+00> : vector<4x16x2xf32>
    %40 = vector.multi_reduction <add>, %39, %cst_15 [0] : vector<8x4x16x2xf32> to vector<4x16x2xf32>
    %41 = arith.addf %26, %40 : vector<4x16x2xf32>
    %42 = arith.mulf %41, %41 : vector<4x16x2xf32>
    %cst_16 = arith.constant dense<0.000000e+00> : vector<4x2xf32>
    %43 = vector.multi_reduction <add>, %42, %cst_16 [1] : vector<4x16x2xf32> to vector<4x2xf32>
    %44 = vector.shape_cast %43 : vector<4x2xf32> to vector<4x1x2xf32>
    %cst_17 = arith.constant 1.000000e+00 : f32
    %45 = vector.broadcast %cst_17 : f32 to vector<4x1x2xf32>
    %46 = arith.addf %45, %44 : vector<4x1x2xf32>
    %47 = arith.divf %44, %46 : vector<4x1x2xf32>
    %48 = vector.broadcast %47 : vector<4x1x2xf32> to vector<4x16x2xf32>
    %49 = arith.mulf %48, %41 : vector<4x16x2xf32>
    %50 = math.sqrt %44 : vector<4x1x2xf32>
    %cst_18 = arith.constant 9.99999993E-9 : f32
    %51 = vector.broadcast %cst_18 : f32 to vector<4x1x2xf32>
    %52 = arith.addf %50, %51 : vector<4x1x2xf32>
    %53 = vector.broadcast %52 : vector<4x1x2xf32> to vector<4x16x2xf32>
    %54 = arith.divf %49, %53 : vector<4x16x2xf32>
    %55 = vector.shape_cast %54 : vector<4x16x2xf32> to vector<1x4x16x2xf32>
    %56 = vector.broadcast %55 : vector<1x4x16x2xf32> to vector<8x4x16x2xf32>
    %57 = arith.mulf %3, %56 : vector<8x4x16x2xf32>
    %cst_19 = arith.constant dense<0.000000e+00> : vector<8x4x2xf32>
    %58 = vector.multi_reduction <add>, %57, %cst_19 [2] : vector<8x4x16x2xf32> to vector<8x4x2xf32>
    %59 = arith.addf %25, %58 : vector<8x4x2xf32>
    %cst_20 = arith.constant 0.000000e+00 : f32
    %60 = vector.broadcast %cst_20 : f32 to vector<4x16x2xf32>
    %cst_21 = arith.constant dense<0xFF800000> : vector<8x2xf32>
    %61 = vector.multi_reduction <maximumf>, %59, %cst_21 [1] : vector<8x4x2xf32> to vector<8x2xf32>
    %62 = vector.shape_cast %61 : vector<8x2xf32> to vector<8x1x2xf32>
    %63 = vector.broadcast %62 : vector<8x1x2xf32> to vector<8x4x2xf32>
    %64 = arith.subf %59, %63 : vector<8x4x2xf32>
    %65 = math.exp %64 : vector<8x4x2xf32>
    %cst_22 = arith.constant dense<0.000000e+00> : vector<8x2xf32>
    %66 = vector.multi_reduction <add>, %65, %cst_22 [1] : vector<8x4x2xf32> to vector<8x2xf32>
    %67 = vector.shape_cast %66 : vector<8x2xf32> to vector<8x1x2xf32>
    %68 = vector.broadcast %67 : vector<8x1x2xf32> to vector<8x4x2xf32>
    %69 = arith.divf %65, %68 : vector<8x4x2xf32>
    %70 = vector.shape_cast %69 : vector<8x4x2xf32> to vector<8x4x1x2xf32>
    %71 = vector.broadcast %70 : vector<8x4x1x2xf32> to vector<8x4x16x2xf32>
    %72 = arith.mulf %71, %3 : vector<8x4x16x2xf32>
    %cst_23 = arith.constant dense<0.000000e+00> : vector<4x16x2xf32>
    %73 = vector.multi_reduction <add>, %72, %cst_23 [0] : vector<8x4x16x2xf32> to vector<4x16x2xf32>
    %74 = arith.addf %60, %73 : vector<4x16x2xf32>
    %c0_24 = arith.constant 0 : index
    %c0_25 = arith.constant 0 : index
    %c0_26 = arith.constant 0 : index
    %75 = vector.load %arg3[%c0_24, %c0_25, %c0_26] : memref<4x16x2xf32, #tpu.memory_space<vmem>>, vector<4x16x2xf32>
    tpu.vector_store %arg3[%c0_24, %c0_25, %c0_26], %74 {strides = array<i32>} : memref<4x16x2xf32, #tpu.memory_space<vmem>>, vector<4x16x2xf32>,
    return
  }
  func.func @transform_0(%arg0: i32) -> (i32, i32, i32) {
    %c0_i32 = arith.constant 0 : i32
    %c0_i32_0 = arith.constant 0 : i32
    %c0_i32_1 = arith.constant 0 : i32
    return %c0_i32, %c0_i32_0, %arg0 : i32, i32, i32
  }
  func.func @transform_1(%arg0: i32) -> (i32, i32, i32) {
    %c0_i32 = arith.constant 0 : i32
    %c0_i32_0 = arith.constant 0 : i32
    %c0_i32_1 = arith.constant 0 : i32
    %c0_i32_2 = arith.constant 0 : i32
    return %c0_i32, %c0_i32_0, %c0_i32_1 : i32, i32, i32
  }
  func.func @transform_2(%arg0: i32) -> (i32, i32, i32) {
    %c0_i32 = arith.constant 0 : i32
    %c0_i32_0 = arith.constant 0 : i32
    %c0_i32_1 = arith.constant 0 : i32
    return %c0_i32, %c0_i32_0, %arg0 : i32, i32, i32
  }
}

</mosaic_0001>

<llo_original>
// kernel: tpu_custom_call.1
$region0: #{tpu_custom_call.1}
  #allocation0 [shape = 'u32[]', space=smem, size = 0x4, offset = 0x4, fixed_abs, tag = 'smem constant byte address 0x4 - core index']
  #allocation1 [shape = 'u32[72,128]{1,0:T(1,128)}', space=vmem, size = 0x9000, scoped, tag = 'internal scratch']
  %s0 = inlined_call_operand.vmem [shape: f32[8,8,2], index: 0, kind: input, shape index: {}]
  %s1 = inlined_call_operand.vmem [shape: f32[8,8,64], index: 1, kind: input, shape index: {}]
  %s2 = inlined_call_operand.vmem [shape: f32[4,16,2], index: 2, kind: output, shape index: {}]
  %s3 = sld [smem:[#allocation0]]
  $region18: #{tpu_custom_call.1} parent=0
    _
  %s5 = ssub.s32 1, %s3
  %s6 = scalar_select 0, %s5, %s3
  // Predicated region
  $region2: #{tpu_custom_call.1} parent=0 // pred_check
    _
  $region3: #{tpu_custom_call.1} parent=0 // pred_check_branch
    %8 = sbr.rel (0) target = $region5
  $region4: #{tpu_custom_call.1} parent=0 // pred_region
    _
  $region5: #{tpu_custom_call.1} parent=0 // pred_fallthru
    _
  // Predicated region
  $region6: #{tpu_custom_call.1} parent=0 // pred_check
    _
  $region7: #{tpu_custom_call.1} parent=0 // pred_check_branch
    %10 = sbr.rel (0) target = $region9
  $region8: #{tpu_custom_call.1} parent=0 // pred_region
    _
  $region9: #{tpu_custom_call.1} parent=0 // pred_fallthru
    _
  %v11 = vld [vmem:[%s0] sm:$0xff]
  %v12 = vld [vmem:[%s0 + $0x8] sm:$0xff]
  %v13 = vld [vmem:[%s0 + $0x10] sm:$0xff]
  %v14 = vld [vmem:[%s0 + $0x18] sm:$0xff]
  %v15 = vld [vmem:[%s0 + $0x20] sm:$0xff]
  %v16 = vld [vmem:[%s0 + $0x28] sm:$0xff]
  %v17 = vld [vmem:[%s0 + $0x30] sm:$0xff]
  %v18 = vld [vmem:[%s0 + $0x38] sm:$0xff]
  %v19 = vld [vmem:[%s1] sm:$0xff]
  %v20 = vld [vmem:[%s1 + $0x8] sm:$0xff]
  %v21 = vld [vmem:[%s1 + $0x10] sm:$0xff]
  %v22 = vld [vmem:[%s1 + $0x18] sm:$0xff]
  %v23 = vld [vmem:[%s1 + $0x20] sm:$0xff]
  %v24 = vld [vmem:[%s1 + $0x28] sm:$0xff]
  %v25 = vld [vmem:[%s1 + $0x30] sm:$0xff]
  %v26 = vld [vmem:[%s1 + $0x38] sm:$0xff]
  %27 = vxpose.xlu0.b32.start [1/16] %v19, 128
  %28 = vxpose.xlu0.b32.cont [2/16] 0.0, 128
  %29 = vxpose.xlu0.b32.cont [3/16] 0.0, 128
  %30 = vxpose.xlu0.b32.cont [4/16] 0.0, 128
  %31 = vxpose.xlu0.b32.cont [5/16] 0.0, 128
  %32 = vxpose.xlu0.b32.cont [6/16] 0.0, 128
  %33 = vxpose.xlu0.b32.cont [7/16] 0.0, 128
  %34 = vxpose.xlu0.b32.cont [8/16] 0.0, 128
  %35 = vxpose.xlu0.b32.cont [9/16] 0.0, 128
  %36 = vxpose.xlu0.b32.cont [10/16] 0.0, 128
  %37 = vxpose.xlu0.b32.cont [11/16] 0.0, 128
  %38 = vxpose.xlu0.b32.cont [12/16] 0.0, 128
  %39 = vxpose.xlu0.b32.cont [13/16] 0.0, 128
  %40 = vxpose.xlu0.b32.cont [14/16] 0.0, 128
  %41 = vxpose.xlu0.b32.cont [15/16] 0.0, 128
  %42 = vxpose.xlu0.b32.end [16/16] 0.0, 128
  %v43 = vpop.trf.xlu0
  %v44 = vpop.trf.xlu0
  %v45 = vpop.trf.xlu0
  %v46 = vpop.trf.xlu0
  %v47 = vpop.trf.xlu0
  %v48 = vpop.trf.xlu0
  %v49 = vpop.trf.xlu0
  %v50 = vpop.trf.xlu0
  %v51 = vpop.trf.xlu0
  %v52 = vpop.trf.xlu0
  %v53 = vpop.trf.xlu0
  %v54 = vpop.trf.xlu0
  %v55 = vpop.trf.xlu0
  %v56 = vpop.trf.xlu0
  %v57 = vpop.trf.xlu0
  %v58 = vpop.trf.xlu0
  %vm59 = vcmask 64512
  %v61 = vsel %vm59, %v43, 0
  %v64 = vsel %vm59, %v44, 0
  %v67 = vsel %vm59, %v45, 0
  %v70 = vsel %vm59, %v46, 0
  %v73 = vsel %vm59, %v47, 0
  %v76 = vsel %vm59, %v48, 0
  %v79 = vsel %vm59, %v49, 0
  %v82 = vsel %vm59, %v50, 0
  %84 = vmatpush.msra.mxu0 0.0
  %85 = vmatpush.msra.mxu0 0.0
  %86 = vmatpush.msra.mxu0 0.0
  %87 = vmatpush.msra.mxu0 0.0
  %88 = vmatpush.msra.mxu0 0.0
  %89 = vmatpush.msra.mxu0 0.0
  %90 = vmatpush.msra.mxu0 0.0
  %91 = vmatpush.msra.mxu0 0.0
  %92 = vmatpush.msra.mxu0 0.0
  %93 = vmatpush.msra.mxu0 0.0
  %94 = vmatpush.msra.mxu0 0.0
  %95 = vmatpush.msra.mxu0 0.0
  %96 = vmatpush.msra.mxu0 0.0
  %97 = vmatpush.msra.mxu0 0.0
  %98 = vmatpush.msra.mxu0 0.0
  %99 = vmatpush.msra.mxu0 %v11
  %100 = vmatmul.f32.gmra.mxu0 %v61
  %v101 = vpop.f32.mrf.mxu0
  %v102 = vadd.f32 0.0, %v101
  %103 = vmatmul.f32.gmra.mxu0 %v64
  %v104 = vpop.f32.mrf.mxu0
  %v105 = vadd.f32 0.0, %v104
  %106 = vmatmul.f32.gmra.mxu0 %v67
  %v107 = vpop.f32.mrf.mxu0
  %v108 = vadd.f32 0.0, %v107
  %109 = vmatmul.f32.gmra.mxu0 %v70
  %v110 = vpop.f32.mrf.mxu0
  %v111 = vadd.f32 0.0, %v110
  %112 = vmatmul.f32.gmra.mxu0 %v73
  %v113 = vpop.f32.mrf.mxu0
  %v114 = vadd.f32 0.0, %v113
  %115 = vmatmul.f32.gmra.mxu0 %v76
  %v116 = vpop.f32.mrf.mxu0
  %v117 = vadd.f32 0.0, %v116
  %118 = vmatmul.f32.gmra.mxu0 %v79
  %v119 = vpop.f32.mrf.mxu0
  %v120 = vadd.f32 0.0, %v119
  %121 = vmatmul.f32.gmra.mxu0 %v82
  %v122 = vpop.f32.mrf.mxu0
  %v123 = vadd.f32 0.0, %v122
  %124 = vdwg.mxu0
  %125 = vxpose.xlu0.b32.start [1/16] %v20, 128
  %126 = vxpose.xlu0.b32.cont [2/16] 0.0, 128
  %127 = vxpose.xlu0.b32.cont [3/16] 0.0, 128
  %128 = vxpose.xlu0.b32.cont [4/16] 0.0, 128
  %129 = vxpose.xlu0.b32.cont [5/16] 0.0, 128
  %130 = vxpose.xlu0.b32.cont [6/16] 0.0, 128
  %131 = vxpose.xlu0.b32.cont [7/16] 0.0, 128
  %132 = vxpose.xlu0.b32.cont [8/16] 0.0, 128
  %133 = vxpose.xlu0.b32.cont [9/16] 0.0, 128
  %134 = vxpose.xlu0.b32.cont [10/16] 0.0, 128
  %135 = vxpose.xlu0.b32.cont [11/16] 0.0, 128
  %136 = vxpose.xlu0.b32.cont [12/16] 0.0, 128
  %137 = vxpose.xlu0.b32.cont [13/16] 0.0, 128
  %138 = vxpose.xlu0.b32.cont [14/16] 0.0, 128
  %139 = vxpose.xlu0.b32.cont [15/16] 0.0, 128
  %140 = vxpose.xlu0.b32.end [16/16] 0.0, 128
  %v141 = vpop.trf.xlu0
  %v142 = vpop.trf.xlu0
  %v143 = vpop.trf.xlu0
  %v144 = vpop.trf.xlu0
  %v145 = vpop.trf.xlu0
  %v146 = vpop.trf.xlu0
  %v147 = vpop.trf.xlu0
  %v148 = vpop.trf.xlu0
  %v149 = vpop.trf.xlu0
  %v150 = vpop.trf.xlu0
  %v151 = vpop.trf.xlu0
  %v152 = vpop.trf.xlu0
  %v153 = vpop.trf.xlu0
  %v154 = vpop.trf.xlu0
  %v155 = vpop.trf.xlu0
  %v156 = vpop.trf.xlu0
  %v158 = vsel %vm59, %v141, 0
  %v161 = vsel %vm59, %v142, 0
  %v164 = vsel %vm59, %v143, 0
  %v167 = vsel %vm59, %v144, 0
  %v170 = vsel %vm59, %v145, 0
  %v173 = vsel %vm59, %v146, 0
  %v176 = vsel %vm59, %v147, 0
  %v179 = vsel %vm59, %v148, 0
  %181 = vmatpush.msra.mxu0 0.0
  %182 = vmatpush.msra.mxu0 0.0
  %183 = vmatpush.msra.mxu0 0.0
  %184 = vmatpush.msra.mxu0 0.0
  %185 = vmatpush.msra.mxu0 0.0
  %186 = vmatpush.msra.mxu0 0.0
  %187 = vmatpush.msra.mxu0 0.0
  %188 = vmatpush.msra.mxu0 0.0
  %189 = vmatpush.msra.mxu0 0.0
  %190 = vmatpush.msra.mxu0 0.0
  %191 = vmatpush.msra.mxu0 0.0
  %192 = vmatpush.msra.mxu0 0.0
  %193 = vmatpush.msra.mxu0 0.0
  %194 = vmatpush.msra.mxu0 0.0
  %195 = vmatpush.msra.mxu0 0.0
  %196 = vmatpush.msra.mxu0 %v12
  %197 = vmatmul.f32.gmra.mxu0 %v158
  %v198 = vpop.f32.mrf.mxu0
  %v199 = vadd.f32 0.0, %v198
  %200 = vmatmul.f32.gmra.mxu0 %v161
  %v201 = vpop.f32.mrf.mxu0
  %v202 = vadd.f32 0.0, %v201
  %203 = vmatmul.f32.gmra.mxu0 %v164
  %v204 = vpop.f32.mrf.mxu0
  %v205 = vadd.f32 0.0, %v204
  %206 = vmatmul.f32.gmra.mxu0 %v167
  %v207 = vpop.f32.mrf.mxu0
  %v208 = vadd.f32 0.0, %v207
  %209 = vmatmul.f32.gmra.mxu0 %v170
  %v210 = vpop.f32.mrf.mxu0
  %v211 = vadd.f32 0.0, %v210
  %212 = vmatmul.f32.gmra.mxu0 %v173
  %v213 = vpop.f32.mrf.mxu0
  %v214 = vadd.f32 0.0, %v213
  %215 = vmatmul.f32.gmra.mxu0 %v176
  %v216 = vpop.f32.mrf.mxu0
  %v217 = vadd.f32 0.0, %v216
  %218 = vmatmul.f32.gmra.mxu0 %v179
  %v219 = vpop.f32.mrf.mxu0
  %v220 = vadd.f32 0.0, %v219
  %221 = vdwg.mxu0
  %222 = vxpose.xlu0.b32.start [1/16] %v21, 128
  %223 = vxpose.xlu0.b32.cont [2/16] 0.0, 128
  %224 = vxpose.xlu0.b32.cont [3/16] 0.0, 128
  %225 = vxpose.xlu0.b32.cont [4/16] 0.0, 128
  %226 = vxpose.xlu0.b32.cont [5/16] 0.0, 128
  %227 = vxpose.xlu0.b32.cont [6/16] 0.0, 128
  %228 = vxpose.xlu0.b32.cont [7/16] 0.0, 128
  %229 = vxpose.xlu0.b32.cont [8/16] 0.0, 128
  %230 = vxpose.xlu0.b32.cont [9/16] 0.0, 128
  %231 = vxpose.xlu0.b32.cont [10/16] 0.0, 128
  %232 = vxpose.xlu0.b32.cont [11/16] 0.0, 128
  %233 = vxpose.xlu0.b32.cont [12/16] 0.0, 128
  %234 = vxpose.xlu0.b32.cont [13/16] 0.0, 128
  %235 = vxpose.xlu0.b32.cont [14/16] 0.0, 128
  %236 = vxpose.xlu0.b32.cont [15/16] 0.0, 128
  %237 = vxpose.xlu0.b32.end [16/16] 0.0, 128
  %v238 = vpop.trf.xlu0
  %v239 = vpop.trf.xlu0
  %v240 = vpop.trf.xlu0
  %v241 = vpop.trf.xlu0
  %v242 = vpop.trf.xlu0
  %v243 = vpop.trf.xlu0
  %v244 = vpop.trf.xlu0
  %v245 = vpop.trf.xlu0
  %v246 = vpop.trf.xlu0
  %v247 = vpop.trf.xlu0
  %v248 = vpop.trf.xlu0
  %v249 = vpop.trf.xlu0
  %v250 = vpop.trf.xlu0
  %v251 = vpop.trf.xlu0
  %v252 = vpop.trf.xlu0
  %v253 = vpop.trf.xlu0
  %v255 = vsel %vm59, %v238, 0
  %v258 = vsel %vm59, %v239, 0
  %v261 = vsel %vm59, %v240, 0
  %v264 = vsel %vm59, %v241, 0
  %v267 = vsel %vm59, %v242, 0
  %v270 = vsel %vm59, %v243, 0
  %v273 = vsel %vm59, %v244, 0
  %v276 = vsel %vm59, %v245, 0
  %278 = vmatpush.msra.mxu0 0.0
  %279 = vmatpush.msra.mxu0 0.0
  %280 = vmatpush.msra.mxu0 0.0
  %281 = vmatpush.msra.mxu0 0.0
  %282 = vmatpush.msra.mxu0 0.0
  %283 = vmatpush.msra.mxu0 0.0
  %284 = vmatpush.msra.mxu0 0.0
  %285 = vmatpush.msra.mxu0 0.0
  %286 = vmatpush.msra.mxu0 0.0
  %287 = vmatpush.msra.mxu0 0.0
  %288 = vmatpush.msra.mxu0 0.0
  %289 = vmatpush.msra.mxu0 0.0
  %290 = vmatpush.msra.mxu0 0.0
  %291 = vmatpush.msra.mxu0 0.0
  %292 = vmatpush.msra.mxu0 0.0
  %293 = vmatpush.msra.mxu0 %v13
  %294 = vmatmul.f32.gmra.mxu0 %v255
  %v295 = vpop.f32.mrf.mxu0
  %v296 = vadd.f32 0.0, %v295
  %297 = vmatmul.f32.gmra.mxu0 %v258
  %v298 = vpop.f32.mrf.mxu0
  %v299 = vadd.f32 0.0, %v298
  %300 = vmatmul.f32.gmra.mxu0 %v261
  %v301 = vpop.f32.mrf.mxu0
  %v302 = vadd.f32 0.0, %v301
  %303 = vmatmul.f32.gmra.mxu0 %v264
  %v304 = vpop.f32.mrf.mxu0
  %v305 = vadd.f32 0.0, %v304
  %306 = vmatmul.f32.gmra.mxu0 %v267
  %v307 = vpop.f32.mrf.mxu0
  %v308 = vadd.f32 0.0, %v307
  %309 = vmatmul.f32.gmra.mxu0 %v270
  %v310 = vpop.f32.mrf.mxu0
  %v311 = vadd.f32 0.0, %v310
  %312 = vmatmul.f32.gmra.mxu0 %v273
  %v313 = vpop.f32.mrf.mxu0
  %v314 = vadd.f32 0.0, %v313
  %315 = vmatmul.f32.gmra.mxu0 %v276
  %v316 = vpop.f32.mrf.mxu0
  %v317 = vadd.f32 0.0, %v316
  %318 = vdwg.mxu0
  %319 = vxpose.xlu0.b32.start [1/16] %v22, 128
  %320 = vxpose.xlu0.b32.cont [2/16] 0.0, 128
  %321 = vxpose.xlu0.b32.cont [3/16] 0.0, 128
  %322 = vxpose.xlu0.b32.cont [4/16] 0.0, 128
  %323 = vxpose.xlu0.b32.cont [5/16] 0.0, 128
  %324 = vxpose.xlu0.b32.cont [6/16] 0.0, 128
  %325 = vxpose.xlu0.b32.cont [7/16] 0.0, 128
  %326 = vxpose.xlu0.b32.cont [8/16] 0.0, 128
  %327 = vxpose.xlu0.b32.cont [9/16] 0.0, 128
  %328 = vxpose.xlu0.b32.cont [10/16] 0.0, 128
  %329 = vxpose.xlu0.b32.cont [11/16] 0.0, 128
  %330 = vxpose.xlu0.b32.cont [12/16] 0.0, 128
  %331 = vxpose.xlu0.b32.cont [13/16] 0.0, 128
  %332 = vxpose.xlu0.b32.cont [14/16] 0.0, 128
  %333 = vxpose.xlu0.b32.cont [15/16] 0.0, 128
  %334 = vxpose.xlu0.b32.end [16/16] 0.0, 128
  %v335 = vpop.trf.xlu0
  %v336 = vpop.trf.xlu0
  %v337 = vpop.trf.xlu0
  %v338 = vpop.trf.xlu0
  %v339 = vpop.trf.xlu0
  %v340 = vpop.trf.xlu0
  %v341 = vpop.trf.xlu0
  %v342 = vpop.trf.xlu0
  %v343 = vpop.trf.xlu0
  %v344 = vpop.trf.xlu0
  %v345 = vpop.trf.xlu0
  %v346 = vpop.trf.xlu0
  %v347 = vpop.trf.xlu0
  %v348 = vpop.trf.xlu0
  %v349 = vpop.trf.xlu0
  %v350 = vpop.trf.xlu0
  %v352 = vsel %vm59, %v335, 0
  %v355 = vsel %vm59, %v336, 0
  %v358 = vsel %vm59, %v337, 0
  %v361 = vsel %vm59, %v338, 0
  %v364 = vsel %vm59, %v339, 0
  %v367 = vsel %vm59, %v340, 0
  %v370 = vsel %vm59, %v341, 0
  %v373 = vsel %vm59, %v342, 0
  %375 = vmatpush.msra.mxu0 0.0
  %376 = vmatpush.msra.mxu0 0.0
  %377 = vmatpush.msra.mxu0 0.0
  %378 = vmatpush.msra.mxu0 0.0
  %379 = vmatpush.msra.mxu0 0.0
  %380 = vmatpush.msra.mxu0 0.0
  %381 = vmatpush.msra.mxu0 0.0
  %382 = vmatpush.msra.mxu0 0.0
  %383 = vmatpush.msra.mxu0 0.0
  %384 = vmatpush.msra.mxu0 0.0
  %385 = vmatpush.msra.mxu0 0.0
  %386 = vmatpush.msra.mxu0 0.0
  %387 = vmatpush.msra.mxu0 0.0
  %388 = vmatpush.msra.mxu0 0.0
  %389 = vmatpush.msra.mxu0 0.0
  %390 = vmatpush.msra.mxu0 %v14
  %391 = vmatmul.f32.gmra.mxu0 %v352
  %v392 = vpop.f32.mrf.mxu0
  %v393 = vadd.f32 0.0, %v392
  %394 = vmatmul.f32.gmra.mxu0 %v355
  %v395 = vpop.f32.mrf.mxu0
  %v396 = vadd.f32 0.0, %v395
  %397 = vmatmul.f32.gmra.mxu0 %v358
  %v398 = vpop.f32.mrf.mxu0
  %v399 = vadd.f32 0.0, %v398
  %400 = vmatmul.f32.gmra.mxu0 %v361
  %v401 = vpop.f32.mrf.mxu0
  %v402 = vadd.f32 0.0, %v401
  %403 = vmatmul.f32.gmra.mxu0 %v364
  %v404 = vpop.f32.mrf.mxu0
  %v405 = vadd.f32 0.0, %v404
  %406 = vmatmul.f32.gmra.mxu0 %v367
  %v407 = vpop.f32.mrf.mxu0
  %v408 = vadd.f32 0.0, %v407
  %409 = vmatmul.f32.gmra.mxu0 %v370
  %v410 = vpop.f32.mrf.mxu0
  %v411 = vadd.f32 0.0, %v410
  %412 = vmatmul.f32.gmra.mxu0 %v373
  %v413 = vpop.f32.mrf.mxu0
  %v414 = vadd.f32 0.0, %v413
  %415 = vdwg.mxu0
  %416 = vxpose.xlu0.b32.start [1/16] %v23, 128
  %417 = vxpose.xlu0.b32.cont [2/16] 0.0, 128
  %418 = vxpose.xlu0.b32.cont [3/16] 0.0, 128
  %419 = vxpose.xlu0.b32.cont [4/16] 0.0, 128
  %420 = vxpose.xlu0.b32.cont [5/16] 0.0, 128
  %421 = vxpose.xlu0.b32.cont [6/16] 0.0, 128
  %422 = vxpose.xlu0.b32.cont [7/16] 0.0, 128
  %423 = vxpose.xlu0.b32.cont [8/16] 0.0, 128
  %424 = vxpose.xlu0.b32.cont [9/16] 0.0, 128
  %425 = vxpose.xlu0.b32.cont [10/16] 0.0, 128
  %426 = vxpose.xlu0.b32.cont [11/16] 0.0, 128
  %427 = vxpose.xlu0.b32.cont [12/16] 0.0, 128
  %428 = vxpose.xlu0.b32.cont [13/16] 0.0, 128
  %429 = vxpose.xlu0.b32.cont [14/16] 0.0, 128
  %430 = vxpose.xlu0.b32.cont [15/16] 0.0, 128
  %431 = vxpose.xlu0.b32.end [16/16] 0.0, 128
  %v432 = vpop.trf.xlu0
  %v433 = vpop.trf.xlu0
  %v434 = vpop.trf.xlu0
  %v435 = vpop.trf.xlu0
  %v436 = vpop.trf.xlu0
  %v437 = vpop.trf.xlu0
  %v438 = vpop.trf.xlu0
  %v439 = vpop.trf.xlu0
  %v440 = vpop.trf.xlu0
  %v441 = vpop.trf.xlu0
  %v442 = vpop.trf.xlu0
  %v443 = vpop.trf.xlu0
  %v444 = vpop.trf.xlu0
  %v445 = vpop.trf.xlu0
  %v446 = vpop.trf.xlu0
  %v447 = vpop.trf.xlu0
  %v449 = vsel %vm59, %v432, 0
  %v452 = vsel %vm59, %v433, 0
  %v455 = vsel %vm59, %v434, 0
  %v458 = vsel %vm59, %v435, 0
  %v461 = vsel %vm59, %v436, 0
  %v464 = vsel %vm59, %v437, 0
  %v467 = vsel %vm59, %v438, 0
  %v470 = vsel %vm59, %v439, 0
  %472 = vmatpush.msra.mxu0 0.0
  %473 = vmatpush.msra.mxu0 0.0
  %474 = vmatpush.msra.mxu0 0.0
  %475 = vmatpush.msra.mxu0 0.0
  %476 = vmatpush.msra.mxu0 0.0
  %477 = vmatpush.msra.mxu0 0.0
  %478 = vmatpush.msra.mxu0 0.0
  %479 = vmatpush.msra.mxu0 0.0
  %480 = vmatpush.msra.mxu0 0.0
  %481 = vmatpush.msra.mxu0 0.0
  %482 = vmatpush.msra.mxu0 0.0
  %483 = vmatpush.msra.mxu0 0.0
  %484 = vmatpush.msra.mxu0 0.0
  %485 = vmatpush.msra.mxu0 0.0
  %486 = vmatpush.msra.mxu0 0.0
  %487 = vmatpush.msra.mxu0 %v15
  %488 = vmatmul.f32.gmra.mxu0 %v449
  %v489 = vpop.f32.mrf.mxu0
  %v490 = vadd.f32 0.0, %v489
  %491 = vmatmul.f32.gmra.mxu0 %v452
  %v492 = vpop.f32.mrf.mxu0
  %v493 = vadd.f32 0.0, %v492
  %494 = vmatmul.f32.gmra.mxu0 %v455
  %v495 = vpop.f32.mrf.mxu0
  %v496 = vadd.f32 0.0, %v495
  %497 = vmatmul.f32.gmra.mxu0 %v458
  %v498 = vpop.f32.mrf.mxu0
  %v499 = vadd.f32 0.0, %v498
  %500 = vmatmul.f32.gmra.mxu0 %v461
  %v501 = vpop.f32.mrf.mxu0
  %v502 = vadd.f32 0.0, %v501
  %503 = vmatmul.f32.gmra.mxu0 %v464
  %v504 = vpop.f32.mrf.mxu0
  %v505 = vadd.f32 0.0, %v504
  %506 = vmatmul.f32.gmra.mxu0 %v467
  %v507 = vpop.f32.mrf.mxu0
  %v508 = vadd.f32 0.0, %v507
  %509 = vmatmul.f32.gmra.mxu0 %v470
  %v510 = vpop.f32.mrf.mxu0
  %v511 = vadd.f32 0.0, %v510
  %512 = vdwg.mxu0
  %513 = vxpose.xlu0.b32.start [1/16] %v24, 128
  %514 = vxpose.xlu0.b32.cont [2/16] 0.0, 128
  %515 = vxpose.xlu0.b32.cont [3/16] 0.0, 128
  %516 = vxpose.xlu0.b32.cont [4/16] 0.0, 128
  %517 = vxpose.xlu0.b32.cont [5/16] 0.0, 128
  %518 = vxpose.xlu0.b32.cont [6/16] 0.0, 128
  %519 = vxpose.xlu0.b32.cont [7/16] 0.0, 128
  %520 = vxpose.xlu0.b32.cont [8/16] 0.0, 128
  %521 = vxpose.xlu0.b32.cont [9/16] 0.0, 128
  %522 = vxpose.xlu0.b32.cont [10/16] 0.0, 128
  %523 = vxpose.xlu0.b32.cont [11/16] 0.0, 128
  %524 = vxpose.xlu0.b32.cont [12/16] 0.0, 128
  %525 = vxpose.xlu0.b32.cont [13/16] 0.0, 128
  %526 = vxpose.xlu0.b32.cont [14/16] 0.0, 128
  %527 = vxpose.xlu0.b32.cont [15/16] 0.0, 128
  %528 = vxpose.xlu0.b32.end [16/16] 0.0, 128
  %v529 = vpop.trf.xlu0
  %v530 = vpop.trf.xlu0
  %v531 = vpop.trf.xlu0
  %v532 = vpop.trf.xlu0
  %v533 = vpop.trf.xlu0
  %v534 = vpop.trf.xlu0
  %v535 = vpop.trf.xlu0
  %v536 = vpop.trf.xlu0
  %v537 = vpop.trf.xlu0
  %v538 = vpop.trf.xlu0
  %v539 = vpop.trf.xlu0
  %v540 = vpop.trf.xlu0
  %v541 = vpop.trf.xlu0
  %v542 = vpop.trf.xlu0
  %v543 = vpop.trf.xlu0
  %v544 = vpop.trf.xlu0
  %v546 = vsel %vm59, %v529, 0
  %v549 = vsel %vm59, %v530, 0
  %v552 = vsel %vm59, %v531, 0
  %v555 = vsel %vm59, %v532, 0
  %v558 = vsel %vm59, %v533, 0
  %v561 = vsel %vm59, %v534, 0
  %v564 = vsel %vm59, %v535, 0
  %v567 = vsel %vm59, %v536, 0
  %569 = vmatpush.msra.mxu0 0.0
  %570 = vmatpush.msra.mxu0 0.0
  %571 = vmatpush.msra.mxu0 0.0
  %572 = vmatpush.msra.mxu0 0.0
  %573 = vmatpush.msra.mxu0 0.0
  %574 = vmatpush.msra.mxu0 0.0
  %575 = vmatpush.msra.mxu0 0.0
  %576 = vmatpush.msra.mxu0 0.0
  %577 = vmatpush.msra.mxu0 0.0
  %578 = vmatpush.msra.mxu0 0.0
  %579 = vmatpush.msra.mxu0 0.0
  %580 = vmatpush.msra.mxu0 0.0
  %581 = vmatpush.msra.mxu0 0.0
  %582 = vmatpush.msra.mxu0 0.0
  %583 = vmatpush.msra.mxu0 0.0
  %584 = vmatpush.msra.mxu0 %v16
  %585 = vmatmul.f32.gmra.mxu0 %v546
  %v586 = vpop.f32.mrf.mxu0
  %v587 = vadd.f32 0.0, %v586
  %588 = vmatmul.f32.gmra.mxu0 %v549
  %v589 = vpop.f32.mrf.mxu0
  %v590 = vadd.f32 0.0, %v589
  %591 = vmatmul.f32.gmra.mxu0 %v552
  %v592 = vpop.f32.mrf.mxu0
  %v593 = vadd.f32 0.0, %v592
  %594 = vmatmul.f32.gmra.mxu0 %v555
  %v595 = vpop.f32.mrf.mxu0
  %v596 = vadd.f32 0.0, %v595
  %597 = vmatmul.f32.gmra.mxu0 %v558
  %v598 = vpop.f32.mrf.mxu0
  %v599 = vadd.f32 0.0, %v598
  %600 = vmatmul.f32.gmra.mxu0 %v561
  %v601 = vpop.f32.mrf.mxu0
  %v602 = vadd.f32 0.0, %v601
  %603 = vmatmul.f32.gmra.mxu0 %v564
  %v604 = vpop.f32.mrf.mxu0
  %v605 = vadd.f32 0.0, %v604
  %606 = vmatmul.f32.gmra.mxu0 %v567
  %v607 = vpop.f32.mrf.mxu0
  %v608 = vadd.f32 0.0, %v607
  %609 = vdwg.mxu0
  %610 = vxpose.xlu0.b32.start [1/16] %v25, 128
  %611 = vxpose.xlu0.b32.cont [2/16] 0.0, 128
  %612 = vxpose.xlu0.b32.cont [3/16] 0.0, 128
  %613 = vxpose.xlu0.b32.cont [4/16] 0.0, 128
  %614 = vxpose.xlu0.b32.cont [5/16] 0.0, 128
  %615 = vxpose.xlu0.b32.cont [6/16] 0.0, 128
  %616 = vxpose.xlu0.b32.cont [7/16] 0.0, 128
  %617 = vxpose.xlu0.b32.cont [8/16] 0.0, 128
  %618 = vxpose.xlu0.b32.cont [9/16] 0.0, 128
  %619 = vxpose.xlu0.b32.cont [10/16] 0.0, 128
  %620 = vxpose.xlu0.b32.cont [11/16] 0.0, 128
  %621 = vxpose.xlu0.b32.cont [12/16] 0.0, 128
  %622 = vxpose.xlu0.b32.cont [13/16] 0.0, 128
  %623 = vxpose.xlu0.b32.cont [14/16] 0.0, 128
  %624 = vxpose.xlu0.b32.cont [15/16] 0.0, 128
  %625 = vxpose.xlu0.b32.end [16/16] 0.0, 128
  %v626 = vpop.trf.xlu0
  %v627 = vpop.trf.xlu0
  %v628 = vpop.trf.xlu0
  %v629 = vpop.trf.xlu0
  %v630 = vpop.trf.xlu0
  %v631 = vpop.trf.xlu0
  %v632 = vpop.trf.xlu0
  %v633 = vpop.trf.xlu0
  %v634 = vpop.trf.xlu0
  %v635 = vpop.trf.xlu0
  %v636 = vpop.trf.xlu0
  %v637 = vpop.trf.xlu0
  %v638 = vpop.trf.xlu0
  %v639 = vpop.trf.xlu0
  %v640 = vpop.trf.xlu0
  %v641 = vpop.trf.xlu0
  %v643 = vsel %vm59, %v626, 0
  %v646 = vsel %vm59, %v627, 0
  %v649 = vsel %vm59, %v628, 0
  %v652 = vsel %vm59, %v629, 0
  %v655 = vsel %vm59, %v630, 0
  %v658 = vsel %vm59, %v631, 0
  %v661 = vsel %vm59, %v632, 0
  %v664 = vsel %vm59, %v633, 0
  %666 = vmatpush.msra.mxu0 0.0
  %667 = vmatpush.msra.mxu0 0.0
  %668 = vmatpush.msra.mxu0 0.0
  %669 = vmatpush.msra.mxu0 0.0
  %670 = vmatpush.msra.mxu0 0.0
  %671 = vmatpush.msra.mxu0 0.0
  %672 = vmatpush.msra.mxu0 0.0
  %673 = vmatpush.msra.mxu0 0.0
  %674 = vmatpush.msra.mxu0 0.0
  %675 = vmatpush.msra.mxu0 0.0
  %676 = vmatpush.msra.mxu0 0.0
  %677 = vmatpush.msra.mxu0 0.0
  %678 = vmatpush.msra.mxu0 0.0
  %679 = vmatpush.msra.mxu0 0.0
  %680 = vmatpush.msra.mxu0 0.0
  %681 = vmatpush.msra.mxu0 %v17
  %682 = vmatmul.f32.gmra.mxu0 %v643
  %v683 = vpop.f32.mrf.mxu0
  %v684 = vadd.f32 0.0, %v683
  %685 = vmatmul.f32.gmra.mxu0 %v646
  %v686 = vpop.f32.mrf.mxu0
  %v687 = vadd.f32 0.0, %v686
  %688 = vmatmul.f32.gmra.mxu0 %v649
  %v689 = vpop.f32.mrf.mxu0
  %v690 = vadd.f32 0.0, %v689
  %691 = vmatmul.f32.gmra.mxu0 %v652
  %v692 = vpop.f32.mrf.mxu0
  %v693 = vadd.f32 0.0, %v692
  %694 = vmatmul.f32.gmra.mxu0 %v655
  %v695 = vpop.f32.mrf.mxu0
  %v696 = vadd.f32 0.0, %v695
  %697 = vmatmul.f32.gmra.mxu0 %v658
  %v698 = vpop.f32.mrf.mxu0
  %v699 = vadd.f32 0.0, %v698
  %700 = vmatmul.f32.gmra.mxu0 %v661
  %v701 = vpop.f32.mrf.mxu0
  %v702 = vadd.f32 0.0, %v701
  %703 = vmatmul.f32.gmra.mxu0 %v664
  %v704 = vpop.f32.mrf.mxu0
  %v705 = vadd.f32 0.0, %v704
  %706 = vdwg.mxu0
  %707 = vxpose.xlu0.b32.start [1/16] %v26, 128
  %708 = vxpose.xlu0.b32.cont [2/16] 0.0, 128
  %709 = vxpose.xlu0.b32.cont [3/16] 0.0, 128
  %710 = vxpose.xlu0.b32.cont [4/16] 0.0, 128
  %711 = vxpose.xlu0.b32.cont [5/16] 0.0, 128
  %712 = vxpose.xlu0.b32.cont [6/16] 0.0, 128
  %713 = vxpose.xlu0.b32.cont [7/16] 0.0, 128
  %714 = vxpose.xlu0.b32.cont [8/16] 0.0, 128
  %715 = vxpose.xlu0.b32.cont [9/16] 0.0, 128
  %716 = vxpose.xlu0.b32.cont [10/16] 0.0, 128
  %717 = vxpose.xlu0.b32.cont [11/16] 0.0, 128
  %718 = vxpose.xlu0.b32.cont [12/16] 0.0, 128
  %719 = vxpose.xlu0.b32.cont [13/16] 0.0, 128
  %720 = vxpose.xlu0.b32.cont [14/16] 0.0, 128
  %721 = vxpose.xlu0.b32.cont [15/16] 0.0, 128
  %722 = vxpose.xlu0.b32.end [16/16] 0.0, 128
  %v723 = vpop.trf.xlu0
  %v724 = vpop.trf.xlu0
  %v725 = vpop.trf.xlu0
  %v726 = vpop.trf.xlu0
  %v727 = vpop.trf.xlu0
  %v728 = vpop.trf.xlu0
  %v729 = vpop.trf.xlu0
  %v730 = vpop.trf.xlu0
  %v731 = vpop.trf.xlu0
  %v732 = vpop.trf.xlu0
  %v733 = vpop.trf.xlu0
  %v734 = vpop.trf.xlu0
  %v735 = vpop.trf.xlu0
  %v736 = vpop.trf.xlu0
  %v737 = vpop.trf.xlu0
  %v738 = vpop.trf.xlu0
  %v740 = vsel %vm59, %v723, 0
  %v743 = vsel %vm59, %v724, 0
  %v746 = vsel %vm59, %v725, 0
  %v749 = vsel %vm59, %v726, 0
  %v752 = vsel %vm59, %v727, 0
  %v755 = vsel %vm59, %v728, 0
  %v758 = vsel %vm59, %v729, 0
  %v761 = vsel %vm59, %v730, 0
  %763 = vmatpush.msra.mxu0 0.0
  %764 = vmatpush.msra.mxu0 0.0
  %765 = vmatpush.msra.mxu0 0.0
  %766 = vmatpush.msra.mxu0 0.0
  %767 = vmatpush.msra.mxu0 0.0
  %768 = vmatpush.msra.mxu0 0.0
  %769 = vmatpush.msra.mxu0 0.0
  %770 = vmatpush.msra.mxu0 0.0
  %771 = vmatpush.msra.mxu0 0.0
  %772 = vmatpush.msra.mxu0 0.0
  %773 = vmatpush.msra.mxu0 0.0
  %774 = vmatpush.msra.mxu0 0.0
  %775 = vmatpush.msra.mxu0 0.0
  %776 = vmatpush.msra.mxu0 0.0
  %777 = vmatpush.msra.mxu0 0.0
  %778 = vmatpush.msra.mxu0 %v18
  %779 = vmatmul.f32.gmra.mxu0 %v740
  %v780 = vpop.f32.mrf.mxu0
  %v781 = vadd.f32 0.0, %v780
  %782 = vmatmul.f32.gmra.mxu0 %v743
  %v783 = vpop.f32.mrf.mxu0
  %v784 = vadd.f32 0.0, %v783
  %785 = vmatmul.f32.gmra.mxu0 %v746
  %v786 = vpop.f32.mrf.mxu0
  %v787 = vadd.f32 0.0, %v786
  %788 = vmatmul.f32.gmra.mxu0 %v749
  %v789 = vpop.f32.mrf.mxu0
  %v790 = vadd.f32 0.0, %v789
  %791 = vmatmul.f32.gmra.mxu0 %v752
  %v792 = vpop.f32.mrf.mxu0
  %v793 = vadd.f32 0.0, %v792
  %794 = vmatmul.f32.gmra.mxu0 %v755
  %v795 = vpop.f32.mrf.mxu0
  %v796 = vadd.f32 0.0, %v795
  %797 = vmatmul.f32.gmra.mxu0 %v758
  %v798 = vpop.f32.mrf.mxu0
  %v799 = vadd.f32 0.0, %v798
  %800 = vmatmul.f32.gmra.mxu0 %v761
  %v801 = vpop.f32.mrf.mxu0
  %v802 = vadd.f32 0.0, %v801
  %803 = vdwg.mxu0
  %804 = vxpose.xlu0.b32.start [1/16] %v19, 128
  %805 = vxpose.xlu0.b32.cont [2/16] %v20, 128
  %806 = vxpose.xlu0.b32.cont [3/16] %v21, 128
  %807 = vxpose.xlu0.b32.cont [4/16] %v22, 128
  %808 = vxpose.xlu0.b32.cont [5/16] %v23, 128
  %809 = vxpose.xlu0.b32.cont [6/16] %v24, 128
  %810 = vxpose.xlu0.b32.cont [7/16] %v25, 128
  %811 = vxpose.xlu0.b32.cont [8/16] %v26, 128
  %812 = vxpose.xlu0.b32.cont [9/16] 0.0, 128
  %813 = vxpose.xlu0.b32.cont [10/16] 0.0, 128
  %814 = vxpose.xlu0.b32.cont [11/16] 0.0, 128
  %815 = vxpose.xlu0.b32.cont [12/16] 0.0, 128
  %816 = vxpose.xlu0.b32.cont [13/16] 0.0, 128
  %817 = vxpose.xlu0.b32.cont [14/16] 0.0, 128
  %818 = vxpose.xlu0.b32.cont [15/16] 0.0, 128
  %819 = vxpose.xlu0.b32.end [16/16] 0.0, 128
  %v820 = vpop.trf.xlu0
  %v821 = vpop.trf.xlu0
  %v822 = vpop.trf.xlu0
  %v823 = vpop.trf.xlu0
  %v824 = vpop.trf.xlu0
  %v825 = vpop.trf.xlu0
  %v826 = vpop.trf.xlu0
  %v827 = vpop.trf.xlu0
  %v828 = vpop.trf.xlu0
  %v829 = vpop.trf.xlu0
  %v830 = vpop.trf.xlu0
  %v831 = vpop.trf.xlu0
  %v832 = vpop.trf.xlu0
  %v833 = vpop.trf.xlu0
  %v834 = vpop.trf.xlu0
  %v835 = vpop.trf.xlu0
  %vm836 = vcmask 523264
  %v838 = vsel %vm836, %v820, 0
  %v841 = vsel %vm836, %v821, 0
  %v844 = vsel %vm836, %v822, 0
  %v847 = vsel %vm836, %v823, 0
  %v850 = vsel %vm836, %v824, 0
  %v853 = vsel %vm836, %v825, 0
  %v856 = vsel %vm836, %v826, 0
  %v859 = vsel %vm836, %v827, 0
  %861 = vmatpush.msra.mxu0 0.0
  %862 = vmatpush.msra.mxu0 0.0
  %863 = vmatpush.msra.mxu0 0.0
  %864 = vmatpush.msra.mxu0 0.0
  %865 = vmatpush.msra.mxu0 0.0
  %866 = vmatpush.msra.mxu0 0.0
  %867 = vmatpush.msra.mxu0 0.0
  %868 = vmatpush.msra.mxu0 0.0
  %869 = vmatpush.msra.mxu0 %v18
  %870 = vmatpush.msra.mxu0 %v17
  %871 = vmatpush.msra.mxu0 %v16
  %872 = vmatpush.msra.mxu0 %v15
  %873 = vmatpush.msra.mxu0 %v14
  %874 = vmatpush.msra.mxu0 %v13
  %875 = vmatpush.msra.mxu0 %v12
  %876 = vmatpush.msra.mxu0 %v11
  %877 = vmatmul.f32.gmra.mxu0 %v838
  %v878 = vpop.f32.mrf.mxu0
  %v879 = vadd.f32 0.0, %v878
  %880 = vmatmul.f32.gmra.mxu0 %v841
  %v881 = vpop.f32.mrf.mxu0
  %v882 = vadd.f32 0.0, %v881
  %883 = vmatmul.f32.gmra.mxu0 %v844
  %v884 = vpop.f32.mrf.mxu0
  %v885 = vadd.f32 0.0, %v884
  %886 = vmatmul.f32.gmra.mxu0 %v847
  %v887 = vpop.f32.mrf.mxu0
  %v888 = vadd.f32 0.0, %v887
  %889 = vmatmul.f32.gmra.mxu0 %v850
  %v890 = vpop.f32.mrf.mxu0
  %v891 = vadd.f32 0.0, %v890
  %892 = vmatmul.f32.gmra.mxu0 %v853
  %v893 = vpop.f32.mrf.mxu0
  %v894 = vadd.f32 0.0, %v893
  %895 = vmatmul.f32.gmra.mxu0 %v856
  %v896 = vpop.f32.mrf.mxu0
  %v897 = vadd.f32 0.0, %v896
  %898 = vmatmul.f32.gmra.mxu0 %v859
  %v899 = vpop.f32.mrf.mxu0
  %v900 = vadd.f32 0.0, %v899
  %901 = vdwg.mxu0
  %v902 = vmul.f32 %v879, 0.25
  %v903 = vmul.f32 %v882, 0.25
  %v904 = vmul.f32 %v885, 0.25
  %v905 = vmul.f32 %v888, 0.25
  %v906 = vmul.f32 %v891, 0.25
  %v907 = vmul.f32 %v894, 0.25
  %v908 = vmul.f32 %v897, 0.25
  %v909 = vmul.f32 %v900, 0.25
  %v910 = vmul.f32 %v902, %v902
  %v911 = vmul.f32 %v903, %v903
  %v912 = vmul.f32 %v904, %v904
  %v913 = vmul.f32 %v905, %v905
  %v914 = vmul.f32 %v906, %v906
  %v915 = vmul.f32 %v907, %v907
  %v916 = vmul.f32 %v908, %v908
  %v917 = vmul.f32 %v909, %v909
  %vm918 = vcmask 15360
  %v919 = vsel %vm918, %v910, 0.0
  %v920 = vsel %vm918, %v911, 0.0
  %v921 = vadd.f32 %v919, %v920
  %v922 = vrot.slane %v921, 4
  %v923 = vadd.f32 %v921, %v922
  %v924 = vrot.slane %v923, 2
  %v925 = vadd.f32 %v923, %v924
  %v926 = vrot.slane %v925, 1
  %v927 = vadd.f32 %v925, %v926
  %v928 = vsel %vm918, %v912, 0.0
  %v929 = vsel %vm918, %v913, 0.0
  %v930 = vadd.f32 %v928, %v929
  %v931 = vrot.slane %v930, 4
  %v932 = vadd.f32 %v930, %v931
  %v933 = vrot.slane %v932, 2
  %v934 = vadd.f32 %v932, %v933
  %v935 = vrot.slane %v934, 1
  %v936 = vadd.f32 %v934, %v935
  %v937 = vsel %vm918, %v914, 0.0
  %v938 = vsel %vm918, %v915, 0.0
  %v939 = vadd.f32 %v937, %v938
  %v940 = vrot.slane %v939, 4
  %v941 = vadd.f32 %v939, %v940
  %v942 = vrot.slane %v941, 2
  %v943 = vadd.f32 %v941, %v942
  %v944 = vrot.slane %v943, 1
  %v945 = vadd.f32 %v943, %v944
  %v946 = vsel %vm918, %v916, 0.0
  %v947 = vsel %vm918, %v917, 0.0
  %v948 = vadd.f32 %v946, %v947
  %v949 = vrot.slane %v948, 4
  %v950 = vadd.f32 %v948, %v949
  %v951 = vrot.slane %v950, 2
  %v952 = vadd.f32 %v950, %v951
  %v953 = vrot.slane %v952, 1
  %v954 = vadd.f32 %v952, %v953
  %v955 = vadd.f32 %v927, 1.0
  %v956 = vadd.f32 %v936, 1.0
  %v957 = vadd.f32 %v945, 1.0
  %v958 = vadd.f32 %v954, 1.0
  %v959 = vrcp.pop %v955
  %v960 = vmul.f32 %v955, %v959
  %v961 = vsub.f32 1.0, %v960
  %v962 = vmul.f32 %v959, %v961
  %v963 = vadd.f32 %v959, %v962
  %vm964 = vweird.f32 %v955
  %vm965 = vweird.f32 %v959
  %vm966 = vmor %vm964, %vm965
  %v967 = vsel %vm966, %v959, %v963
  %v968 = vand.u32 2147483647, %v955
  %vm969 = vcmp.eq.f32.partialorder %v968, 8.507059e+37
  %v970 = vand.u32 %v955, 2147483648
  %v971 = vor.u32 1.1754944e-38, %v970
  %v972 = vsel %vm969, %v971, %v967
  %v973 = vmul.f32 %v927, %v972
  %v974 = vrcp.pop %v956
  %v975 = vmul.f32 %v956, %v974
  %v976 = vsub.f32 1.0, %v975
  %v977 = vmul.f32 %v974, %v976
  %v978 = vadd.f32 %v974, %v977
  %vm979 = vweird.f32 %v956
  %vm980 = vweird.f32 %v974
  %vm981 = vmor %vm979, %vm980
  %v982 = vsel %vm981, %v974, %v978
  %v983 = vand.u32 2147483647, %v956
  %vm984 = vcmp.eq.f32.partialorder %v983, 8.507059e+37
  %v985 = vand.u32 %v956, 2147483648
  %v986 = vor.u32 1.1754944e-38, %v985
  %v987 = vsel %vm984, %v986, %v982
  %v988 = vmul.f32 %v936, %v987
  %v989 = vrcp.pop %v957
  %v990 = vmul.f32 %v957, %v989
  %v991 = vsub.f32 1.0, %v990
  %v992 = vmul.f32 %v989, %v991
  %v993 = vadd.f32 %v989, %v992
  %vm994 = vweird.f32 %v957
  %vm995 = vweird.f32 %v989
  %vm996 = vmor %vm994, %vm995
  %v997 = vsel %vm996, %v989, %v993
  %v998 = vand.u32 2147483647, %v957
  %vm999 = vcmp.eq.f32.partialorder %v998, 8.507059e+37
  %v1000 = vand.u32 %v957, 2147483648
  %v1001 = vor.u32 1.1754944e-38, %v1000
  %v1002 = vsel %vm999, %v1001, %v997
  %v1003 = vmul.f32 %v945, %v1002
  %v1004 = vrcp.pop %v958
  %v1005 = vmul.f32 %v958, %v1004
  %v1006 = vsub.f32 1.0, %v1005
  %v1007 = vmul.f32 %v1004, %v1006
  %v1008 = vadd.f32 %v1004, %v1007
  %vm1009 = vweird.f32 %v958
  %vm1010 = vweird.f32 %v1004
  %vm1011 = vmor %vm1009, %vm1010
  %v1012 = vsel %vm1011, %v1004, %v1008
  %v1013 = vand.u32 2147483647, %v958
  %vm1014 = vcmp.eq.f32.partialorder %v1013, 8.507059e+37
  %v1015 = vand.u32 %v958, 2147483648
  %v1016 = vor.u32 1.1754944e-38, %v1015
  %v1017 = vsel %vm1014, %v1016, %v1012
  %v1018 = vmul.f32 %v954, %v1017
  %v1019 = vmul.f32 %v973, %v902
  %v1020 = vmul.f32 %v973, %v903
  %v1021 = vmul.f32 %v988, %v904
  %v1022 = vmul.f32 %v988, %v905
  %v1023 = vmul.f32 %v1003, %v906
  %v1024 = vmul.f32 %v1003, %v907
  %v1025 = vmul.f32 %v1018, %v908
  %v1026 = vmul.f32 %v1018, %v909
  %v1027 = vrsqrt.pop %v927
  %v1028 = vmul.f32 %v1027, %v927
  %v1029 = vmul.f32 %v1028, %v1027
  %v1030 = vmul.f32 0.5, %v1029
  %v1031 = vsub.f32 1.5, %v1030
  %v1032 = vmul.f32 %v1027, %v1031
  %v1033 = vmul.f32 %v927, %v1032
  %vm1034 = vcmp.eq.f32.partialorder %v927, inf
  %v1035 = vsel %vm1034, %v927, %v1033
  %vm1036 = vcmp.eq.f32.partialorder %v927, 0.0
  %v1037 = vand.u32 %v927, 2147483648
  %v1038 = vsel %vm1036, %v1037, %v1035
  %v1039 = vrsqrt.pop %v936
  %v1040 = vmul.f32 %v1039, %v936
  %v1041 = vmul.f32 %v1040, %v1039
  %v1042 = vmul.f32 0.5, %v1041
  %v1043 = vsub.f32 1.5, %v1042
  %v1044 = vmul.f32 %v1039, %v1043
  %v1045 = vmul.f32 %v936, %v1044
  %vm1046 = vcmp.eq.f32.partialorder %v936, inf
  %v1047 = vsel %vm1046, %v936, %v1045
  %vm1048 = vcmp.eq.f32.partialorder %v936, 0.0
  %v1049 = vand.u32 %v936, 2147483648
  %v1050 = vsel %vm1048, %v1049, %v1047
  %v1051 = vrsqrt.pop %v945
  %v1052 = vmul.f32 %v1051, %v945
  %v1053 = vmul.f32 %v1052, %v1051
  %v1054 = vmul.f32 0.5, %v1053
  %v1055 = vsub.f32 1.5, %v1054
  %v1056 = vmul.f32 %v1051, %v1055
  %v1057 = vmul.f32 %v945, %v1056
  %vm1058 = vcmp.eq.f32.partialorder %v945, inf
  %v1059 = vsel %vm1058, %v945, %v1057
  %vm1060 = vcmp.eq.f32.partialorder %v945, 0.0
  %v1061 = vand.u32 %v945, 2147483648
  %v1062 = vsel %vm1060, %v1061, %v1059
  %v1063 = vrsqrt.pop %v954
  %v1064 = vmul.f32 %v1063, %v954
  %v1065 = vmul.f32 %v1064, %v1063
  %v1066 = vmul.f32 0.5, %v1065
  %v1067 = vsub.f32 1.5, %v1066
  %v1068 = vmul.f32 %v1063, %v1067
  %v1069 = vmul.f32 %v954, %v1068
  %vm1070 = vcmp.eq.f32.partialorder %v954, inf
  %v1071 = vsel %vm1070, %v954, %v1069
  %vm1072 = vcmp.eq.f32.partialorder %v954, 0.0
  %v1073 = vand.u32 %v954, 2147483648
  %v1074 = vsel %vm1072, %v1073, %v1071
  %v1075 = vadd.f32 %v1038, 1e-08
  %v1076 = vadd.f32 %v1050, 1e-08
  %v1077 = vadd.f32 %v1062, 1e-08
  %v1078 = vadd.f32 %v1074, 1e-08
  %v1079 = vrcp.pop %v1075
  %v1080 = vmul.f32 %v1075, %v1079
  %v1081 = vsub.f32 1.0, %v1080
  %v1082 = vmul.f32 %v1079, %v1081
  %v1083 = vadd.f32 %v1079, %v1082
  %vm1084 = vweird.f32 %v1075
  %vm1085 = vweird.f32 %v1079
  %vm1086 = vmor %vm1084, %vm1085
  %v1087 = vsel %vm1086, %v1079, %v1083
  %v1088 = vand.u32 2147483647, %v1075
  %vm1089 = vcmp.eq.f32.partialorder %v1088, 8.507059e+37
  %v1090 = vand.u32 %v1075, 2147483648
  %v1091 = vor.u32 1.1754944e-38, %v1090
  %v1092 = vsel %vm1089, %v1091, %v1087
  %v1093 = vmul.f32 %v1019, %v1092
  %v1094 = vmul.f32 %v1020, %v1092
  %v1095 = vrcp.pop %v1076
  %v1096 = vmul.f32 %v1076, %v1095
  %v1097 = vsub.f32 1.0, %v1096
  %v1098 = vmul.f32 %v1095, %v1097
  %v1099 = vadd.f32 %v1095, %v1098
  %vm1100 = vweird.f32 %v1076
  %vm1101 = vweird.f32 %v1095
  %vm1102 = vmor %vm1100, %vm1101
  %v1103 = vsel %vm1102, %v1095, %v1099
  %v1104 = vand.u32 2147483647, %v1076
  %vm1105 = vcmp.eq.f32.partialorder %v1104, 8.507059e+37
  %v1106 = vand.u32 %v1076, 2147483648
  %v1107 = vor.u32 1.1754944e-38, %v1106
  %v1108 = vsel %vm1105, %v1107, %v1103
  %v1109 = vmul.f32 %v1021, %v1108
  %v1110 = vmul.f32 %v1022, %v1108
  %v1111 = vrcp.pop %v1077
  %v1112 = vmul.f32 %v1077, %v1111
  %v1113 = vsub.f32 1.0, %v1112
  %v1114 = vmul.f32 %v1111, %v1113
  %v1115 = vadd.f32 %v1111, %v1114
  %vm1116 = vweird.f32 %v1077
  %vm1117 = vweird.f32 %v1111
  %vm1118 = vmor %vm1116, %vm1117
  %v1119 = vsel %vm1118, %v1111, %v1115
  %v1120 = vand.u32 2147483647, %v1077
  %vm1121 = vcmp.eq.f32.partialorder %v1120, 8.507059e+37
  %v1122 = vand.u32 %v1077, 2147483648
  %v1123 = vor.u32 1.1754944e-38, %v1122
  %v1124 = vsel %vm1121, %v1123, %v1119
  %v1125 = vmul.f32 %v1023, %v1124
  %v1126 = vmul.f32 %v1024, %v1124
  %v1127 = vrcp.pop %v1078
  %v1128 = vmul.f32 %v1078, %v1127
  %v1129 = vsub.f32 1.0, %v1128
  %v1130 = vmul.f32 %v1127, %v1129
  %v1131 = vadd.f32 %v1127, %v1130
  %vm1132 = vweird.f32 %v1078
  %vm1133 = vweird.f32 %v1127
  %vm1134 = vmor %vm1132, %vm1133
  %v1135 = vsel %vm1134, %v1127, %v1131
  %v1136 = vand.u32 2147483647, %v1078
  %vm1137 = vcmp.eq.f32.partialorder %v1136, 8.507059e+37
  %v1138 = vand.u32 %v1078, 2147483648
  %v1139 = vor.u32 1.1754944e-38, %v1138
  %v1140 = vsel %vm1137, %v1139, %v1135
  %v1141 = vmul.f32 %v1025, %v1140
  %v1142 = vmul.f32 %v1026, %v1140
  %v1143 = vmul.f32 %v102, %v1093
  %v1144 = vmul.f32 %v105, %v1094
  %v1145 = vmul.f32 %v108, %v1109
  %v1146 = vmul.f32 %v111, %v1110
  %v1147 = vmul.f32 %v114, %v1125
  %v1148 = vmul.f32 %v117, %v1126
  %v1149 = vmul.f32 %v120, %v1141
  %v1150 = vmul.f32 %v123, %v1142
  %v1151 = vmul.f32 %v199, %v1093
  %v1152 = vmul.f32 %v202, %v1094
  %v1153 = vmul.f32 %v205, %v1109
  %v1154 = vmul.f32 %v208, %v1110
  %v1155 = vmul.f32 %v211, %v1125
  %v1156 = vmul.f32 %v214, %v1126
  %v1157 = vmul.f32 %v217, %v1141
  %v1158 = vmul.f32 %v220, %v1142
  %v1159 = vmul.f32 %v296, %v1093
  %v1160 = vmul.f32 %v299, %v1094
  %v1161 = vmul.f32 %v302, %v1109
  %v1162 = vmul.f32 %v305, %v1110
  %v1163 = vmul.f32 %v308, %v1125
  %v1164 = vmul.f32 %v311, %v1126
  %v1165 = vmul.f32 %v314, %v1141
  %v1166 = vmul.f32 %v317, %v1142
  %v1167 = vmul.f32 %v393, %v1093
  %v1168 = vmul.f32 %v396, %v1094
  %v1169 = vmul.f32 %v399, %v1109
  %v1170 = vmul.f32 %v402, %v1110
  %v1171 = vmul.f32 %v405, %v1125
  %v1172 = vmul.f32 %v408, %v1126
  %v1173 = vmul.f32 %v411, %v1141
  %v1174 = vmul.f32 %v414, %v1142
  %v1175 = vmul.f32 %v490, %v1093
  %v1176 = vmul.f32 %v493, %v1094
  %v1177 = vmul.f32 %v496, %v1109
  %v1178 = vmul.f32 %v499, %v1110
  %v1179 = vmul.f32 %v502, %v1125
  %v1180 = vmul.f32 %v505, %v1126
  %v1181 = vmul.f32 %v508, %v1141
  %v1182 = vmul.f32 %v511, %v1142
  %v1183 = vmul.f32 %v587, %v1093
  %v1184 = vmul.f32 %v590, %v1094
  %v1185 = vmul.f32 %v593, %v1109
  %v1186 = vmul.f32 %v596, %v1110
  %v1187 = vmul.f32 %v599, %v1125
  %v1188 = vmul.f32 %v602, %v1126
  %v1189 = vmul.f32 %v605, %v1141
  %v1190 = vmul.f32 %v608, %v1142
  %v1191 = vmul.f32 %v684, %v1093
  %v1192 = vmul.f32 %v687, %v1094
  %v1193 = vmul.f32 %v690, %v1109
  %v1194 = vmul.f32 %v693, %v1110
  %v1195 = vmul.f32 %v696, %v1125
  %v1196 = vmul.f32 %v699, %v1126
  %v1197 = vmul.f32 %v702, %v1141
  %v1198 = vmul.f32 %v705, %v1142
  %v1199 = vmul.f32 %v781, %v1093
  %v1200 = vmul.f32 %v784, %v1094
  %v1201 = vmul.f32 %v787, %v1109
  %v1202 = vmul.f32 %v790, %v1110
  %v1203 = vmul.f32 %v793, %v1125
  %v1204 = vmul.f32 %v796, %v1126
  %v1205 = vmul.f32 %v799, %v1141
  %v1206 = vmul.f32 %v802, %v1142
  %v1207 = vsel %vm918, %v1143, 0.0
  %v1208 = vsel %vm918, %v1144, 0.0
  %v1209 = vadd.f32 %v1207, %v1208
  %v1210 = vrot.slane %v1209, 4
  %v1211 = vadd.f32 %v1209, %v1210
  %v1212 = vrot.slane %v1211, 2
  %v1213 = vadd.f32 %v1211, %v1212
  %v1214 = vrot.slane %v1213, 1
  %v1215 = vadd.f32 %v1213, %v1214
  %v1216 = vsel %vm918, %v1145, 0.0
  %v1217 = vsel %vm918, %v1146, 0.0
  %v1218 = vadd.f32 %v1216, %v1217
  %v1219 = vrot.slane %v1218, 4
  %v1220 = vadd.f32 %v1218, %v1219
  %v1221 = vrot.slane %v1220, 2
  %v1222 = vadd.f32 %v1220, %v1221
  %v1223 = vrot.slane %v1222, 1
  %v1224 = vadd.f32 %v1222, %v1223
  %v1225 = vsel %vm918, %v1147, 0.0
  %v1226 = vsel %vm918, %v1148, 0.0
  %v1227 = vadd.f32 %v1225, %v1226
  %v1228 = vrot.slane %v1227, 4
  %v1229 = vadd.f32 %v1227, %v1228
  %v1230 = vrot.slane %v1229, 2
  %v1231 = vadd.f32 %v1229, %v1230
  %v1232 = vrot.slane %v1231, 1
  %v1233 = vadd.f32 %v1231, %v1232
  %v1234 = vsel %vm918, %v1149, 0.0
  %v1235 = vsel %vm918, %v1150, 0.0
  %v1236 = vadd.f32 %v1234, %v1235
  %v1237 = vrot.slane %v1236, 4
  %v1238 = vadd.f32 %v1236, %v1237
  %v1239 = vrot.slane %v1238, 2
  %v1240 = vadd.f32 %v1238, %v1239
  %v1241 = vrot.slane %v1240, 1
  %v1242 = vadd.f32 %v1240, %v1241
  %v1243 = vsel %vm918, %v1151, 0.0
  %v1244 = vsel %vm918, %v1152, 0.0
  %v1245 = vadd.f32 %v1243, %v1244
  %v1246 = vrot.slane %v1245, 4
  %v1247 = vadd.f32 %v1245, %v1246
  %v1248 = vrot.slane %v1247, 2
  %v1249 = vadd.f32 %v1247, %v1248
  %v1250 = vrot.slane %v1249, 1
  %v1251 = vadd.f32 %v1249, %v1250
  %v1252 = vsel %vm918, %v1153, 0.0
  %v1253 = vsel %vm918, %v1154, 0.0
  %v1254 = vadd.f32 %v1252, %v1253
  %v1255 = vrot.slane %v1254, 4
  %v1256 = vadd.f32 %v1254, %v1255
  %v1257 = vrot.slane %v1256, 2
  %v1258 = vadd.f32 %v1256, %v1257
  %v1259 = vrot.slane %v1258, 1
  %v1260 = vadd.f32 %v1258, %v1259
  %v1261 = vsel %vm918, %v1155, 0.0
  %v1262 = vsel %vm918, %v1156, 0.0
  %v1263 = vadd.f32 %v1261, %v1262
  %v1264 = vrot.slane %v1263, 4
  %v1265 = vadd.f32 %v1263, %v1264
  %v1266 = vrot.slane %v1265, 2
  %v1267 = vadd.f32 %v1265, %v1266
  %v1268 = vrot.slane %v1267, 1
  %v1269 = vadd.f32 %v1267, %v1268
  %v1270 = vsel %vm918, %v1157, 0.0
  %v1271 = vsel %vm918, %v1158, 0.0
  %v1272 = vadd.f32 %v1270, %v1271
  %v1273 = vrot.slane %v1272, 4
  %v1274 = vadd.f32 %v1272, %v1273
  %v1275 = vrot.slane %v1274, 2
  %v1276 = vadd.f32 %v1274, %v1275
  %v1277 = vrot.slane %v1276, 1
  %v1278 = vadd.f32 %v1276, %v1277
  %v1279 = vsel %vm918, %v1159, 0.0
  %v1280 = vsel %vm918, %v1160, 0.0
  %v1281 = vadd.f32 %v1279, %v1280
  %v1282 = vrot.slane %v1281, 4
  %v1283 = vadd.f32 %v1281, %v1282
  %v1284 = vrot.slane %v1283, 2
  %v1285 = vadd.f32 %v1283, %v1284
  %v1286 = vrot.slane %v1285, 1
  %v1287 = vadd.f32 %v1285, %v1286
  %v1288 = vsel %vm918, %v1161, 0.0
  %v1289 = vsel %vm918, %v1162, 0.0
  %v1290 = vadd.f32 %v1288, %v1289
  %v1291 = vrot.slane %v1290, 4
  %v1292 = vadd.f32 %v1290, %v1291
  %v1293 = vrot.slane %v1292, 2
  %v1294 = vadd.f32 %v1292, %v1293
  %v1295 = vrot.slane %v1294, 1
  %v1296 = vadd.f32 %v1294, %v1295
  %v1297 = vsel %vm918, %v1163, 0.0
  %v1298 = vsel %vm918, %v1164, 0.0
  %v1299 = vadd.f32 %v1297, %v1298
  %v1300 = vrot.slane %v1299, 4
  %v1301 = vadd.f32 %v1299, %v1300
  %v1302 = vrot.slane %v1301, 2
  %v1303 = vadd.f32 %v1301, %v1302
  %v1304 = vrot.slane %v1303, 1
  %v1305 = vadd.f32 %v1303, %v1304
  %v1306 = vsel %vm918, %v1165, 0.0
  %v1307 = vsel %vm918, %v1166, 0.0
  %v1308 = vadd.f32 %v1306, %v1307
  %v1309 = vrot.slane %v1308, 4
  %v1310 = vadd.f32 %v1308, %v1309
  %v1311 = vrot.slane %v1310, 2
  %v1312 = vadd.f32 %v1310, %v1311
  %v1313 = vrot.slane %v1312, 1
  %v1314 = vadd.f32 %v1312, %v1313
  %v1315 = vsel %vm918, %v1167, 0.0
  %v1316 = vsel %vm918, %v1168, 0.0
  %v1317 = vadd.f32 %v1315, %v1316
  %v1318 = vrot.slane %v1317, 4
  %v1319 = vadd.f32 %v1317, %v1318
  %v1320 = vrot.slane %v1319, 2
  %v1321 = vadd.f32 %v1319, %v1320
  %v1322 = vrot.slane %v1321, 1
  %v1323 = vadd.f32 %v1321, %v1322
  %v1324 = vsel %vm918, %v1169, 0.0
  %v1325 = vsel %vm918, %v1170, 0.0
  %v1326 = vadd.f32 %v1324, %v1325
  %v1327 = vrot.slane %v1326, 4
  %v1328 = vadd.f32 %v1326, %v1327
  %v1329 = vrot.slane %v1328, 2
  %v1330 = vadd.f32 %v1328, %v1329
  %v1331 = vrot.slane %v1330, 1
  %v1332 = vadd.f32 %v1330, %v1331
  %v1333 = vsel %vm918, %v1171, 0.0
  %v1334 = vsel %vm918, %v1172, 0.0
  %v1335 = vadd.f32 %v1333, %v1334
  %v1336 = vrot.slane %v1335, 4
  %v1337 = vadd.f32 %v1335, %v1336
  %v1338 = vrot.slane %v1337, 2
  %v1339 = vadd.f32 %v1337, %v1338
  %v1340 = vrot.slane %v1339, 1
  %v1341 = vadd.f32 %v1339, %v1340
  %v1342 = vsel %vm918, %v1173, 0.0
  %v1343 = vsel %vm918, %v1174, 0.0
  %v1344 = vadd.f32 %v1342, %v1343
  %v1345 = vrot.slane %v1344, 4
  %v1346 = vadd.f32 %v1344, %v1345
  %v1347 = vrot.slane %v1346, 2
  %v1348 = vadd.f32 %v1346, %v1347
  %v1349 = vrot.slane %v1348, 1
  %v1350 = vadd.f32 %v1348, %v1349
  %v1351 = vsel %vm918, %v1175, 0.0
  %v1352 = vsel %vm918, %v1176, 0.0
  %v1353 = vadd.f32 %v1351, %v1352
  %v1354 = vrot.slane %v1353, 4
  %v1355 = vadd.f32 %v1353, %v1354
  %v1356 = vrot.slane %v1355, 2
  %v1357 = vadd.f32 %v1355, %v1356
  %v1358 = vrot.slane %v1357, 1
  %v1359 = vadd.f32 %v1357, %v1358
  %v1360 = vsel %vm918, %v1177, 0.0
  %v1361 = vsel %vm918, %v1178, 0.0
  %v1362 = vadd.f32 %v1360, %v1361
  %v1363 = vrot.slane %v1362, 4
  %v1364 = vadd.f32 %v1362, %v1363
  %v1365 = vrot.slane %v1364, 2
  %v1366 = vadd.f32 %v1364, %v1365
  %v1367 = vrot.slane %v1366, 1
  %v1368 = vadd.f32 %v1366, %v1367
  %v1369 = vsel %vm918, %v1179, 0.0
  %v1370 = vsel %vm918, %v1180, 0.0
  %v1371 = vadd.f32 %v1369, %v1370
  %v1372 = vrot.slane %v1371, 4
  %v1373 = vadd.f32 %v1371, %v1372
  %v1374 = vrot.slane %v1373, 2
  %v1375 = vadd.f32 %v1373, %v1374
  %v1376 = vrot.slane %v1375, 1
  %v1377 = vadd.f32 %v1375, %v1376
  %v1378 = vsel %vm918, %v1181, 0.0
  %v1379 = vsel %vm918, %v1182, 0.0
  %v1380 = vadd.f32 %v1378, %v1379
  %v1381 = vrot.slane %v1380, 4
  %v1382 = vadd.f32 %v1380, %v1381
  %v1383 = vrot.slane %v1382, 2
  %v1384 = vadd.f32 %v1382, %v1383
  %v1385 = vrot.slane %v1384, 1
  %v1386 = vadd.f32 %v1384, %v1385
  %v1387 = vsel %vm918, %v1183, 0.0
  %v1388 = vsel %vm918, %v1184, 0.0
  %v1389 = vadd.f32 %v1387, %v1388
  %v1390 = vrot.slane %v1389, 4
  %v1391 = vadd.f32 %v1389, %v1390
  %v1392 = vrot.slane %v1391, 2
  %v1393 = vadd.f32 %v1391, %v1392
  %v1394 = vrot.slane %v1393, 1
  %v1395 = vadd.f32 %v1393, %v1394
  %v1396 = vsel %vm918, %v1185, 0.0
  %v1397 = vsel %vm918, %v1186, 0.0
  %v1398 = vadd.f32 %v1396, %v1397
  %v1399 = vrot.slane %v1398, 4
  %v1400 = vadd.f32 %v1398, %v1399
  %v1401 = vrot.slane %v1400, 2
  %v1402 = vadd.f32 %v1400, %v1401
  %v1403 = vrot.slane %v1402, 1
  %v1404 = vadd.f32 %v1402, %v1403
  %v1405 = vsel %vm918, %v1187, 0.0
  %v1406 = vsel %vm918, %v1188, 0.0
  %v1407 = vadd.f32 %v1405, %v1406
  %v1408 = vrot.slane %v1407, 4
  %v1409 = vadd.f32 %v1407, %v1408
  %v1410 = vrot.slane %v1409, 2
  %v1411 = vadd.f32 %v1409, %v1410
  %v1412 = vrot.slane %v1411, 1
  %v1413 = vadd.f32 %v1411, %v1412
  %v1414 = vsel %vm918, %v1189, 0.0
  %v1415 = vsel %vm918, %v1190, 0.0
  %v1416 = vadd.f32 %v1414, %v1415
  %v1417 = vrot.slane %v1416, 4
  %v1418 = vadd.f32 %v1416, %v1417
  %v1419 = vrot.slane %v1418, 2
  %v1420 = vadd.f32 %v1418, %v1419
  %v1421 = vrot.slane %v1420, 1
  %v1422 = vadd.f32 %v1420, %v1421
  %v1423 = vsel %vm918, %v1191, 0.0
  %v1424 = vsel %vm918, %v1192, 0.0
  %v1425 = vadd.f32 %v1423, %v1424
  %v1426 = vrot.slane %v1425, 4
  %v1427 = vadd.f32 %v1425, %v1426
  %v1428 = vrot.slane %v1427, 2
  %v1429 = vadd.f32 %v1427, %v1428
  %v1430 = vrot.slane %v1429, 1
  %v1431 = vadd.f32 %v1429, %v1430
  %v1432 = vsel %vm918, %v1193, 0.0
  %v1433 = vsel %vm918, %v1194, 0.0
  %v1434 = vadd.f32 %v1432, %v1433
  %v1435 = vrot.slane %v1434, 4
  %v1436 = vadd.f32 %v1434, %v1435
  %v1437 = vrot.slane %v1436, 2
  %v1438 = vadd.f32 %v1436, %v1437
  %v1439 = vrot.slane %v1438, 1
  %v1440 = vadd.f32 %v1438, %v1439
  %v1441 = vsel %vm918, %v1195, 0.0
  %v1442 = vsel %vm918, %v1196, 0.0
  %v1443 = vadd.f32 %v1441, %v1442
  %v1444 = vrot.slane %v1443, 4
  %v1445 = vadd.f32 %v1443, %v1444
  %v1446 = vrot.slane %v1445, 2
  %v1447 = vadd.f32 %v1445, %v1446
  %v1448 = vrot.slane %v1447, 1
  %v1449 = vadd.f32 %v1447, %v1448
  %v1450 = vsel %vm918, %v1197, 0.0
  %v1451 = vsel %vm918, %v1198, 0.0
  %v1452 = vadd.f32 %v1450, %v1451
  %v1453 = vrot.slane %v1452, 4
  %v1454 = vadd.f32 %v1452, %v1453
  %v1455 = vrot.slane %v1454, 2
  %v1456 = vadd.f32 %v1454, %v1455
  %v1457 = vrot.slane %v1456, 1
  %v1458 = vadd.f32 %v1456, %v1457
  %v1459 = vsel %vm918, %v1199, 0.0
  %v1460 = vsel %vm918, %v1200, 0.0
  %v1461 = vadd.f32 %v1459, %v1460
  %v1462 = vrot.slane %v1461, 4
  %v1463 = vadd.f32 %v1461, %v1462
  %v1464 = vrot.slane %v1463, 2
  %v1465 = vadd.f32 %v1463, %v1464
  %v1466 = vrot.slane %v1465, 1
  %v1467 = vadd.f32 %v1465, %v1466
  %v1468 = vsel %vm918, %v1201, 0.0
  %v1469 = vsel %vm918, %v1202, 0.0
  %v1470 = vadd.f32 %v1468, %v1469
  %v1471 = vrot.slane %v1470, 4
  %v1472 = vadd.f32 %v1470, %v1471
  %v1473 = vrot.slane %v1472, 2
  %v1474 = vadd.f32 %v1472, %v1473
  %v1475 = vrot.slane %v1474, 1
  %v1476 = vadd.f32 %v1474, %v1475
  %v1477 = vsel %vm918, %v1203, 0.0
  %v1478 = vsel %vm918, %v1204, 0.0
  %v1479 = vadd.f32 %v1477, %v1478
  %v1480 = vrot.slane %v1479, 4
  %v1481 = vadd.f32 %v1479, %v1480
  %v1482 = vrot.slane %v1481, 2
  %v1483 = vadd.f32 %v1481, %v1482
  %v1484 = vrot.slane %v1483, 1
  %v1485 = vadd.f32 %v1483, %v1484
  %v1486 = vsel %vm918, %v1205, 0.0
  %v1487 = vsel %vm918, %v1206, 0.0
  %v1488 = vadd.f32 %v1486, %v1487
  %v1489 = vrot.slane %v1488, 4
  %v1490 = vadd.f32 %v1488, %v1489
  %v1491 = vrot.slane %v1490, 2
  %v1492 = vadd.f32 %v1490, %v1491
  %v1493 = vrot.slane %v1492, 1
  %v1494 = vadd.f32 %v1492, %v1493
  %v1495 = vsel %vm918, %v1215, -inf
  %v1496 = vsel %vm918, %v1224, -inf
  %v1497 = vmax.f32 %v1495, %v1496
  %v1498 = vsel %vm918, %v1233, -inf
  %v1499 = vmax.f32 %v1497, %v1498
  %v1500 = vsel %vm918, %v1242, -inf
  %v1501 = vmax.f32 %v1499, %v1500
  %v1502 = vsel %vm918, %v1251, -inf
  %v1503 = vsel %vm918, %v1260, -inf
  %v1504 = vmax.f32 %v1502, %v1503
  %v1505 = vsel %vm918, %v1269, -inf
  %v1506 = vmax.f32 %v1504, %v1505
  %v1507 = vsel %vm918, %v1278, -inf
  %v1508 = vmax.f32 %v1506, %v1507
  %v1509 = vsel %vm918, %v1287, -inf
  %v1510 = vsel %vm918, %v1296, -inf
  %v1511 = vmax.f32 %v1509, %v1510
  %v1512 = vsel %vm918, %v1305, -inf
  %v1513 = vmax.f32 %v1511, %v1512
  %v1514 = vsel %vm918, %v1314, -inf
  %v1515 = vmax.f32 %v1513, %v1514
  %v1516 = vsel %vm918, %v1323, -inf
  %v1517 = vsel %vm918, %v1332, -inf
  %v1518 = vmax.f32 %v1516, %v1517
  %v1519 = vsel %vm918, %v1341, -inf
  %v1520 = vmax.f32 %v1518, %v1519
  %v1521 = vsel %vm918, %v1350, -inf
  %v1522 = vmax.f32 %v1520, %v1521
  %v1523 = vsel %vm918, %v1359, -inf
  %v1524 = vsel %vm918, %v1368, -inf
  %v1525 = vmax.f32 %v1523, %v1524
  %v1526 = vsel %vm918, %v1377, -inf
  %v1527 = vmax.f32 %v1525, %v1526
  %v1528 = vsel %vm918, %v1386, -inf
  %v1529 = vmax.f32 %v1527, %v1528
  %v1530 = vsel %vm918, %v1395, -inf
  %v1531 = vsel %vm918, %v1404, -inf
  %v1532 = vmax.f32 %v1530, %v1531
  %v1533 = vsel %vm918, %v1413, -inf
  %v1534 = vmax.f32 %v1532, %v1533
  %v1535 = vsel %vm918, %v1422, -inf
  %v1536 = vmax.f32 %v1534, %v1535
  %v1537 = vsel %vm918, %v1431, -inf
  %v1538 = vsel %vm918, %v1440, -inf
  %v1539 = vmax.f32 %v1537, %v1538
  %v1540 = vsel %vm918, %v1449, -inf
  %v1541 = vmax.f32 %v1539, %v1540
  %v1542 = vsel %vm918, %v1458, -inf
  %v1543 = vmax.f32 %v1541, %v1542
  %v1544 = vsel %vm918, %v1467, -inf
  %v1545 = vsel %vm918, %v1476, -inf
  %v1546 = vmax.f32 %v1544, %v1545
  %v1547 = vsel %vm918, %v1485, -inf
  %v1548 = vmax.f32 %v1546, %v1547
  %v1549 = vsel %vm918, %v1494, -inf
  %v1550 = vmax.f32 %v1548, %v1549
  %v1551 = vsub.f32 %v1215, %v1501
  %v1552 = vsub.f32 %v1224, %v1501
  %v1553 = vsub.f32 %v1233, %v1501
  %v1554 = vsub.f32 %v1242, %v1501
  %v1555 = vsub.f32 %v1251, %v1508
  %v1556 = vsub.f32 %v1260, %v1508
  %v1557 = vsub.f32 %v1269, %v1508
  %v1558 = vsub.f32 %v1278, %v1508
  %v1559 = vsub.f32 %v1287, %v1515
  %v1560 = vsub.f32 %v1296, %v1515
  %v1561 = vsub.f32 %v1305, %v1515
  %v1562 = vsub.f32 %v1314, %v1515
  %v1563 = vsub.f32 %v1323, %v1522
  %v1564 = vsub.f32 %v1332, %v1522
  %v1565 = vsub.f32 %v1341, %v1522
  %v1566 = vsub.f32 %v1350, %v1522
  %v1567 = vsub.f32 %v1359, %v1529
  %v1568 = vsub.f32 %v1368, %v1529
  %v1569 = vsub.f32 %v1377, %v1529
  %v1570 = vsub.f32 %v1386, %v1529
  %v1571 = vsub.f32 %v1395, %v1536
  %v1572 = vsub.f32 %v1404, %v1536
  %v1573 = vsub.f32 %v1413, %v1536
  %v1574 = vsub.f32 %v1422, %v1536
  %v1575 = vsub.f32 %v1431, %v1543
  %v1576 = vsub.f32 %v1440, %v1543
  %v1577 = vsub.f32 %v1449, %v1543
  %v1578 = vsub.f32 %v1458, %v1543
  %v1579 = vsub.f32 %v1467, %v1550
  %v1580 = vsub.f32 %v1476, %v1550
  %v1581 = vsub.f32 %v1485, %v1550
  %v1582 = vsub.f32 %v1494, %v1550
  %v1583 = vmul.f32 %v1551, 1.442695
  %v1584 = vpow.pop %v1583
  %v1585 = vmul.f32 %v1552, 1.442695
  %v1586 = vpow.pop %v1585
  %v1587 = vmul.f32 %v1553, 1.442695
  %v1588 = vpow.pop %v1587
  %v1589 = vmul.f32 %v1554, 1.442695
  %v1590 = vpow.pop %v1589
  %v1591 = vmul.f32 %v1555, 1.442695
  %v1592 = vpow.pop %v1591
  %v1593 = vmul.f32 %v1556, 1.442695
  %v1594 = vpow.pop %v1593
  %v1595 = vmul.f32 %v1557, 1.442695
  %v1596 = vpow.pop %v1595
  %v1597 = vmul.f32 %v1558, 1.442695
  %v1598 = vpow.pop %v1597
  %v1599 = vmul.f32 %v1559, 1.442695
  %v1600 = vpow.pop %v1599
  %v1601 = vmul.f32 %v1560, 1.442695
  %v1602 = vpow.pop %v1601
  %v1603 = vmul.f32 %v1561, 1.442695
  %v1604 = vpow.pop %v1603
  %v1605 = vmul.f32 %v1562, 1.442695
  %v1606 = vpow.pop %v1605
  %v1607 = vmul.f32 %v1563, 1.442695
  %v1608 = vpow.pop %v1607
  %v1609 = vmul.f32 %v1564, 1.442695
  %v1610 = vpow.pop %v1609
  %v1611 = vmul.f32 %v1565, 1.442695
  %v1612 = vpow.pop %v1611
  %v1613 = vmul.f32 %v1566, 1.442695
  %v1614 = vpow.pop %v1613
  %v1615 = vmul.f32 %v1567, 1.442695
  %v1616 = vpow.pop %v1615
  %v1617 = vmul.f32 %v1568, 1.442695
  %v1618 = vpow.pop %v1617
  %v1619 = vmul.f32 %v1569, 1.442695
  %v1620 = vpow.pop %v1619
  %v1621 = vmul.f32 %v1570, 1.442695
  %v1622 = vpow.pop %v1621
  %v1623 = vmul.f32 %v1571, 1.442695
  %v1624 = vpow.pop %v1623
  %v1625 = vmul.f32 %v1572, 1.442695
  %v1626 = vpow.pop %v1625
  %v1627 = vmul.f32 %v1573, 1.442695
  %v1628 = vpow.pop %v1627
  %v1629 = vmul.f32 %v1574, 1.442695
  %v1630 = vpow.pop %v1629
  %v1631 = vmul.f32 %v1575, 1.442695
  %v1632 = vpow.pop %v1631
  %v1633 = vmul.f32 %v1576, 1.442695
  %v1634 = vpow.pop %v1633
  %v1635 = vmul.f32 %v1577, 1.442695
  %v1636 = vpow.pop %v1635
  %v1637 = vmul.f32 %v1578, 1.442695
  %v1638 = vpow.pop %v1637
  %v1639 = vmul.f32 %v1579, 1.442695
  %v1640 = vpow.pop %v1639
  %v1641 = vmul.f32 %v1580, 1.442695
  %v1642 = vpow.pop %v1641
  %v1643 = vmul.f32 %v1581, 1.442695
  %v1644 = vpow.pop %v1643
  %v1645 = vmul.f32 %v1582, 1.442695
  %v1646 = vpow.pop %v1645
  %v1679 = vrot.slane %v1586, 7
  %vm1680 = vcmask 1041409
  %v1681 = vsel %vm1680, %v1679, %v1584
  %v1682 = vrot.slane %v1588, 6
  %vm1683 = vcmask 1042434
  %v1684 = vsel %vm1683, %v1682, %v1681
  %v1685 = vrot.slane %v1590, 5
  %vm1686 = vcmask 1043459
  %v1687 = vsel %vm1686, %v1685, %v1684
  %v1688 = vrot.slane %v1594, 7
  %v1689 = vsel %vm1680, %v1688, %v1592
  %v1690 = vrot.slane %v1596, 6
  %v1691 = vsel %vm1683, %v1690, %v1689
  %v1692 = vrot.slane %v1598, 5
  %v1693 = vsel %vm1686, %v1692, %v1691
  %v1694 = vrot.slane %v1602, 7
  %v1695 = vsel %vm1680, %v1694, %v1600
  %v1696 = vrot.slane %v1604, 6
  %v1697 = vsel %vm1683, %v1696, %v1695
  %v1698 = vrot.slane %v1606, 5
  %v1699 = vsel %vm1686, %v1698, %v1697
  %v1700 = vrot.slane %v1610, 7
  %v1701 = vsel %vm1680, %v1700, %v1608
  %v1702 = vrot.slane %v1612, 6
  %v1703 = vsel %vm1683, %v1702, %v1701
  %v1704 = vrot.slane %v1614, 5
  %v1705 = vsel %vm1686, %v1704, %v1703
  %v1706 = vrot.slane %v1618, 7
  %v1707 = vsel %vm1680, %v1706, %v1616
  %v1708 = vrot.slane %v1620, 6
  %v1709 = vsel %vm1683, %v1708, %v1707
  %v1710 = vrot.slane %v1622, 5
  %v1711 = vsel %vm1686, %v1710, %v1709
  %v1712 = vrot.slane %v1626, 7
  %v1713 = vsel %vm1680, %v1712, %v1624
  %v1714 = vrot.slane %v1628, 6
  %v1715 = vsel %vm1683, %v1714, %v1713
  %v1716 = vrot.slane %v1630, 5
  %v1717 = vsel %vm1686, %v1716, %v1715
  %v1718 = vrot.slane %v1634, 7
  %v1719 = vsel %vm1680, %v1718, %v1632
  %v1720 = vrot.slane %v1636, 6
  %v1721 = vsel %vm1683, %v1720, %v1719
  %v1722 = vrot.slane %v1638, 5
  %v1723 = vsel %vm1686, %v1722, %v1721
  %v1724 = vrot.slane %v1642, 7
  %v1725 = vsel %vm1680, %v1724, %v1640
  %v1726 = vrot.slane %v1644, 6
  %v1727 = vsel %vm1683, %v1726, %v1725
  %v1728 = vrot.slane %v1646, 5
  %v1729 = vsel %vm1686, %v1728, %v1727
  %vm1738 = vcmask 11264
  %v1739 = vsel %vm1738, %v1687, 0.0
  %v1740 = vrot.slane %v1739, 4
  %v1741 = vadd.f32 %v1739, %v1740
  %v1742 = vrot.slane %v1741, 2
  %v1743 = vadd.f32 %v1741, %v1742
  %v1744 = vrot.slane %v1743, 1
  %v1745 = vadd.f32 %v1743, %v1744
  %v1746 = vsel %vm1738, %v1693, 0.0
  %v1747 = vrot.slane %v1746, 4
  %v1748 = vadd.f32 %v1746, %v1747
  %v1749 = vrot.slane %v1748, 2
  %v1750 = vadd.f32 %v1748, %v1749
  %v1751 = vrot.slane %v1750, 1
  %v1752 = vadd.f32 %v1750, %v1751
  %v1753 = vsel %vm1738, %v1699, 0.0
  %v1754 = vrot.slane %v1753, 4
  %v1755 = vadd.f32 %v1753, %v1754
  %v1756 = vrot.slane %v1755, 2
  %v1757 = vadd.f32 %v1755, %v1756
  %v1758 = vrot.slane %v1757, 1
  %v1759 = vadd.f32 %v1757, %v1758
  %v1760 = vsel %vm1738, %v1705, 0.0
  %v1761 = vrot.slane %v1760, 4
  %v1762 = vadd.f32 %v1760, %v1761
  %v1763 = vrot.slane %v1762, 2
  %v1764 = vadd.f32 %v1762, %v1763
  %v1765 = vrot.slane %v1764, 1
  %v1766 = vadd.f32 %v1764, %v1765
  %v1767 = vsel %vm1738, %v1711, 0.0
  %v1768 = vrot.slane %v1767, 4
  %v1769 = vadd.f32 %v1767, %v1768
  %v1770 = vrot.slane %v1769, 2
  %v1771 = vadd.f32 %v1769, %v1770
  %v1772 = vrot.slane %v1771, 1
  %v1773 = vadd.f32 %v1771, %v1772
  %v1774 = vsel %vm1738, %v1717, 0.0
  %v1775 = vrot.slane %v1774, 4
  %v1776 = vadd.f32 %v1774, %v1775
  %v1777 = vrot.slane %v1776, 2
  %v1778 = vadd.f32 %v1776, %v1777
  %v1779 = vrot.slane %v1778, 1
  %v1780 = vadd.f32 %v1778, %v1779
  %v1781 = vsel %vm1738, %v1723, 0.0
  %v1782 = vrot.slane %v1781, 4
  %v1783 = vadd.f32 %v1781, %v1782
  %v1784 = vrot.slane %v1783, 2
  %v1785 = vadd.f32 %v1783, %v1784
  %v1786 = vrot.slane %v1785, 1
  %v1787 = vadd.f32 %v1785, %v1786
  %v1788 = vsel %vm1738, %v1729, 0.0
  %v1789 = vrot.slane %v1788, 4
  %v1790 = vadd.f32 %v1788, %v1789
  %v1791 = vrot.slane %v1790, 2
  %v1792 = vadd.f32 %v1790, %v1791
  %v1793 = vrot.slane %v1792, 1
  %v1794 = vadd.f32 %v1792, %v1793
  %v1795 = vrcp.pop %v1745
  %v1796 = vrcp.pop %v1752
  %v1797 = vrcp.pop %v1759
  %v1798 = vrcp.pop %v1766
  %v1799 = vrcp.pop %v1773
  %v1800 = vrcp.pop %v1780
  %v1801 = vrcp.pop %v1787
  %v1802 = vrcp.pop %v1794
  %v1803 = vperm.slane %v1795, 0
  %v1804 = vperm.slane %v1796, 0
  %v1805 = vperm.slane %v1797, 0
  %v1806 = vperm.slane %v1798, 0
  %v1807 = vperm.slane %v1799, 0
  %v1808 = vperm.slane %v1800, 0
  %v1809 = vperm.slane %v1801, 0
  %v1810 = vperm.slane %v1802, 0
  %v1811 = vmul.f32 %v1584, %v1803
  %v1812 = vmul.f32 %v1586, %v1803
  %v1813 = vmul.f32 %v1588, %v1803
  %v1814 = vmul.f32 %v1590, %v1803
  %v1815 = vmul.f32 %v1592, %v1804
  %v1816 = vmul.f32 %v1594, %v1804
  %v1817 = vmul.f32 %v1596, %v1804
  %v1818 = vmul.f32 %v1598, %v1804
  %v1819 = vmul.f32 %v1600, %v1805
  %v1820 = vmul.f32 %v1602, %v1805
  %v1821 = vmul.f32 %v1604, %v1805
  %v1822 = vmul.f32 %v1606, %v1805
  %v1823 = vmul.f32 %v1608, %v1806
  %v1824 = vmul.f32 %v1610, %v1806
  %v1825 = vmul.f32 %v1612, %v1806
  %v1826 = vmul.f32 %v1614, %v1806
  %v1827 = vmul.f32 %v1616, %v1807
  %v1828 = vmul.f32 %v1618, %v1807
  %v1829 = vmul.f32 %v1620, %v1807
  %v1830 = vmul.f32 %v1622, %v1807
  %v1831 = vmul.f32 %v1624, %v1808
  %v1832 = vmul.f32 %v1626, %v1808
  %v1833 = vmul.f32 %v1628, %v1808
  %v1834 = vmul.f32 %v1630, %v1808
  %v1835 = vmul.f32 %v1632, %v1809
  %v1836 = vmul.f32 %v1634, %v1809
  %v1837 = vmul.f32 %v1636, %v1809
  %v1838 = vmul.f32 %v1638, %v1809
  %v1839 = vmul.f32 %v1640, %v1810
  %v1840 = vmul.f32 %v1642, %v1810
  %v1841 = vmul.f32 %v1644, %v1810
  %v1842 = vmul.f32 %v1646, %v1810
  %v1843 = vperm.slane %v1811, 0
  %v1844 = vperm.slane %v1812, 0
  %v1845 = vperm.slane %v1813, 0
  %v1846 = vperm.slane %v1814, 0
  %v1847 = vperm.slane %v1815, 0
  %v1848 = vperm.slane %v1816, 0
  %v1849 = vperm.slane %v1817, 0
  %v1850 = vperm.slane %v1818, 0
  %v1851 = vperm.slane %v1819, 0
  %v1852 = vperm.slane %v1820, 0
  %v1853 = vperm.slane %v1821, 0
  %v1854 = vperm.slane %v1822, 0
  %v1855 = vperm.slane %v1823, 0
  %v1856 = vperm.slane %v1824, 0
  %v1857 = vperm.slane %v1825, 0
  %v1858 = vperm.slane %v1826, 0
  %v1859 = vperm.slane %v1827, 0
  %v1860 = vperm.slane %v1828, 0
  %v1861 = vperm.slane %v1829, 0
  %v1862 = vperm.slane %v1830, 0
  %v1863 = vperm.slane %v1831, 0
  %v1864 = vperm.slane %v1832, 0
  %v1865 = vperm.slane %v1833, 0
  %v1866 = vperm.slane %v1834, 0
  %v1867 = vperm.slane %v1835, 0
  %v1868 = vperm.slane %v1836, 0
  %v1869 = vperm.slane %v1837, 0
  %v1870 = vperm.slane %v1838, 0
  %v1871 = vperm.slane %v1839, 0
  %v1872 = vperm.slane %v1840, 0
  %v1873 = vperm.slane %v1841, 0
  %v1874 = vperm.slane %v1842, 0
  %v1875 = vmul.f32 %v1843, %v102
  %v1876 = vmul.f32 %v1843, %v105
  %v1877 = vmul.f32 %v1844, %v108
  %v1878 = vmul.f32 %v1844, %v111
  %v1879 = vmul.f32 %v1845, %v114
  %v1880 = vmul.f32 %v1845, %v117
  %v1881 = vmul.f32 %v1846, %v120
  %v1882 = vmul.f32 %v1846, %v123
  %v1883 = vmul.f32 %v1847, %v199
  %v1884 = vmul.f32 %v1847, %v202
  %v1885 = vmul.f32 %v1848, %v205
  %v1886 = vmul.f32 %v1848, %v208
  %v1887 = vmul.f32 %v1849, %v211
  %v1888 = vmul.f32 %v1849, %v214
  %v1889 = vmul.f32 %v1850, %v217
  %v1890 = vmul.f32 %v1850, %v220
  %v1891 = vmul.f32 %v1851, %v296
  %v1892 = vmul.f32 %v1851, %v299
  %v1893 = vmul.f32 %v1852, %v302
  %v1894 = vmul.f32 %v1852, %v305
  %v1895 = vmul.f32 %v1853, %v308
  %v1896 = vmul.f32 %v1853, %v311
  %v1897 = vmul.f32 %v1854, %v314
  %v1898 = vmul.f32 %v1854, %v317
  %v1899 = vmul.f32 %v1855, %v393
  %v1900 = vmul.f32 %v1855, %v396
  %v1901 = vmul.f32 %v1856, %v399
  %v1902 = vmul.f32 %v1856, %v402
  %v1903 = vmul.f32 %v1857, %v405
  %v1904 = vmul.f32 %v1857, %v408
  %v1905 = vmul.f32 %v1858, %v411
  %v1906 = vmul.f32 %v1858, %v414
  %v1907 = vmul.f32 %v1859, %v490
  %v1908 = vmul.f32 %v1859, %v493
  %v1909 = vmul.f32 %v1860, %v496
  %v1910 = vmul.f32 %v1860, %v499
  %v1911 = vmul.f32 %v1861, %v502
  %v1912 = vmul.f32 %v1861, %v505
  %v1913 = vmul.f32 %v1862, %v508
  %v1914 = vmul.f32 %v1862, %v511
  %v1915 = vmul.f32 %v1863, %v587
  %v1916 = vmul.f32 %v1863, %v590
  %v1917 = vmul.f32 %v1864, %v593
  %v1918 = vmul.f32 %v1864, %v596
  %v1919 = vmul.f32 %v1865, %v599
  %v1920 = vmul.f32 %v1865, %v602
  %v1921 = vmul.f32 %v1866, %v605
  %v1922 = vmul.f32 %v1866, %v608
  %v1923 = vmul.f32 %v1867, %v684
  %v1924 = vmul.f32 %v1867, %v687
  %v1925 = vmul.f32 %v1868, %v690
  %v1926 = vmul.f32 %v1868, %v693
  %v1927 = vmul.f32 %v1869, %v696
  %v1928 = vmul.f32 %v1869, %v699
  %v1929 = vmul.f32 %v1870, %v702
  %v1930 = vmul.f32 %v1870, %v705
  %v1931 = vmul.f32 %v1871, %v781
  %v1932 = vmul.f32 %v1871, %v784
  %v1933 = vmul.f32 %v1872, %v787
  %v1934 = vmul.f32 %v1872, %v790
  %v1935 = vmul.f32 %v1873, %v793
  %v1936 = vmul.f32 %v1873, %v796
  %v1937 = vmul.f32 %v1874, %v799
  %v1938 = vmul.f32 %v1874, %v802
  %v1939 = vsel %vm918, %v1875, 0.0
  %v1940 = vsel %vm918, %v1883, 0.0
  %v1941 = vadd.f32 %v1939, %v1940
  %v1942 = vsel %vm918, %v1891, 0.0
  %v1943 = vadd.f32 %v1941, %v1942
  %v1944 = vsel %vm918, %v1899, 0.0
  %v1945 = vadd.f32 %v1943, %v1944
  %v1946 = vsel %vm918, %v1907, 0.0
  %v1947 = vadd.f32 %v1945, %v1946
  %v1948 = vsel %vm918, %v1915, 0.0
  %v1949 = vadd.f32 %v1947, %v1948
  %v1950 = vsel %vm918, %v1923, 0.0
  %v1951 = vadd.f32 %v1949, %v1950
  %v1952 = vsel %vm918, %v1931, 0.0
  %v1953 = vadd.f32 %v1951, %v1952
  %v1954 = vsel %vm918, %v1876, 0.0
  %v1955 = vsel %vm918, %v1884, 0.0
  %v1956 = vadd.f32 %v1954, %v1955
  %v1957 = vsel %vm918, %v1892, 0.0
  %v1958 = vadd.f32 %v1956, %v1957
  %v1959 = vsel %vm918, %v1900, 0.0
  %v1960 = vadd.f32 %v1958, %v1959
  %v1961 = vsel %vm918, %v1908, 0.0
  %v1962 = vadd.f32 %v1960, %v1961
  %v1963 = vsel %vm918, %v1916, 0.0
  %v1964 = vadd.f32 %v1962, %v1963
  %v1965 = vsel %vm918, %v1924, 0.0
  %v1966 = vadd.f32 %v1964, %v1965
  %v1967 = vsel %vm918, %v1932, 0.0
  %v1968 = vadd.f32 %v1966, %v1967
  %v1969 = vsel %vm918, %v1877, 0.0
  %v1970 = vsel %vm918, %v1885, 0.0
  %v1971 = vadd.f32 %v1969, %v1970
  %v1972 = vsel %vm918, %v1893, 0.0
  %v1973 = vadd.f32 %v1971, %v1972
  %v1974 = vsel %vm918, %v1901, 0.0
  %v1975 = vadd.f32 %v1973, %v1974
  %v1976 = vsel %vm918, %v1909, 0.0
  %v1977 = vadd.f32 %v1975, %v1976
  %v1978 = vsel %vm918, %v1917, 0.0
  %v1979 = vadd.f32 %v1977, %v1978
  %v1980 = vsel %vm918, %v1925, 0.0
  %v1981 = vadd.f32 %v1979, %v1980
  %v1982 = vsel %vm918, %v1933, 0.0
  %v1983 = vadd.f32 %v1981, %v1982
  %v1984 = vsel %vm918, %v1878, 0.0
  %v1985 = vsel %vm918, %v1886, 0.0
  %v1986 = vadd.f32 %v1984, %v1985
  %v1987 = vsel %vm918, %v1894, 0.0
  %v1988 = vadd.f32 %v1986, %v1987
  %v1989 = vsel %vm918, %v1902, 0.0
  %v1990 = vadd.f32 %v1988, %v1989
  %v1991 = vsel %vm918, %v1910, 0.0
  %v1992 = vadd.f32 %v1990, %v1991
  %v1993 = vsel %vm918, %v1918, 0.0
  %v1994 = vadd.f32 %v1992, %v1993
  %v1995 = vsel %vm918, %v1926, 0.0
  %v1996 = vadd.f32 %v1994, %v1995
  %v1997 = vsel %vm918, %v1934, 0.0
  %v1998 = vadd.f32 %v1996, %v1997
  %v1999 = vsel %vm918, %v1879, 0.0
  %v2000 = vsel %vm918, %v1887, 0.0
  %v2001 = vadd.f32 %v1999, %v2000
  %v2002 = vsel %vm918, %v1895, 0.0
  %v2003 = vadd.f32 %v2001, %v2002
  %v2004 = vsel %vm918, %v1903, 0.0
  %v2005 = vadd.f32 %v2003, %v2004
  %v2006 = vsel %vm918, %v1911, 0.0
  %v2007 = vadd.f32 %v2005, %v2006
  %v2008 = vsel %vm918, %v1919, 0.0
  %v2009 = vadd.f32 %v2007, %v2008
  %v2010 = vsel %vm918, %v1927, 0.0
  %v2011 = vadd.f32 %v2009, %v2010
  %v2012 = vsel %vm918, %v1935, 0.0
  %v2013 = vadd.f32 %v2011, %v2012
  %v2014 = vsel %vm918, %v1880, 0.0
  %v2015 = vsel %vm918, %v1888, 0.0
  %v2016 = vadd.f32 %v2014, %v2015
  %v2017 = vsel %vm918, %v1896, 0.0
  %v2018 = vadd.f32 %v2016, %v2017
  %v2019 = vsel %vm918, %v1904, 0.0
  %v2020 = vadd.f32 %v2018, %v2019
  %v2021 = vsel %vm918, %v1912, 0.0
  %v2022 = vadd.f32 %v2020, %v2021
  %v2023 = vsel %vm918, %v1920, 0.0
  %v2024 = vadd.f32 %v2022, %v2023
  %v2025 = vsel %vm918, %v1928, 0.0
  %v2026 = vadd.f32 %v2024, %v2025
  %v2027 = vsel %vm918, %v1936, 0.0
  %v2028 = vadd.f32 %v2026, %v2027
  %v2029 = vsel %vm918, %v1881, 0.0
  %v2030 = vsel %vm918, %v1889, 0.0
  %v2031 = vadd.f32 %v2029, %v2030
  %v2032 = vsel %vm918, %v1897, 0.0
  %v2033 = vadd.f32 %v2031, %v2032
  %v2034 = vsel %vm918, %v1905, 0.0
  %v2035 = vadd.f32 %v2033, %v2034
  %v2036 = vsel %vm918, %v1913, 0.0
  %v2037 = vadd.f32 %v2035, %v2036
  %v2038 = vsel %vm918, %v1921, 0.0
  %v2039 = vadd.f32 %v2037, %v2038
  %v2040 = vsel %vm918, %v1929, 0.0
  %v2041 = vadd.f32 %v2039, %v2040
  %v2042 = vsel %vm918, %v1937, 0.0
  %v2043 = vadd.f32 %v2041, %v2042
  %v2044 = vsel %vm918, %v1882, 0.0
  %v2045 = vsel %vm918, %v1890, 0.0
  %v2046 = vadd.f32 %v2044, %v2045
  %v2047 = vsel %vm918, %v1898, 0.0
  %v2048 = vadd.f32 %v2046, %v2047
  %v2049 = vsel %vm918, %v1906, 0.0
  %v2050 = vadd.f32 %v2048, %v2049
  %v2051 = vsel %vm918, %v1914, 0.0
  %v2052 = vadd.f32 %v2050, %v2051
  %v2053 = vsel %vm918, %v1922, 0.0
  %v2054 = vadd.f32 %v2052, %v2053
  %v2055 = vsel %vm918, %v1930, 0.0
  %v2056 = vadd.f32 %v2054, %v2055
  %v2057 = vsel %vm918, %v1938, 0.0
  %v2058 = vadd.f32 %v2056, %v2057
  %v2059 = vadd.f32 %v1953, 0.0
  %v2060 = vadd.f32 %v1968, 0.0
  %v2061 = vadd.f32 %v1983, 0.0
  %v2062 = vadd.f32 %v1998, 0.0
  %v2063 = vadd.f32 %v2013, 0.0
  %v2064 = vadd.f32 %v2028, 0.0
  %v2065 = vadd.f32 %v2043, 0.0
  %v2066 = vadd.f32 %v2058, 0.0
  %v2067 = vmul.f32 %v2059, %v2059
  %v2068 = vmul.f32 %v2060, %v2060
  %v2069 = vmul.f32 %v2061, %v2061
  %v2070 = vmul.f32 %v2062, %v2062
  %v2071 = vmul.f32 %v2063, %v2063
  %v2072 = vmul.f32 %v2064, %v2064
  %v2073 = vmul.f32 %v2065, %v2065
  %v2074 = vmul.f32 %v2066, %v2066
  %v2075 = vsel %vm918, %v2067, 0.0
  %v2076 = vsel %vm918, %v2068, 0.0
  %v2077 = vadd.f32 %v2075, %v2076
  %v2078 = vrot.slane %v2077, 4
  %v2079 = vadd.f32 %v2077, %v2078
  %v2080 = vrot.slane %v2079, 2
  %v2081 = vadd.f32 %v2079, %v2080
  %v2082 = vrot.slane %v2081, 1
  %v2083 = vadd.f32 %v2081, %v2082
  %v2084 = vsel %vm918, %v2069, 0.0
  %v2085 = vsel %vm918, %v2070, 0.0
  %v2086 = vadd.f32 %v2084, %v2085
  %v2087 = vrot.slane %v2086, 4
  %v2088 = vadd.f32 %v2086, %v2087
  %v2089 = vrot.slane %v2088, 2
  %v2090 = vadd.f32 %v2088, %v2089
  %v2091 = vrot.slane %v2090, 1
  %v2092 = vadd.f32 %v2090, %v2091
  %v2093 = vsel %vm918, %v2071, 0.0
  %v2094 = vsel %vm918, %v2072, 0.0
  %v2095 = vadd.f32 %v2093, %v2094
  %v2096 = vrot.slane %v2095, 4
  %v2097 = vadd.f32 %v2095, %v2096
  %v2098 = vrot.slane %v2097, 2
  %v2099 = vadd.f32 %v2097, %v2098
  %v2100 = vrot.slane %v2099, 1
  %v2101 = vadd.f32 %v2099, %v2100
  %v2102 = vsel %vm918, %v2073, 0.0
  %v2103 = vsel %vm918, %v2074, 0.0
  %v2104 = vadd.f32 %v2102, %v2103
  %v2105 = vrot.slane %v2104, 4
  %v2106 = vadd.f32 %v2104, %v2105
  %v2107 = vrot.slane %v2106, 2
  %v2108 = vadd.f32 %v2106, %v2107
  %v2109 = vrot.slane %v2108, 1
  %v2110 = vadd.f32 %v2108, %v2109
  %v2111 = vadd.f32 %v2083, 1.0
  %v2112 = vadd.f32 %v2092, 1.0
  %v2113 = vadd.f32 %v2101, 1.0
  %v2114 = vadd.f32 %v2110, 1.0
  %v2115 = vrcp.pop %v2111
  %v2116 = vmul.f32 %v2111, %v2115
  %v2117 = vsub.f32 1.0, %v2116
  %v2118 = vmul.f32 %v2115, %v2117
  %v2119 = vadd.f32 %v2115, %v2118
  %vm2120 = vweird.f32 %v2111
  %vm2121 = vweird.f32 %v2115
  %vm2122 = vmor %vm2120, %vm2121
  %v2123 = vsel %vm2122, %v2115, %v2119
  %v2124 = vand.u32 2147483647, %v2111
  %vm2125 = vcmp.eq.f32.partialorder %v2124, 8.507059e+37
  %v2126 = vand.u32 %v2111, 2147483648
  %v2127 = vor.u32 1.1754944e-38, %v2126
  %v2128 = vsel %vm2125, %v2127, %v2123
  %v2129 = vmul.f32 %v2083, %v2128
  %v2130 = vrcp.pop %v2112
  %v2131 = vmul.f32 %v2112, %v2130
  %v2132 = vsub.f32 1.0, %v2131
  %v2133 = vmul.f32 %v2130, %v2132
  %v2134 = vadd.f32 %v2130, %v2133
  %vm2135 = vweird.f32 %v2112
  %vm2136 = vweird.f32 %v2130
  %vm2137 = vmor %vm2135, %vm2136
  %v2138 = vsel %vm2137, %v2130, %v2134
  %v2139 = vand.u32 2147483647, %v2112
  %vm2140 = vcmp.eq.f32.partialorder %v2139, 8.507059e+37
  %v2141 = vand.u32 %v2112, 2147483648
  %v2142 = vor.u32 1.1754944e-38, %v2141
  %v2143 = vsel %vm2140, %v2142, %v2138
  %v2144 = vmul.f32 %v2092, %v2143
  %v2145 = vrcp.pop %v2113
  %v2146 = vmul.f32 %v2113, %v2145
  %v2147 = vsub.f32 1.0, %v2146
  %v2148 = vmul.f32 %v2145, %v2147
  %v2149 = vadd.f32 %v2145, %v2148
  %vm2150 = vweird.f32 %v2113
  %vm2151 = vweird.f32 %v2145
  %vm2152 = vmor %vm2150, %vm2151
  %v2153 = vsel %vm2152, %v2145, %v2149
  %v2154 = vand.u32 2147483647, %v2113
  %vm2155 = vcmp.eq.f32.partialorder %v2154, 8.507059e+37
  %v2156 = vand.u32 %v2113, 2147483648
  %v2157 = vor.u32 1.1754944e-38, %v2156
  %v2158 = vsel %vm2155, %v2157, %v2153
  %v2159 = vmul.f32 %v2101, %v2158
  %v2160 = vrcp.pop %v2114
  %v2161 = vmul.f32 %v2114, %v2160
  %v2162 = vsub.f32 1.0, %v2161
  %v2163 = vmul.f32 %v2160, %v2162
  %v2164 = vadd.f32 %v2160, %v2163
  %vm2165 = vweird.f32 %v2114
  %vm2166 = vweird.f32 %v2160
  %vm2167 = vmor %vm2165, %vm2166
  %v2168 = vsel %vm2167, %v2160, %v2164
  %v2169 = vand.u32 2147483647, %v2114
  %vm2170 = vcmp.eq.f32.partialorder %v2169, 8.507059e+37
  %v2171 = vand.u32 %v2114, 2147483648
  %v2172 = vor.u32 1.1754944e-38, %v2171
  %v2173 = vsel %vm2170, %v2172, %v2168
  %v2174 = vmul.f32 %v2110, %v2173
  %v2175 = vmul.f32 %v2129, %v2059
  %v2176 = vmul.f32 %v2129, %v2060
  %v2177 = vmul.f32 %v2144, %v2061
  %v2178 = vmul.f32 %v2144, %v2062
  %v2179 = vmul.f32 %v2159, %v2063
  %v2180 = vmul.f32 %v2159, %v2064
  %v2181 = vmul.f32 %v2174, %v2065
  %v2182 = vmul.f32 %v2174, %v2066
  %v2183 = vrsqrt.pop %v2083
  %v2184 = vmul.f32 %v2183, %v2083
  %v2185 = vmul.f32 %v2184, %v2183
  %v2186 = vmul.f32 0.5, %v2185
  %v2187 = vsub.f32 1.5, %v2186
  %v2188 = vmul.f32 %v2183, %v2187
  %v2189 = vmul.f32 %v2083, %v2188
  %vm2190 = vcmp.eq.f32.partialorder %v2083, inf
  %v2191 = vsel %vm2190, %v2083, %v2189
  %vm2192 = vcmp.eq.f32.partialorder %v2083, 0.0
  %v2193 = vand.u32 %v2083, 2147483648
  %v2194 = vsel %vm2192, %v2193, %v2191
  %v2195 = vrsqrt.pop %v2092
  %v2196 = vmul.f32 %v2195, %v2092
  %v2197 = vmul.f32 %v2196, %v2195
  %v2198 = vmul.f32 0.5, %v2197
  %v2199 = vsub.f32 1.5, %v2198
  %v2200 = vmul.f32 %v2195, %v2199
  %v2201 = vmul.f32 %v2092, %v2200
  %vm2202 = vcmp.eq.f32.partialorder %v2092, inf
  %v2203 = vsel %vm2202, %v2092, %v2201
  %vm2204 = vcmp.eq.f32.partialorder %v2092, 0.0
  %v2205 = vand.u32 %v2092, 2147483648
  %v2206 = vsel %vm2204, %v2205, %v2203
  %v2207 = vrsqrt.pop %v2101
  %v2208 = vmul.f32 %v2207, %v2101
  %v2209 = vmul.f32 %v2208, %v2207
  %v2210 = vmul.f32 0.5, %v2209
  %v2211 = vsub.f32 1.5, %v2210
  %v2212 = vmul.f32 %v2207, %v2211
  %v2213 = vmul.f32 %v2101, %v2212
  %vm2214 = vcmp.eq.f32.partialorder %v2101, inf
  %v2215 = vsel %vm2214, %v2101, %v2213
  %vm2216 = vcmp.eq.f32.partialorder %v2101, 0.0
  %v2217 = vand.u32 %v2101, 2147483648
  %v2218 = vsel %vm2216, %v2217, %v2215
  %v2219 = vrsqrt.pop %v2110
  %v2220 = vmul.f32 %v2219, %v2110
  %v2221 = vmul.f32 %v2220, %v2219
  %v2222 = vmul.f32 0.5, %v2221
  %v2223 = vsub.f32 1.5, %v2222
  %v2224 = vmul.f32 %v2219, %v2223
  %v2225 = vmul.f32 %v2110, %v2224
  %vm2226 = vcmp.eq.f32.partialorder %v2110, inf
  %v2227 = vsel %vm2226, %v2110, %v2225
  %vm2228 = vcmp.eq.f32.partialorder %v2110, 0.0
  %v2229 = vand.u32 %v2110, 2147483648
  %v2230 = vsel %vm2228, %v2229, %v2227
  %v2231 = vadd.f32 %v2194, 1e-08
  %v2232 = vadd.f32 %v2206, 1e-08
  %v2233 = vadd.f32 %v2218, 1e-08
  %v2234 = vadd.f32 %v2230, 1e-08
  %v2235 = vrcp.pop %v2231
  %v2236 = vmul.f32 %v2231, %v2235
  %v2237 = vsub.f32 1.0, %v2236
  %v2238 = vmul.f32 %v2235, %v2237
  %v2239 = vadd.f32 %v2235, %v2238
  %vm2240 = vweird.f32 %v2231
  %vm2241 = vweird.f32 %v2235
  %vm2242 = vmor %vm2240, %vm2241
  %v2243 = vsel %vm2242, %v2235, %v2239
  %v2244 = vand.u32 2147483647, %v2231
  %vm2245 = vcmp.eq.f32.partialorder %v2244, 8.507059e+37
  %v2246 = vand.u32 %v2231, 2147483648
  %v2247 = vor.u32 1.1754944e-38, %v2246
  %v2248 = vsel %vm2245, %v2247, %v2243
  %v2249 = vmul.f32 %v2175, %v2248
  %v2250 = vmul.f32 %v2176, %v2248
  %v2251 = vrcp.pop %v2232
  %v2252 = vmul.f32 %v2232, %v2251
  %v2253 = vsub.f32 1.0, %v2252
  %v2254 = vmul.f32 %v2251, %v2253
  %v2255 = vadd.f32 %v2251, %v2254
  %vm2256 = vweird.f32 %v2232
  %vm2257 = vweird.f32 %v2251
  %vm2258 = vmor %vm2256, %vm2257
  %v2259 = vsel %vm2258, %v2251, %v2255
  %v2260 = vand.u32 2147483647, %v2232
  %vm2261 = vcmp.eq.f32.partialorder %v2260, 8.507059e+37
  %v2262 = vand.u32 %v2232, 2147483648
  %v2263 = vor.u32 1.1754944e-38, %v2262
  %v2264 = vsel %vm2261, %v2263, %v2259
  %v2265 = vmul.f32 %v2177, %v2264
  %v2266 = vmul.f32 %v2178, %v2264
  %v2267 = vrcp.pop %v2233
  %v2268 = vmul.f32 %v2233, %v2267
  %v2269 = vsub.f32 1.0, %v2268
  %v2270 = vmul.f32 %v2267, %v2269
  %v2271 = vadd.f32 %v2267, %v2270
  %vm2272 = vweird.f32 %v2233
  %vm2273 = vweird.f32 %v2267
  %vm2274 = vmor %vm2272, %vm2273
  %v2275 = vsel %vm2274, %v2267, %v2271
  %v2276 = vand.u32 2147483647, %v2233
  %vm2277 = vcmp.eq.f32.partialorder %v2276, 8.507059e+37
  %v2278 = vand.u32 %v2233, 2147483648
  %v2279 = vor.u32 1.1754944e-38, %v2278
  %v2280 = vsel %vm2277, %v2279, %v2275
  %v2281 = vmul.f32 %v2179, %v2280
  %v2282 = vmul.f32 %v2180, %v2280
  %v2283 = vrcp.pop %v2234
  %v2284 = vmul.f32 %v2234, %v2283
  %v2285 = vsub.f32 1.0, %v2284
  %v2286 = vmul.f32 %v2283, %v2285
  %v2287 = vadd.f32 %v2283, %v2286
  %vm2288 = vweird.f32 %v2234
  %vm2289 = vweird.f32 %v2283
  %vm2290 = vmor %vm2288, %vm2289
  %v2291 = vsel %vm2290, %v2283, %v2287
  %v2292 = vand.u32 2147483647, %v2234
  %vm2293 = vcmp.eq.f32.partialorder %v2292, 8.507059e+37
  %v2294 = vand.u32 %v2234, 2147483648
  %v2295 = vor.u32 1.1754944e-38, %v2294
  %v2296 = vsel %vm2293, %v2295, %v2291
  %v2297 = vmul.f32 %v2181, %v2296
  %v2298 = vmul.f32 %v2182, %v2296
  %v2299 = vmul.f32 %v102, %v2249
  %v2300 = vmul.f32 %v105, %v2250
  %v2301 = vmul.f32 %v108, %v2265
  %v2302 = vmul.f32 %v111, %v2266
  %v2303 = vmul.f32 %v114, %v2281
  %v2304 = vmul.f32 %v117, %v2282
  %v2305 = vmul.f32 %v120, %v2297
  %v2306 = vmul.f32 %v123, %v2298
  %v2307 = vmul.f32 %v199, %v2249
  %v2308 = vmul.f32 %v202, %v2250
  %v2309 = vmul.f32 %v205, %v2265
  %v2310 = vmul.f32 %v208, %v2266
  %v2311 = vmul.f32 %v211, %v2281
  %v2312 = vmul.f32 %v214, %v2282
  %v2313 = vmul.f32 %v217, %v2297
  %v2314 = vmul.f32 %v220, %v2298
  %v2315 = vmul.f32 %v296, %v2249
  %v2316 = vmul.f32 %v299, %v2250
  %v2317 = vmul.f32 %v302, %v2265
  %v2318 = vmul.f32 %v305, %v2266
  %v2319 = vmul.f32 %v308, %v2281
  %v2320 = vmul.f32 %v311, %v2282
  %v2321 = vmul.f32 %v314, %v2297
  %v2322 = vmul.f32 %v317, %v2298
  %v2323 = vmul.f32 %v393, %v2249
  %v2324 = vmul.f32 %v396, %v2250
  %v2325 = vmul.f32 %v399, %v2265
  %v2326 = vmul.f32 %v402, %v2266
  %v2327 = vmul.f32 %v405, %v2281
  %v2328 = vmul.f32 %v408, %v2282
  %v2329 = vmul.f32 %v411, %v2297
  %v2330 = vmul.f32 %v414, %v2298
  %v2331 = vmul.f32 %v490, %v2249
  %v2332 = vmul.f32 %v493, %v2250
  %v2333 = vmul.f32 %v496, %v2265
  %v2334 = vmul.f32 %v499, %v2266
  %v2335 = vmul.f32 %v502, %v2281
  %v2336 = vmul.f32 %v505, %v2282
  %v2337 = vmul.f32 %v508, %v2297
  %v2338 = vmul.f32 %v511, %v2298
  %v2339 = vmul.f32 %v587, %v2249
  %v2340 = vmul.f32 %v590, %v2250
  %v2341 = vmul.f32 %v593, %v2265
  %v2342 = vmul.f32 %v596, %v2266
  %v2343 = vmul.f32 %v599, %v2281
  %v2344 = vmul.f32 %v602, %v2282
  %v2345 = vmul.f32 %v605, %v2297
  %v2346 = vmul.f32 %v608, %v2298
  %v2347 = vmul.f32 %v684, %v2249
  %v2348 = vmul.f32 %v687, %v2250
  %v2349 = vmul.f32 %v690, %v2265
  %v2350 = vmul.f32 %v693, %v2266
  %v2351 = vmul.f32 %v696, %v2281
  %v2352 = vmul.f32 %v699, %v2282
  %v2353 = vmul.f32 %v702, %v2297
  %v2354 = vmul.f32 %v705, %v2298
  %v2355 = vmul.f32 %v781, %v2249
  %v2356 = vmul.f32 %v784, %v2250
  %v2357 = vmul.f32 %v787, %v2265
  %v2358 = vmul.f32 %v790, %v2266
  %v2359 = vmul.f32 %v793, %v2281
  %v2360 = vmul.f32 %v796, %v2282
  %v2361 = vmul.f32 %v799, %v2297
  %v2362 = vmul.f32 %v802, %v2298
  %v2363 = vsel %vm918, %v2299, 0.0
  %v2364 = vsel %vm918, %v2300, 0.0
  %v2365 = vadd.f32 %v2363, %v2364
  %v2366 = vrot.slane %v2365, 4
  %v2367 = vadd.f32 %v2365, %v2366
  %v2368 = vrot.slane %v2367, 2
  %v2369 = vadd.f32 %v2367, %v2368
  %v2370 = vrot.slane %v2369, 1
  %v2371 = vadd.f32 %v2369, %v2370
  %v2372 = vsel %vm918, %v2301, 0.0
  %v2373 = vsel %vm918, %v2302, 0.0
  %v2374 = vadd.f32 %v2372, %v2373
  %v2375 = vrot.slane %v2374, 4
  %v2376 = vadd.f32 %v2374, %v2375
  %v2377 = vrot.slane %v2376, 2
  %v2378 = vadd.f32 %v2376, %v2377
  %v2379 = vrot.slane %v2378, 1
  %v2380 = vadd.f32 %v2378, %v2379
  %v2381 = vsel %vm918, %v2303, 0.0
  %v2382 = vsel %vm918, %v2304, 0.0
  %v2383 = vadd.f32 %v2381, %v2382
  %v2384 = vrot.slane %v2383, 4
  %v2385 = vadd.f32 %v2383, %v2384
  %v2386 = vrot.slane %v2385, 2
  %v2387 = vadd.f32 %v2385, %v2386
  %v2388 = vrot.slane %v2387, 1
  %v2389 = vadd.f32 %v2387, %v2388
  %v2390 = vsel %vm918, %v2305, 0.0
  %v2391 = vsel %vm918, %v2306, 0.0
  %v2392 = vadd.f32 %v2390, %v2391
  %v2393 = vrot.slane %v2392, 4
  %v2394 = vadd.f32 %v2392, %v2393
  %v2395 = vrot.slane %v2394, 2
  %v2396 = vadd.f32 %v2394, %v2395
  %v2397 = vrot.slane %v2396, 1
  %v2398 = vadd.f32 %v2396, %v2397
  %v2399 = vsel %vm918, %v2307, 0.0
  %v2400 = vsel %vm918, %v2308, 0.0
  %v2401 = vadd.f32 %v2399, %v2400
  %v2402 = vrot.slane %v2401, 4
  %v2403 = vadd.f32 %v2401, %v2402
  %v2404 = vrot.slane %v2403, 2
  %v2405 = vadd.f32 %v2403, %v2404
  %v2406 = vrot.slane %v2405, 1
  %v2407 = vadd.f32 %v2405, %v2406
  %v2408 = vsel %vm918, %v2309, 0.0
  %v2409 = vsel %vm918, %v2310, 0.0
  %v2410 = vadd.f32 %v2408, %v2409
  %v2411 = vrot.slane %v2410, 4
  %v2412 = vadd.f32 %v2410, %v2411
  %v2413 = vrot.slane %v2412, 2
  %v2414 = vadd.f32 %v2412, %v2413
  %v2415 = vrot.slane %v2414, 1
  %v2416 = vadd.f32 %v2414, %v2415
  %v2417 = vsel %vm918, %v2311, 0.0
  %v2418 = vsel %vm918, %v2312, 0.0
  %v2419 = vadd.f32 %v2417, %v2418
  %v2420 = vrot.slane %v2419, 4
  %v2421 = vadd.f32 %v2419, %v2420
  %v2422 = vrot.slane %v2421, 2
  %v2423 = vadd.f32 %v2421, %v2422
  %v2424 = vrot.slane %v2423, 1
  %v2425 = vadd.f32 %v2423, %v2424
  %v2426 = vsel %vm918, %v2313, 0.0
  %v2427 = vsel %vm918, %v2314, 0.0
  %v2428 = vadd.f32 %v2426, %v2427
  %v2429 = vrot.slane %v2428, 4
  %v2430 = vadd.f32 %v2428, %v2429
  %v2431 = vrot.slane %v2430, 2
  %v2432 = vadd.f32 %v2430, %v2431
  %v2433 = vrot.slane %v2432, 1
  %v2434 = vadd.f32 %v2432, %v2433
  %v2435 = vsel %vm918, %v2315, 0.0
  %v2436 = vsel %vm918, %v2316, 0.0
  %v2437 = vadd.f32 %v2435, %v2436
  %v2438 = vrot.slane %v2437, 4
  %v2439 = vadd.f32 %v2437, %v2438
  %v2440 = vrot.slane %v2439, 2
  %v2441 = vadd.f32 %v2439, %v2440
  %v2442 = vrot.slane %v2441, 1
  %v2443 = vadd.f32 %v2441, %v2442
  %v2444 = vsel %vm918, %v2317, 0.0
  %v2445 = vsel %vm918, %v2318, 0.0
  %v2446 = vadd.f32 %v2444, %v2445
  %v2447 = vrot.slane %v2446, 4
  %v2448 = vadd.f32 %v2446, %v2447
  %v2449 = vrot.slane %v2448, 2
  %v2450 = vadd.f32 %v2448, %v2449
  %v2451 = vrot.slane %v2450, 1
  %v2452 = vadd.f32 %v2450, %v2451
  %v2453 = vsel %vm918, %v2319, 0.0
  %v2454 = vsel %vm918, %v2320, 0.0
  %v2455 = vadd.f32 %v2453, %v2454
  %v2456 = vrot.slane %v2455, 4
  %v2457 = vadd.f32 %v2455, %v2456
  %v2458 = vrot.slane %v2457, 2
  %v2459 = vadd.f32 %v2457, %v2458
  %v2460 = vrot.slane %v2459, 1
  %v2461 = vadd.f32 %v2459, %v2460
  %v2462 = vsel %vm918, %v2321, 0.0
  %v2463 = vsel %vm918, %v2322, 0.0
  %v2464 = vadd.f32 %v2462, %v2463
  %v2465 = vrot.slane %v2464, 4
  %v2466 = vadd.f32 %v2464, %v2465
  %v2467 = vrot.slane %v2466, 2
  %v2468 = vadd.f32 %v2466, %v2467
  %v2469 = vrot.slane %v2468, 1
  %v2470 = vadd.f32 %v2468, %v2469
  %v2471 = vsel %vm918, %v2323, 0.0
  %v2472 = vsel %vm918, %v2324, 0.0
  %v2473 = vadd.f32 %v2471, %v2472
  %v2474 = vrot.slane %v2473, 4
  %v2475 = vadd.f32 %v2473, %v2474
  %v2476 = vrot.slane %v2475, 2
  %v2477 = vadd.f32 %v2475, %v2476
  %v2478 = vrot.slane %v2477, 1
  %v2479 = vadd.f32 %v2477, %v2478
  %v2480 = vsel %vm918, %v2325, 0.0
  %v2481 = vsel %vm918, %v2326, 0.0
  %v2482 = vadd.f32 %v2480, %v2481
  %v2483 = vrot.slane %v2482, 4
  %v2484 = vadd.f32 %v2482, %v2483
  %v2485 = vrot.slane %v2484, 2
  %v2486 = vadd.f32 %v2484, %v2485
  %v2487 = vrot.slane %v2486, 1
  %v2488 = vadd.f32 %v2486, %v2487
  %v2489 = vsel %vm918, %v2327, 0.0
  %v2490 = vsel %vm918, %v2328, 0.0
  %v2491 = vadd.f32 %v2489, %v2490
  %v2492 = vrot.slane %v2491, 4
  %v2493 = vadd.f32 %v2491, %v2492
  %v2494 = vrot.slane %v2493, 2
  %v2495 = vadd.f32 %v2493, %v2494
  %v2496 = vrot.slane %v2495, 1
  %v2497 = vadd.f32 %v2495, %v2496
  %v2498 = vsel %vm918, %v2329, 0.0
  %v2499 = vsel %vm918, %v2330, 0.0
  %v2500 = vadd.f32 %v2498, %v2499
  %v2501 = vrot.slane %v2500, 4
  %v2502 = vadd.f32 %v2500, %v2501
  %v2503 = vrot.slane %v2502, 2
  %v2504 = vadd.f32 %v2502, %v2503
  %v2505 = vrot.slane %v2504, 1
  %v2506 = vadd.f32 %v2504, %v2505
  %v2507 = vsel %vm918, %v2331, 0.0
  %v2508 = vsel %vm918, %v2332, 0.0
  %v2509 = vadd.f32 %v2507, %v2508
  %v2510 = vrot.slane %v2509, 4
  %v2511 = vadd.f32 %v2509, %v2510
  %v2512 = vrot.slane %v2511, 2
  %v2513 = vadd.f32 %v2511, %v2512
  %v2514 = vrot.slane %v2513, 1
  %v2515 = vadd.f32 %v2513, %v2514
  %v2516 = vsel %vm918, %v2333, 0.0
  %v2517 = vsel %vm918, %v2334, 0.0
  %v2518 = vadd.f32 %v2516, %v2517
  %v2519 = vrot.slane %v2518, 4
  %v2520 = vadd.f32 %v2518, %v2519
  %v2521 = vrot.slane %v2520, 2
  %v2522 = vadd.f32 %v2520, %v2521
  %v2523 = vrot.slane %v2522, 1
  %v2524 = vadd.f32 %v2522, %v2523
  %v2525 = vsel %vm918, %v2335, 0.0
  %v2526 = vsel %vm918, %v2336, 0.0
  %v2527 = vadd.f32 %v2525, %v2526
  %v2528 = vrot.slane %v2527, 4
  %v2529 = vadd.f32 %v2527, %v2528
  %v2530 = vrot.slane %v2529, 2
  %v2531 = vadd.f32 %v2529, %v2530
  %v2532 = vrot.slane %v2531, 1
  %v2533 = vadd.f32 %v2531, %v2532
  %v2534 = vsel %vm918, %v2337, 0.0
  %v2535 = vsel %vm918, %v2338, 0.0
  %v2536 = vadd.f32 %v2534, %v2535
  %v2537 = vrot.slane %v2536, 4
  %v2538 = vadd.f32 %v2536, %v2537
  %v2539 = vrot.slane %v2538, 2
  %v2540 = vadd.f32 %v2538, %v2539
  %v2541 = vrot.slane %v2540, 1
  %v2542 = vadd.f32 %v2540, %v2541
  %v2543 = vsel %vm918, %v2339, 0.0
  %v2544 = vsel %vm918, %v2340, 0.0
  %v2545 = vadd.f32 %v2543, %v2544
  %v2546 = vrot.slane %v2545, 4
  %v2547 = vadd.f32 %v2545, %v2546
  %v2548 = vrot.slane %v2547, 2
  %v2549 = vadd.f32 %v2547, %v2548
  %v2550 = vrot.slane %v2549, 1
  %v2551 = vadd.f32 %v2549, %v2550
  %v2552 = vsel %vm918, %v2341, 0.0
  %v2553 = vsel %vm918, %v2342, 0.0
  %v2554 = vadd.f32 %v2552, %v2553
  %v2555 = vrot.slane %v2554, 4
  %v2556 = vadd.f32 %v2554, %v2555
  %v2557 = vrot.slane %v2556, 2
  %v2558 = vadd.f32 %v2556, %v2557
  %v2559 = vrot.slane %v2558, 1
  %v2560 = vadd.f32 %v2558, %v2559
  %v2561 = vsel %vm918, %v2343, 0.0
  %v2562 = vsel %vm918, %v2344, 0.0
  %v2563 = vadd.f32 %v2561, %v2562
  %v2564 = vrot.slane %v2563, 4
  %v2565 = vadd.f32 %v2563, %v2564
  %v2566 = vrot.slane %v2565, 2
  %v2567 = vadd.f32 %v2565, %v2566
  %v2568 = vrot.slane %v2567, 1
  %v2569 = vadd.f32 %v2567, %v2568
  %v2570 = vsel %vm918, %v2345, 0.0
  %v2571 = vsel %vm918, %v2346, 0.0
  %v2572 = vadd.f32 %v2570, %v2571
  %v2573 = vrot.slane %v2572, 4
  %v2574 = vadd.f32 %v2572, %v2573
  %v2575 = vrot.slane %v2574, 2
  %v2576 = vadd.f32 %v2574, %v2575
  %v2577 = vrot.slane %v2576, 1
  %v2578 = vadd.f32 %v2576, %v2577
  %v2579 = vsel %vm918, %v2347, 0.0
  %v2580 = vsel %vm918, %v2348, 0.0
  %v2581 = vadd.f32 %v2579, %v2580
  %v2582 = vrot.slane %v2581, 4
  %v2583 = vadd.f32 %v2581, %v2582
  %v2584 = vrot.slane %v2583, 2
  %v2585 = vadd.f32 %v2583, %v2584
  %v2586 = vrot.slane %v2585, 1
  %v2587 = vadd.f32 %v2585, %v2586
  %v2588 = vsel %vm918, %v2349, 0.0
  %v2589 = vsel %vm918, %v2350, 0.0
  %v2590 = vadd.f32 %v2588, %v2589
  %v2591 = vrot.slane %v2590, 4
  %v2592 = vadd.f32 %v2590, %v2591
  %v2593 = vrot.slane %v2592, 2
  %v2594 = vadd.f32 %v2592, %v2593
  %v2595 = vrot.slane %v2594, 1
  %v2596 = vadd.f32 %v2594, %v2595
  %v2597 = vsel %vm918, %v2351, 0.0
  %v2598 = vsel %vm918, %v2352, 0.0
  %v2599 = vadd.f32 %v2597, %v2598
  %v2600 = vrot.slane %v2599, 4
  %v2601 = vadd.f32 %v2599, %v2600
  %v2602 = vrot.slane %v2601, 2
  %v2603 = vadd.f32 %v2601, %v2602
  %v2604 = vrot.slane %v2603, 1
  %v2605 = vadd.f32 %v2603, %v2604
  %v2606 = vsel %vm918, %v2353, 0.0
  %v2607 = vsel %vm918, %v2354, 0.0
  %v2608 = vadd.f32 %v2606, %v2607
  %v2609 = vrot.slane %v2608, 4
  %v2610 = vadd.f32 %v2608, %v2609
  %v2611 = vrot.slane %v2610, 2
  %v2612 = vadd.f32 %v2610, %v2611
  %v2613 = vrot.slane %v2612, 1
  %v2614 = vadd.f32 %v2612, %v2613
  %v2615 = vsel %vm918, %v2355, 0.0
  %v2616 = vsel %vm918, %v2356, 0.0
  %v2617 = vadd.f32 %v2615, %v2616
  %v2618 = vrot.slane %v2617, 4
  %v2619 = vadd.f32 %v2617, %v2618
  %v2620 = vrot.slane %v2619, 2
  %v2621 = vadd.f32 %v2619, %v2620
  %v2622 = vrot.slane %v2621, 1
  %v2623 = vadd.f32 %v2621, %v2622
  %v2624 = vsel %vm918, %v2357, 0.0
  %v2625 = vsel %vm918, %v2358, 0.0
  %v2626 = vadd.f32 %v2624, %v2625
  %v2627 = vrot.slane %v2626, 4
  %v2628 = vadd.f32 %v2626, %v2627
  %v2629 = vrot.slane %v2628, 2
  %v2630 = vadd.f32 %v2628, %v2629
  %v2631 = vrot.slane %v2630, 1
  %v2632 = vadd.f32 %v2630, %v2631
  %v2633 = vsel %vm918, %v2359, 0.0
  %v2634 = vsel %vm918, %v2360, 0.0
  %v2635 = vadd.f32 %v2633, %v2634
  %v2636 = vrot.slane %v2635, 4
  %v2637 = vadd.f32 %v2635, %v2636
  %v2638 = vrot.slane %v2637, 2
  %v2639 = vadd.f32 %v2637, %v2638
  %v2640 = vrot.slane %v2639, 1
  %v2641 = vadd.f32 %v2639, %v2640
  %v2642 = vsel %vm918, %v2361, 0.0
  %v2643 = vsel %vm918, %v2362, 0.0
  %v2644 = vadd.f32 %v2642, %v2643
  %v2645 = vrot.slane %v2644, 4
  %v2646 = vadd.f32 %v2644, %v2645
  %v2647 = vrot.slane %v2646, 2
  %v2648 = vadd.f32 %v2646, %v2647
  %v2649 = vrot.slane %v2648, 1
  %v2650 = vadd.f32 %v2648, %v2649
  %v2651 = vadd.f32 %v1215, %v2371
  %v2652 = vadd.f32 %v1224, %v2380
  %v2653 = vadd.f32 %v1233, %v2389
  %v2654 = vadd.f32 %v1242, %v2398
  %v2655 = vadd.f32 %v1251, %v2407
  %v2656 = vadd.f32 %v1260, %v2416
  %v2657 = vadd.f32 %v1269, %v2425
  %v2658 = vadd.f32 %v1278, %v2434
  %v2659 = vadd.f32 %v1287, %v2443
  %v2660 = vadd.f32 %v1296, %v2452
  %v2661 = vadd.f32 %v1305, %v2461
  %v2662 = vadd.f32 %v1314, %v2470
  %v2663 = vadd.f32 %v1323, %v2479
  %v2664 = vadd.f32 %v1332, %v2488
  %v2665 = vadd.f32 %v1341, %v2497
  %v2666 = vadd.f32 %v1350, %v2506
  %v2667 = vadd.f32 %v1359, %v2515
  %v2668 = vadd.f32 %v1368, %v2524
  %v2669 = vadd.f32 %v1377, %v2533
  %v2670 = vadd.f32 %v1386, %v2542
  %v2671 = vadd.f32 %v1395, %v2551
  %v2672 = vadd.f32 %v1404, %v2560
  %v2673 = vadd.f32 %v1413, %v2569
  %v2674 = vadd.f32 %v1422, %v2578
  %v2675 = vadd.f32 %v1431, %v2587
  %v2676 = vadd.f32 %v1440, %v2596
  %v2677 = vadd.f32 %v1449, %v2605
  %v2678 = vadd.f32 %v1458, %v2614
  %v2679 = vadd.f32 %v1467, %v2623
  %v2680 = vadd.f32 %v1476, %v2632
  %v2681 = vadd.f32 %v1485, %v2641
  %v2682 = vadd.f32 %v1494, %v2650
  %v2683 = vsel %vm918, %v2651, -inf
  %v2684 = vsel %vm918, %v2652, -inf
  %v2685 = vmax.f32 %v2683, %v2684
  %v2686 = vsel %vm918, %v2653, -inf
  %v2687 = vmax.f32 %v2685, %v2686
  %v2688 = vsel %vm918, %v2654, -inf
  %v2689 = vmax.f32 %v2687, %v2688
  %v2690 = vsel %vm918, %v2655, -inf
  %v2691 = vsel %vm918, %v2656, -inf
  %v2692 = vmax.f32 %v2690, %v2691
  %v2693 = vsel %vm918, %v2657, -inf
  %v2694 = vmax.f32 %v2692, %v2693
  %v2695 = vsel %vm918, %v2658, -inf
  %v2696 = vmax.f32 %v2694, %v2695
  %v2697 = vsel %vm918, %v2659, -inf
  %v2698 = vsel %vm918, %v2660, -inf
  %v2699 = vmax.f32 %v2697, %v2698
  %v2700 = vsel %vm918, %v2661, -inf
  %v2701 = vmax.f32 %v2699, %v2700
  %v2702 = vsel %vm918, %v2662, -inf
  %v2703 = vmax.f32 %v2701, %v2702
  %v2704 = vsel %vm918, %v2663, -inf
  %v2705 = vsel %vm918, %v2664, -inf
  %v2706 = vmax.f32 %v2704, %v2705
  %v2707 = vsel %vm918, %v2665, -inf
  %v2708 = vmax.f32 %v2706, %v2707
  %v2709 = vsel %vm918, %v2666, -inf
  %v2710 = vmax.f32 %v2708, %v2709
  %v2711 = vsel %vm918, %v2667, -inf
  %v2712 = vsel %vm918, %v2668, -inf
  %v2713 = vmax.f32 %v2711, %v2712
  %v2714 = vsel %vm918, %v2669, -inf
  %v2715 = vmax.f32 %v2713, %v2714
  %v2716 = vsel %vm918, %v2670, -inf
  %v2717 = vmax.f32 %v2715, %v2716
  %v2718 = vsel %vm918, %v2671, -inf
  %v2719 = vsel %vm918, %v2672, -inf
  %v2720 = vmax.f32 %v2718, %v2719
  %v2721 = vsel %vm918, %v2673, -inf
  %v2722 = vmax.f32 %v2720, %v2721
  %v2723 = vsel %vm918, %v2674, -inf
  %v2724 = vmax.f32 %v2722, %v2723
  %v2725 = vsel %vm918, %v2675, -inf
  %v2726 = vsel %vm918, %v2676, -inf
  %v2727 = vmax.f32 %v2725, %v2726
  %v2728 = vsel %vm918, %v2677, -inf
  %v2729 = vmax.f32 %v2727, %v2728
  %v2730 = vsel %vm918, %v2678, -inf
  %v2731 = vmax.f32 %v2729, %v2730
  %v2732 = vsel %vm918, %v2679, -inf
  %v2733 = vsel %vm918, %v2680, -inf
  %v2734 = vmax.f32 %v2732, %v2733
  %v2735 = vsel %vm918, %v2681, -inf
  %v2736 = vmax.f32 %v2734, %v2735
  %v2737 = vsel %vm918, %v2682, -inf
  %v2738 = vmax.f32 %v2736, %v2737
  %v2739 = vsub.f32 %v2651, %v2689
  %v2740 = vsub.f32 %v2652, %v2689
  %v2741 = vsub.f32 %v2653, %v2689
  %v2742 = vsub.f32 %v2654, %v2689
  %v2743 = vsub.f32 %v2655, %v2696
  %v2744 = vsub.f32 %v2656, %v2696
  %v2745 = vsub.f32 %v2657, %v2696
  %v2746 = vsub.f32 %v2658, %v2696
  %v2747 = vsub.f32 %v2659, %v2703
  %v2748 = vsub.f32 %v2660, %v2703
  %v2749 = vsub.f32 %v2661, %v2703
  %v2750 = vsub.f32 %v2662, %v2703
  %v2751 = vsub.f32 %v2663, %v2710
  %v2752 = vsub.f32 %v2664, %v2710
  %v2753 = vsub.f32 %v2665, %v2710
  %v2754 = vsub.f32 %v2666, %v2710
  %v2755 = vsub.f32 %v2667, %v2717
  %v2756 = vsub.f32 %v2668, %v2717
  %v2757 = vsub.f32 %v2669, %v2717
  %v2758 = vsub.f32 %v2670, %v2717
  %v2759 = vsub.f32 %v2671, %v2724
  %v2760 = vsub.f32 %v2672, %v2724
  %v2761 = vsub.f32 %v2673, %v2724
  %v2762 = vsub.f32 %v2674, %v2724
  %v2763 = vsub.f32 %v2675, %v2731
  %v2764 = vsub.f32 %v2676, %v2731
  %v2765 = vsub.f32 %v2677, %v2731
  %v2766 = vsub.f32 %v2678, %v2731
  %v2767 = vsub.f32 %v2679, %v2738
  %v2768 = vsub.f32 %v2680, %v2738
  %v2769 = vsub.f32 %v2681, %v2738
  %v2770 = vsub.f32 %v2682, %v2738
  %v2771 = vmul.f32 %v2739, 1.442695
  %v2772 = vpow.pop %v2771
  %v2773 = vmul.f32 %v2740, 1.442695
  %v2774 = vpow.pop %v2773
  %v2775 = vmul.f32 %v2741, 1.442695
  %v2776 = vpow.pop %v2775
  %v2777 = vmul.f32 %v2742, 1.442695
  %v2778 = vpow.pop %v2777
  %v2779 = vmul.f32 %v2743, 1.442695
  %v2780 = vpow.pop %v2779
  %v2781 = vmul.f32 %v2744, 1.442695
  %v2782 = vpow.pop %v2781
  %v2783 = vmul.f32 %v2745, 1.442695
  %v2784 = vpow.pop %v2783
  %v2785 = vmul.f32 %v2746, 1.442695
  %v2786 = vpow.pop %v2785
  %v2787 = vmul.f32 %v2747, 1.442695
  %v2788 = vpow.pop %v2787
  %v2789 = vmul.f32 %v2748, 1.442695
  %v2790 = vpow.pop %v2789
  %v2791 = vmul.f32 %v2749, 1.442695
  %v2792 = vpow.pop %v2791
  %v2793 = vmul.f32 %v2750, 1.442695
  %v2794 = vpow.pop %v2793
  %v2795 = vmul.f32 %v2751, 1.442695
  %v2796 = vpow.pop %v2795
  %v2797 = vmul.f32 %v2752, 1.442695
  %v2798 = vpow.pop %v2797
  %v2799 = vmul.f32 %v2753, 1.442695
  %v2800 = vpow.pop %v2799
  %v2801 = vmul.f32 %v2754, 1.442695
  %v2802 = vpow.pop %v2801
  %v2803 = vmul.f32 %v2755, 1.442695
  %v2804 = vpow.pop %v2803
  %v2805 = vmul.f32 %v2756, 1.442695
  %v2806 = vpow.pop %v2805
  %v2807 = vmul.f32 %v2757, 1.442695
  %v2808 = vpow.pop %v2807
  %v2809 = vmul.f32 %v2758, 1.442695
  %v2810 = vpow.pop %v2809
  %v2811 = vmul.f32 %v2759, 1.442695
  %v2812 = vpow.pop %v2811
  %v2813 = vmul.f32 %v2760, 1.442695
  %v2814 = vpow.pop %v2813
  %v2815 = vmul.f32 %v2761, 1.442695
  %v2816 = vpow.pop %v2815
  %v2817 = vmul.f32 %v2762, 1.442695
  %v2818 = vpow.pop %v2817
  %v2819 = vmul.f32 %v2763, 1.442695
  %v2820 = vpow.pop %v2819
  %v2821 = vmul.f32 %v2764, 1.442695
  %v2822 = vpow.pop %v2821
  %v2823 = vmul.f32 %v2765, 1.442695
  %v2824 = vpow.pop %v2823
  %v2825 = vmul.f32 %v2766, 1.442695
  %v2826 = vpow.pop %v2825
  %v2827 = vmul.f32 %v2767, 1.442695
  %v2828 = vpow.pop %v2827
  %v2829 = vmul.f32 %v2768, 1.442695
  %v2830 = vpow.pop %v2829
  %v2831 = vmul.f32 %v2769, 1.442695
  %v2832 = vpow.pop %v2831
  %v2833 = vmul.f32 %v2770, 1.442695
  %v2834 = vpow.pop %v2833
  %v2867 = vrot.slane %v2774, 7
  %v2868 = vsel %vm1680, %v2867, %v2772
  %v2869 = vrot.slane %v2776, 6
  %v2870 = vsel %vm1683, %v2869, %v2868
  %v2871 = vrot.slane %v2778, 5
  %v2872 = vsel %vm1686, %v2871, %v2870
  %v2873 = vrot.slane %v2782, 7
  %v2874 = vsel %vm1680, %v2873, %v2780
  %v2875 = vrot.slane %v2784, 6
  %v2876 = vsel %vm1683, %v2875, %v2874
  %v2877 = vrot.slane %v2786, 5
  %v2878 = vsel %vm1686, %v2877, %v2876
  %v2879 = vrot.slane %v2790, 7
  %v2880 = vsel %vm1680, %v2879, %v2788
  %v2881 = vrot.slane %v2792, 6
  %v2882 = vsel %vm1683, %v2881, %v2880
  %v2883 = vrot.slane %v2794, 5
  %v2884 = vsel %vm1686, %v2883, %v2882
  %v2885 = vrot.slane %v2798, 7
  %v2886 = vsel %vm1680, %v2885, %v2796
  %v2887 = vrot.slane %v2800, 6
  %v2888 = vsel %vm1683, %v2887, %v2886
  %v2889 = vrot.slane %v2802, 5
  %v2890 = vsel %vm1686, %v2889, %v2888
  %v2891 = vrot.slane %v2806, 7
  %v2892 = vsel %vm1680, %v2891, %v2804
  %v2893 = vrot.slane %v2808, 6
  %v2894 = vsel %vm1683, %v2893, %v2892
  %v2895 = vrot.slane %v2810, 5
  %v2896 = vsel %vm1686, %v2895, %v2894
  %v2897 = vrot.slane %v2814, 7
  %v2898 = vsel %vm1680, %v2897, %v2812
  %v2899 = vrot.slane %v2816, 6
  %v2900 = vsel %vm1683, %v2899, %v2898
  %v2901 = vrot.slane %v2818, 5
  %v2902 = vsel %vm1686, %v2901, %v2900
  %v2903 = vrot.slane %v2822, 7
  %v2904 = vsel %vm1680, %v2903, %v2820
  %v2905 = vrot.slane %v2824, 6
  %v2906 = vsel %vm1683, %v2905, %v2904
  %v2907 = vrot.slane %v2826, 5
  %v2908 = vsel %vm1686, %v2907, %v2906
  %v2909 = vrot.slane %v2830, 7
  %v2910 = vsel %vm1680, %v2909, %v2828
  %v2911 = vrot.slane %v2832, 6
  %v2912 = vsel %vm1683, %v2911, %v2910
  %v2913 = vrot.slane %v2834, 5
  %v2914 = vsel %vm1686, %v2913, %v2912
  %v2923 = vsel %vm1738, %v2872, 0.0
  %v2924 = vrot.slane %v2923, 4
  %v2925 = vadd.f32 %v2923, %v2924
  %v2926 = vrot.slane %v2925, 2
  %v2927 = vadd.f32 %v2925, %v2926
  %v2928 = vrot.slane %v2927, 1
  %v2929 = vadd.f32 %v2927, %v2928
  %v2930 = vsel %vm1738, %v2878, 0.0
  %v2931 = vrot.slane %v2930, 4
  %v2932 = vadd.f32 %v2930, %v2931
  %v2933 = vrot.slane %v2932, 2
  %v2934 = vadd.f32 %v2932, %v2933
  %v2935 = vrot.slane %v2934, 1
  %v2936 = vadd.f32 %v2934, %v2935
  %v2937 = vsel %vm1738, %v2884, 0.0
  %v2938 = vrot.slane %v2937, 4
  %v2939 = vadd.f32 %v2937, %v2938
  %v2940 = vrot.slane %v2939, 2
  %v2941 = vadd.f32 %v2939, %v2940
  %v2942 = vrot.slane %v2941, 1
  %v2943 = vadd.f32 %v2941, %v2942
  %v2944 = vsel %vm1738, %v2890, 0.0
  %v2945 = vrot.slane %v2944, 4
  %v2946 = vadd.f32 %v2944, %v2945
  %v2947 = vrot.slane %v2946, 2
  %v2948 = vadd.f32 %v2946, %v2947
  %v2949 = vrot.slane %v2948, 1
  %v2950 = vadd.f32 %v2948, %v2949
  %v2951 = vsel %vm1738, %v2896, 0.0
  %v2952 = vrot.slane %v2951, 4
  %v2953 = vadd.f32 %v2951, %v2952
  %v2954 = vrot.slane %v2953, 2
  %v2955 = vadd.f32 %v2953, %v2954
  %v2956 = vrot.slane %v2955, 1
  %v2957 = vadd.f32 %v2955, %v2956
  %v2958 = vsel %vm1738, %v2902, 0.0
  %v2959 = vrot.slane %v2958, 4
  %v2960 = vadd.f32 %v2958, %v2959
  %v2961 = vrot.slane %v2960, 2
  %v2962 = vadd.f32 %v2960, %v2961
  %v2963 = vrot.slane %v2962, 1
  %v2964 = vadd.f32 %v2962, %v2963
  %v2965 = vsel %vm1738, %v2908, 0.0
  %v2966 = vrot.slane %v2965, 4
  %v2967 = vadd.f32 %v2965, %v2966
  %v2968 = vrot.slane %v2967, 2
  %v2969 = vadd.f32 %v2967, %v2968
  %v2970 = vrot.slane %v2969, 1
  %v2971 = vadd.f32 %v2969, %v2970
  %v2972 = vsel %vm1738, %v2914, 0.0
  %v2973 = vrot.slane %v2972, 4
  %v2974 = vadd.f32 %v2972, %v2973
  %v2975 = vrot.slane %v2974, 2
  %v2976 = vadd.f32 %v2974, %v2975
  %v2977 = vrot.slane %v2976, 1
  %v2978 = vadd.f32 %v2976, %v2977
  %v2979 = vperm.slane %v2929, 0
  %v2980 = vperm.slane %v2936, 0
  %v2981 = vperm.slane %v2943, 0
  %v2982 = vperm.slane %v2950, 0
  %v2983 = vperm.slane %v2957, 0
  %v2984 = vperm.slane %v2964, 0
  %v2985 = vperm.slane %v2971, 0
  %v2986 = vperm.slane %v2978, 0
  %v2987 = vrcp.pop %v2979
  %v2988 = vmul.f32 %v2979, %v2987
  %v2989 = vsub.f32 1.0, %v2988
  %v2990 = vmul.f32 %v2987, %v2989
  %v2991 = vadd.f32 %v2987, %v2990
  %vm2992 = vweird.f32 %v2979
  %vm2993 = vweird.f32 %v2987
  %vm2994 = vmor %vm2992, %vm2993
  %v2995 = vsel %vm2994, %v2987, %v2991
  %v2996 = vand.u32 2147483647, %v2979
  %vm2997 = vcmp.eq.f32.partialorder %v2996, 8.507059e+37
  %v2998 = vand.u32 %v2979, 2147483648
  %v2999 = vor.u32 1.1754944e-38, %v2998
  %v3000 = vsel %vm2997, %v2999, %v2995
  %v3001 = vmul.f32 %v2772, %v3000
  %v3002 = vmul.f32 %v2774, %v3000
  %v3003 = vmul.f32 %v2776, %v3000
  %v3004 = vmul.f32 %v2778, %v3000
  %v3005 = vrcp.pop %v2980
  %v3006 = vmul.f32 %v2980, %v3005
  %v3007 = vsub.f32 1.0, %v3006
  %v3008 = vmul.f32 %v3005, %v3007
  %v3009 = vadd.f32 %v3005, %v3008
  %vm3010 = vweird.f32 %v2980
  %vm3011 = vweird.f32 %v3005
  %vm3012 = vmor %vm3010, %vm3011
  %v3013 = vsel %vm3012, %v3005, %v3009
  %v3014 = vand.u32 2147483647, %v2980
  %vm3015 = vcmp.eq.f32.partialorder %v3014, 8.507059e+37
  %v3016 = vand.u32 %v2980, 2147483648
  %v3017 = vor.u32 1.1754944e-38, %v3016
  %v3018 = vsel %vm3015, %v3017, %v3013
  %v3019 = vmul.f32 %v2780, %v3018
  %v3020 = vmul.f32 %v2782, %v3018
  %v3021 = vmul.f32 %v2784, %v3018
  %v3022 = vmul.f32 %v2786, %v3018
  %v3023 = vrcp.pop %v2981
  %v3024 = vmul.f32 %v2981, %v3023
  %v3025 = vsub.f32 1.0, %v3024
  %v3026 = vmul.f32 %v3023, %v3025
  %v3027 = vadd.f32 %v3023, %v3026
  %vm3028 = vweird.f32 %v2981
  %vm3029 = vweird.f32 %v3023
  %vm3030 = vmor %vm3028, %vm3029
  %v3031 = vsel %vm3030, %v3023, %v3027
  %v3032 = vand.u32 2147483647, %v2981
  %vm3033 = vcmp.eq.f32.partialorder %v3032, 8.507059e+37
  %v3034 = vand.u32 %v2981, 2147483648
  %v3035 = vor.u32 1.1754944e-38, %v3034
  %v3036 = vsel %vm3033, %v3035, %v3031
  %v3037 = vmul.f32 %v2788, %v3036
  %v3038 = vmul.f32 %v2790, %v3036
  %v3039 = vmul.f32 %v2792, %v3036
  %v3040 = vmul.f32 %v2794, %v3036
  %v3041 = vrcp.pop %v2982
  %v3042 = vmul.f32 %v2982, %v3041
  %v3043 = vsub.f32 1.0, %v3042
  %v3044 = vmul.f32 %v3041, %v3043
  %v3045 = vadd.f32 %v3041, %v3044
  %vm3046 = vweird.f32 %v2982
  %vm3047 = vweird.f32 %v3041
  %vm3048 = vmor %vm3046, %vm3047
  %v3049 = vsel %vm3048, %v3041, %v3045
  %v3050 = vand.u32 2147483647, %v2982
  %vm3051 = vcmp.eq.f32.partialorder %v3050, 8.507059e+37
  %v3052 = vand.u32 %v2982, 2147483648
  %v3053 = vor.u32 1.1754944e-38, %v3052
  %v3054 = vsel %vm3051, %v3053, %v3049
  %v3055 = vmul.f32 %v2796, %v3054
  %v3056 = vmul.f32 %v2798, %v3054
  %v3057 = vmul.f32 %v2800, %v3054
  %v3058 = vmul.f32 %v2802, %v3054
  %v3059 = vrcp.pop %v2983
  %v3060 = vmul.f32 %v2983, %v3059
  %v3061 = vsub.f32 1.0, %v3060
  %v3062 = vmul.f32 %v3059, %v3061
  %v3063 = vadd.f32 %v3059, %v3062
  %vm3064 = vweird.f32 %v2983
  %vm3065 = vweird.f32 %v3059
  %vm3066 = vmor %vm3064, %vm3065
  %v3067 = vsel %vm3066, %v3059, %v3063
  %v3068 = vand.u32 2147483647, %v2983
  %vm3069 = vcmp.eq.f32.partialorder %v3068, 8.507059e+37
  %v3070 = vand.u32 %v2983, 2147483648
  %v3071 = vor.u32 1.1754944e-38, %v3070
  %v3072 = vsel %vm3069, %v3071, %v3067
  %v3073 = vmul.f32 %v2804, %v3072
  %v3074 = vmul.f32 %v2806, %v3072
  %v3075 = vmul.f32 %v2808, %v3072
  %v3076 = vmul.f32 %v2810, %v3072
  %v3077 = vrcp.pop %v2984
  %v3078 = vmul.f32 %v2984, %v3077
  %v3079 = vsub.f32 1.0, %v3078
  %v3080 = vmul.f32 %v3077, %v3079
  %v3081 = vadd.f32 %v3077, %v3080
  %vm3082 = vweird.f32 %v2984
  %vm3083 = vweird.f32 %v3077
  %vm3084 = vmor %vm3082, %vm3083
  %v3085 = vsel %vm3084, %v3077, %v3081
  %v3086 = vand.u32 2147483647, %v2984
  %vm3087 = vcmp.eq.f32.partialorder %v3086, 8.507059e+37
  %v3088 = vand.u32 %v2984, 2147483648
  %v3089 = vor.u32 1.1754944e-38, %v3088
  %v3090 = vsel %vm3087, %v3089, %v3085
  %v3091 = vmul.f32 %v2812, %v3090
  %v3092 = vmul.f32 %v2814, %v3090
  %v3093 = vmul.f32 %v2816, %v3090
  %v3094 = vmul.f32 %v2818, %v3090
  %v3095 = vrcp.pop %v2985
  %v3096 = vmul.f32 %v2985, %v3095
  %v3097 = vsub.f32 1.0, %v3096
  %v3098 = vmul.f32 %v3095, %v3097
  %v3099 = vadd.f32 %v3095, %v3098
  %vm3100 = vweird.f32 %v2985
  %vm3101 = vweird.f32 %v3095
  %vm3102 = vmor %vm3100, %vm3101
  %v3103 = vsel %vm3102, %v3095, %v3099
  %v3104 = vand.u32 2147483647, %v2985
  %vm3105 = vcmp.eq.f32.partialorder %v3104, 8.507059e+37
  %v3106 = vand.u32 %v2985, 2147483648
  %v3107 = vor.u32 1.1754944e-38, %v3106
  %v3108 = vsel %vm3105, %v3107, %v3103
  %v3109 = vmul.f32 %v2820, %v3108
  %v3110 = vmul.f32 %v2822, %v3108
  %v3111 = vmul.f32 %v2824, %v3108
  %v3112 = vmul.f32 %v2826, %v3108
  %v3113 = vrcp.pop %v2986
  %v3114 = vmul.f32 %v2986, %v3113
  %v3115 = vsub.f32 1.0, %v3114
  %v3116 = vmul.f32 %v3113, %v3115
  %v3117 = vadd.f32 %v3113, %v3116
  %vm3118 = vweird.f32 %v2986
  %vm3119 = vweird.f32 %v3113
  %vm3120 = vmor %vm3118, %vm3119
  %v3121 = vsel %vm3120, %v3113, %v3117
  %v3122 = vand.u32 2147483647, %v2986
  %vm3123 = vcmp.eq.f32.partialorder %v3122, 8.507059e+37
  %v3124 = vand.u32 %v2986, 2147483648
  %v3125 = vor.u32 1.1754944e-38, %v3124
  %v3126 = vsel %vm3123, %v3125, %v3121
  %v3127 = vmul.f32 %v2828, %v3126
  %v3128 = vmul.f32 %v2830, %v3126
  %v3129 = vmul.f32 %v2832, %v3126
  %v3130 = vmul.f32 %v2834, %v3126
  %v3131 = vperm.slane %v3001, 0
  %v3132 = vperm.slane %v3002, 0
  %v3133 = vperm.slane %v3003, 0
  %v3134 = vperm.slane %v3004, 0
  %v3135 = vperm.slane %v3019, 0
  %v3136 = vperm.slane %v3020, 0
  %v3137 = vperm.slane %v3021, 0
  %v3138 = vperm.slane %v3022, 0
  %v3139 = vperm.slane %v3037, 0
  %v3140 = vperm.slane %v3038, 0
  %v3141 = vperm.slane %v3039, 0
  %v3142 = vperm.slane %v3040, 0
  %v3143 = vperm.slane %v3055, 0
  %v3144 = vperm.slane %v3056, 0
  %v3145 = vperm.slane %v3057, 0
  %v3146 = vperm.slane %v3058, 0
  %v3147 = vperm.slane %v3073, 0
  %v3148 = vperm.slane %v3074, 0
  %v3149 = vperm.slane %v3075, 0
  %v3150 = vperm.slane %v3076, 0
  %v3151 = vperm.slane %v3091, 0
  %v3152 = vperm.slane %v3092, 0
  %v3153 = vperm.slane %v3093, 0
  %v3154 = vperm.slane %v3094, 0
  %v3155 = vperm.slane %v3109, 0
  %v3156 = vperm.slane %v3110, 0
  %v3157 = vperm.slane %v3111, 0
  %v3158 = vperm.slane %v3112, 0
  %v3159 = vperm.slane %v3127, 0
  %v3160 = vperm.slane %v3128, 0
  %v3161 = vperm.slane %v3129, 0
  %v3162 = vperm.slane %v3130, 0
  %v3163 = vmul.f32 %v3131, %v102
  %v3164 = vmul.f32 %v3131, %v105
  %v3165 = vmul.f32 %v3132, %v108
  %v3166 = vmul.f32 %v3132, %v111
  %v3167 = vmul.f32 %v3133, %v114
  %v3168 = vmul.f32 %v3133, %v117
  %v3169 = vmul.f32 %v3134, %v120
  %v3170 = vmul.f32 %v3134, %v123
  %v3171 = vmul.f32 %v3135, %v199
  %v3172 = vmul.f32 %v3135, %v202
  %v3173 = vmul.f32 %v3136, %v205
  %v3174 = vmul.f32 %v3136, %v208
  %v3175 = vmul.f32 %v3137, %v211
  %v3176 = vmul.f32 %v3137, %v214
  %v3177 = vmul.f32 %v3138, %v217
  %v3178 = vmul.f32 %v3138, %v220
  %v3179 = vmul.f32 %v3139, %v296
  %v3180 = vmul.f32 %v3139, %v299
  %v3181 = vmul.f32 %v3140, %v302
  %v3182 = vmul.f32 %v3140, %v305
  %v3183 = vmul.f32 %v3141, %v308
  %v3184 = vmul.f32 %v3141, %v311
  %v3185 = vmul.f32 %v3142, %v314
  %v3186 = vmul.f32 %v3142, %v317
  %v3187 = vmul.f32 %v3143, %v393
  %v3188 = vmul.f32 %v3143, %v396
  %v3189 = vmul.f32 %v3144, %v399
  %v3190 = vmul.f32 %v3144, %v402
  %v3191 = vmul.f32 %v3145, %v405
  %v3192 = vmul.f32 %v3145, %v408
  %v3193 = vmul.f32 %v3146, %v411
  %v3194 = vmul.f32 %v3146, %v414
  %v3195 = vmul.f32 %v3147, %v490
  %v3196 = vmul.f32 %v3147, %v493
  %v3197 = vmul.f32 %v3148, %v496
  %v3198 = vmul.f32 %v3148, %v499
  %v3199 = vmul.f32 %v3149, %v502
  %v3200 = vmul.f32 %v3149, %v505
  %v3201 = vmul.f32 %v3150, %v508
  %v3202 = vmul.f32 %v3150, %v511
  %v3203 = vmul.f32 %v3151, %v587
  %v3204 = vmul.f32 %v3151, %v590
  %v3205 = vmul.f32 %v3152, %v593
  %v3206 = vmul.f32 %v3152, %v596
  %v3207 = vmul.f32 %v3153, %v599
  %v3208 = vmul.f32 %v3153, %v602
  %v3209 = vmul.f32 %v3154, %v605
  %v3210 = vmul.f32 %v3154, %v608
  %v3211 = vmul.f32 %v3155, %v684
  %v3212 = vmul.f32 %v3155, %v687
  %v3213 = vmul.f32 %v3156, %v690
  %v3214 = vmul.f32 %v3156, %v693
  %v3215 = vmul.f32 %v3157, %v696
  %v3216 = vmul.f32 %v3157, %v699
  %v3217 = vmul.f32 %v3158, %v702
  %v3218 = vmul.f32 %v3158, %v705
  %v3219 = vmul.f32 %v3159, %v781
  %v3220 = vmul.f32 %v3159, %v784
  %v3221 = vmul.f32 %v3160, %v787
  %v3222 = vmul.f32 %v3160, %v790
  %v3223 = vmul.f32 %v3161, %v793
  %v3224 = vmul.f32 %v3161, %v796
  %v3225 = vmul.f32 %v3162, %v799
  %v3226 = vmul.f32 %v3162, %v802
  %v3227 = vsel %vm918, %v3163, 0.0
  %v3228 = vsel %vm918, %v3171, 0.0
  %v3229 = vadd.f32 %v3227, %v3228
  %v3230 = vsel %vm918, %v3179, 0.0
  %v3231 = vadd.f32 %v3229, %v3230
  %v3232 = vsel %vm918, %v3187, 0.0
  %v3233 = vadd.f32 %v3231, %v3232
  %v3234 = vsel %vm918, %v3195, 0.0
  %v3235 = vadd.f32 %v3233, %v3234
  %v3236 = vsel %vm918, %v3203, 0.0
  %v3237 = vadd.f32 %v3235, %v3236
  %v3238 = vsel %vm918, %v3211, 0.0
  %v3239 = vadd.f32 %v3237, %v3238
  %v3240 = vsel %vm918, %v3219, 0.0
  %v3241 = vadd.f32 %v3239, %v3240
  %v3242 = vsel %vm918, %v3164, 0.0
  %v3243 = vsel %vm918, %v3172, 0.0
  %v3244 = vadd.f32 %v3242, %v3243
  %v3245 = vsel %vm918, %v3180, 0.0
  %v3246 = vadd.f32 %v3244, %v3245
  %v3247 = vsel %vm918, %v3188, 0.0
  %v3248 = vadd.f32 %v3246, %v3247
  %v3249 = vsel %vm918, %v3196, 0.0
  %v3250 = vadd.f32 %v3248, %v3249
  %v3251 = vsel %vm918, %v3204, 0.0
  %v3252 = vadd.f32 %v3250, %v3251
  %v3253 = vsel %vm918, %v3212, 0.0
  %v3254 = vadd.f32 %v3252, %v3253
  %v3255 = vsel %vm918, %v3220, 0.0
  %v3256 = vadd.f32 %v3254, %v3255
  %v3257 = vsel %vm918, %v3165, 0.0
  %v3258 = vsel %vm918, %v3173, 0.0
  %v3259 = vadd.f32 %v3257, %v3258
  %v3260 = vsel %vm918, %v3181, 0.0
  %v3261 = vadd.f32 %v3259, %v3260
  %v3262 = vsel %vm918, %v3189, 0.0
  %v3263 = vadd.f32 %v3261, %v3262
  %v3264 = vsel %vm918, %v3197, 0.0
  %v3265 = vadd.f32 %v3263, %v3264
  %v3266 = vsel %vm918, %v3205, 0.0
  %v3267 = vadd.f32 %v3265, %v3266
  %v3268 = vsel %vm918, %v3213, 0.0
  %v3269 = vadd.f32 %v3267, %v3268
  %v3270 = vsel %vm918, %v3221, 0.0
  %v3271 = vadd.f32 %v3269, %v3270
  %v3272 = vsel %vm918, %v3166, 0.0
  %v3273 = vsel %vm918, %v3174, 0.0
  %v3274 = vadd.f32 %v3272, %v3273
  %v3275 = vsel %vm918, %v3182, 0.0
  %v3276 = vadd.f32 %v3274, %v3275
  %v3277 = vsel %vm918, %v3190, 0.0
  %v3278 = vadd.f32 %v3276, %v3277
  %v3279 = vsel %vm918, %v3198, 0.0
  %v3280 = vadd.f32 %v3278, %v3279
  %v3281 = vsel %vm918, %v3206, 0.0
  %v3282 = vadd.f32 %v3280, %v3281
  %v3283 = vsel %vm918, %v3214, 0.0
  %v3284 = vadd.f32 %v3282, %v3283
  %v3285 = vsel %vm918, %v3222, 0.0
  %v3286 = vadd.f32 %v3284, %v3285
  %v3287 = vsel %vm918, %v3167, 0.0
  %v3288 = vsel %vm918, %v3175, 0.0
  %v3289 = vadd.f32 %v3287, %v3288
  %v3290 = vsel %vm918, %v3183, 0.0
  %v3291 = vadd.f32 %v3289, %v3290
  %v3292 = vsel %vm918, %v3191, 0.0
  %v3293 = vadd.f32 %v3291, %v3292
  %v3294 = vsel %vm918, %v3199, 0.0
  %v3295 = vadd.f32 %v3293, %v3294
  %v3296 = vsel %vm918, %v3207, 0.0
  %v3297 = vadd.f32 %v3295, %v3296
  %v3298 = vsel %vm918, %v3215, 0.0
  %v3299 = vadd.f32 %v3297, %v3298
  %v3300 = vsel %vm918, %v3223, 0.0
  %v3301 = vadd.f32 %v3299, %v3300
  %v3302 = vsel %vm918, %v3168, 0.0
  %v3303 = vsel %vm918, %v3176, 0.0
  %v3304 = vadd.f32 %v3302, %v3303
  %v3305 = vsel %vm918, %v3184, 0.0
  %v3306 = vadd.f32 %v3304, %v3305
  %v3307 = vsel %vm918, %v3192, 0.0
  %v3308 = vadd.f32 %v3306, %v3307
  %v3309 = vsel %vm918, %v3200, 0.0
  %v3310 = vadd.f32 %v3308, %v3309
  %v3311 = vsel %vm918, %v3208, 0.0
  %v3312 = vadd.f32 %v3310, %v3311
  %v3313 = vsel %vm918, %v3216, 0.0
  %v3314 = vadd.f32 %v3312, %v3313
  %v3315 = vsel %vm918, %v3224, 0.0
  %v3316 = vadd.f32 %v3314, %v3315
  %v3317 = vsel %vm918, %v3169, 0.0
  %v3318 = vsel %vm918, %v3177, 0.0
  %v3319 = vadd.f32 %v3317, %v3318
  %v3320 = vsel %vm918, %v3185, 0.0
  %v3321 = vadd.f32 %v3319, %v3320
  %v3322 = vsel %vm918, %v3193, 0.0
  %v3323 = vadd.f32 %v3321, %v3322
  %v3324 = vsel %vm918, %v3201, 0.0
  %v3325 = vadd.f32 %v3323, %v3324
  %v3326 = vsel %vm918, %v3209, 0.0
  %v3327 = vadd.f32 %v3325, %v3326
  %v3328 = vsel %vm918, %v3217, 0.0
  %v3329 = vadd.f32 %v3327, %v3328
  %v3330 = vsel %vm918, %v3225, 0.0
  %v3331 = vadd.f32 %v3329, %v3330
  %v3332 = vsel %vm918, %v3170, 0.0
  %v3333 = vsel %vm918, %v3178, 0.0
  %v3334 = vadd.f32 %v3332, %v3333
  %v3335 = vsel %vm918, %v3186, 0.0
  %v3336 = vadd.f32 %v3334, %v3335
  %v3337 = vsel %vm918, %v3194, 0.0
  %v3338 = vadd.f32 %v3336, %v3337
  %v3339 = vsel %vm918, %v3202, 0.0
  %v3340 = vadd.f32 %v3338, %v3339
  %v3341 = vsel %vm918, %v3210, 0.0
  %v3342 = vadd.f32 %v3340, %v3341
  %v3343 = vsel %vm918, %v3218, 0.0
  %v3344 = vadd.f32 %v3342, %v3343
  %v3345 = vsel %vm918, %v3226, 0.0
  %v3346 = vadd.f32 %v3344, %v3345
  %v3347 = vadd.f32 %v3241, 0.0
  %v3348 = vadd.f32 %v3256, 0.0
  %v3349 = vadd.f32 %v3271, 0.0
  %v3350 = vadd.f32 %v3286, 0.0
  %v3351 = vadd.f32 %v3301, 0.0
  %v3352 = vadd.f32 %v3316, 0.0
  %v3353 = vadd.f32 %v3331, 0.0
  %v3354 = vadd.f32 %v3346, 0.0
  %3355 = vst.msk [vmem:[%s2] sm:$0xff] %vm918, %v3347
  %3356 = vst.msk [vmem:[%s2 + $0x8] sm:$0xff] %vm918, %v3348
  %3357 = vst.msk [vmem:[%s2 + $0x10] sm:$0xff] %vm918, %v3349
  %3358 = vst.msk [vmem:[%s2 + $0x18] sm:$0xff] %vm918, %v3350
  %3359 = vst.msk [vmem:[%s2 + $0x20] sm:$0xff] %vm918, %v3351
  %3360 = vst.msk [vmem:[%s2 + $0x28] sm:$0xff] %vm918, %v3352
  %3361 = vst.msk [vmem:[%s2 + $0x30] sm:$0xff] %vm918, %v3353
  %3362 = vst.msk [vmem:[%s2 + $0x38] sm:$0xff] %vm918, %v3354
  // Predicated region
  $region10: #{tpu_custom_call.1} parent=0 // pred_check
    _
  $region11: #{tpu_custom_call.1} parent=0 // pred_check_branch
    %3364 = sbr.rel (0) target = $region13
  $region12: #{tpu_custom_call.1} parent=0 // pred_region
    _
  $region13: #{tpu_custom_call.1} parent=0 // pred_fallthru
    _
  // Predicated region
  $region14: #{tpu_custom_call.1} parent=0 // pred_check
    _
  $region15: #{tpu_custom_call.1} parent=0 // pred_check_branch
    %3366 = sbr.rel (0) target = $region17
  $region16: #{tpu_custom_call.1} parent=0 // pred_region
    _
  $region17: #{tpu_custom_call.1} parent=0 // pred_fallthru
    _

// kernel: tpu_custom_call.1
$region0: #{tpu_custom_call.1}
  #allocation0 [shape = 'u32[]', space=smem, size = 0x4, offset = 0x4, fixed_abs, tag = 'smem constant byte address 0x4 - core index']
  #allocation1 [shape = 'u32[72,128]{1,0:T(1,128)}', space=vmem, size = 0x9000, scoped, tag = 'internal scratch']
  %s0 = inlined_call_operand.vmem [shape: f32[8,8,2], index: 0, kind: input, shape index: {}]
  %s1 = inlined_call_operand.vmem [shape: f32[8,64,8], index: 1, kind: input, shape index: {}]
  %s2 = inlined_call_operand.vmem [shape: f32[4,16,2], index: 2, kind: output, shape index: {}]
  %s3 = sld [smem:[#allocation0]]
  $region18: #{tpu_custom_call.1} parent=0
    _
  %s5 = ssub.s32 1, %s3
  %s6 = scalar_select 0, %s5, %s3
  // Predicated region
  $region2: #{tpu_custom_call.1} parent=0 // pred_check
    _
  $region3: #{tpu_custom_call.1} parent=0 // pred_check_branch
    %8 = sbr.rel (0) target = $region5
  $region4: #{tpu_custom_call.1} parent=0 // pred_region
    _
  $region5: #{tpu_custom_call.1} parent=0 // pred_fallthru
    _
  // Predicated region
  $region6: #{tpu_custom_call.1} parent=0 // pred_check
    _
  $region7: #{tpu_custom_call.1} parent=0 // pred_check_branch
    %10 = sbr.rel (0) target = $region9
  $region8: #{tpu_custom_call.1} parent=0 // pred_region
    _
  $region9: #{tpu_custom_call.1} parent=0 // pred_fallthru
    _
  %v11 = vld [vmem:[%s0] sm:$0xff]
  %v12 = vld [vmem:[%s0 + $0x8] sm:$0xff]
  %v13 = vld [vmem:[%s0 + $0x10] sm:$0xff]
  %v14 = vld [vmem:[%s0 + $0x18] sm:$0xff]
  %v15 = vld [vmem:[%s0 + $0x20] sm:$0xff]
  %v16 = vld [vmem:[%s0 + $0x28] sm:$0xff]
  %v17 = vld [vmem:[%s0 + $0x30] sm:$0xff]
  %v18 = vld [vmem:[%s0 + $0x38] sm:$0xff]
  %v19 = vld [vmem:[%s1] sm:$0xff]
  %v20 = vld [vmem:[%s1 + $0x8] sm:$0xff]
  %v21 = vld [vmem:[%s1 + $0x10] sm:$0xff]
  %v22 = vld [vmem:[%s1 + $0x18] sm:$0xff]
  %v23 = vld [vmem:[%s1 + $0x20] sm:$0xff]
  %v24 = vld [vmem:[%s1 + $0x28] sm:$0xff]
  %v25 = vld [vmem:[%s1 + $0x30] sm:$0xff]
  %v26 = vld [vmem:[%s1 + $0x38] sm:$0xff]
  %v27 = vld [vmem:[%s1 + $0x40] sm:$0xff]
  %v28 = vld [vmem:[%s1 + $0x48] sm:$0xff]
  %v29 = vld [vmem:[%s1 + $0x50] sm:$0xff]
  %v30 = vld [vmem:[%s1 + $0x58] sm:$0xff]
  %v31 = vld [vmem:[%s1 + $0x60] sm:$0xff]
  %v32 = vld [vmem:[%s1 + $0x68] sm:$0xff]
  %v33 = vld [vmem:[%s1 + $0x70] sm:$0xff]
  %v34 = vld [vmem:[%s1 + $0x78] sm:$0xff]
  %v35 = vld [vmem:[%s1 + $0x80] sm:$0xff]
  %v36 = vld [vmem:[%s1 + $0x88] sm:$0xff]
  %v37 = vld [vmem:[%s1 + $0x90] sm:$0xff]
  %v38 = vld [vmem:[%s1 + $0x98] sm:$0xff]
  %v39 = vld [vmem:[%s1 + $0xa0] sm:$0xff]
  %v40 = vld [vmem:[%s1 + $0xa8] sm:$0xff]
  %v41 = vld [vmem:[%s1 + $0xb0] sm:$0xff]
  %v42 = vld [vmem:[%s1 + $0xb8] sm:$0xff]
  %v43 = vld [vmem:[%s1 + $0xc0] sm:$0xff]
  %v44 = vld [vmem:[%s1 + $0xc8] sm:$0xff]
  %v45 = vld [vmem:[%s1 + $0xd0] sm:$0xff]
  %v46 = vld [vmem:[%s1 + $0xd8] sm:$0xff]
  %v47 = vld [vmem:[%s1 + $0xe0] sm:$0xff]
  %v48 = vld [vmem:[%s1 + $0xe8] sm:$0xff]
  %v49 = vld [vmem:[%s1 + $0xf0] sm:$0xff]
  %v50 = vld [vmem:[%s1 + $0xf8] sm:$0xff]
  %v51 = vld [vmem:[%s1 + $0x100] sm:$0xff]
  %v52 = vld [vmem:[%s1 + $0x108] sm:$0xff]
  %v53 = vld [vmem:[%s1 + $0x110] sm:$0xff]
  %v54 = vld [vmem:[%s1 + $0x118] sm:$0xff]
  %v55 = vld [vmem:[%s1 + $0x120] sm:$0xff]
  %v56 = vld [vmem:[%s1 + $0x128] sm:$0xff]
  %v57 = vld [vmem:[%s1 + $0x130] sm:$0xff]
  %v58 = vld [vmem:[%s1 + $0x138] sm:$0xff]
  %v59 = vld [vmem:[%s1 + $0x140] sm:$0xff]
  %v60 = vld [vmem:[%s1 + $0x148] sm:$0xff]
  %v61 = vld [vmem:[%s1 + $0x150] sm:$0xff]
  %v62 = vld [vmem:[%s1 + $0x158] sm:$0xff]
  %v63 = vld [vmem:[%s1 + $0x160] sm:$0xff]
  %v64 = vld [vmem:[%s1 + $0x168] sm:$0xff]
  %v65 = vld [vmem:[%s1 + $0x170] sm:$0xff]
  %v66 = vld [vmem:[%s1 + $0x178] sm:$0xff]
  %v67 = vld [vmem:[%s1 + $0x180] sm:$0xff]
  %v68 = vld [vmem:[%s1 + $0x188] sm:$0xff]
  %v69 = vld [vmem:[%s1 + $0x190] sm:$0xff]
  %v70 = vld [vmem:[%s1 + $0x198] sm:$0xff]
  %v71 = vld [vmem:[%s1 + $0x1a0] sm:$0xff]
  %v72 = vld [vmem:[%s1 + $0x1a8] sm:$0xff]
  %v73 = vld [vmem:[%s1 + $0x1b0] sm:$0xff]
  %v74 = vld [vmem:[%s1 + $0x1b8] sm:$0xff]
  %v75 = vld [vmem:[%s1 + $0x1c0] sm:$0xff]
  %v76 = vld [vmem:[%s1 + $0x1c8] sm:$0xff]
  %v77 = vld [vmem:[%s1 + $0x1d0] sm:$0xff]
  %v78 = vld [vmem:[%s1 + $0x1d8] sm:$0xff]
  %v79 = vld [vmem:[%s1 + $0x1e0] sm:$0xff]
  %v80 = vld [vmem:[%s1 + $0x1e8] sm:$0xff]
  %v81 = vld [vmem:[%s1 + $0x1f0] sm:$0xff]
  %v82 = vld [vmem:[%s1 + $0x1f8] sm:$0xff]
  %vm83 = vcmask 64512
  %v85 = vsel %vm83, %v19, 0
  %v88 = vsel %vm83, %v20, 0
  %v91 = vsel %vm83, %v21, 0
  %v94 = vsel %vm83, %v22, 0
  %v97 = vsel %vm83, %v23, 0
  %v100 = vsel %vm83, %v24, 0
  %v103 = vsel %vm83, %v25, 0
  %v106 = vsel %vm83, %v26, 0
  %108 = vmatpush.msra.mxu0 0.0
  %109 = vmatpush.msra.mxu0 0.0
  %110 = vmatpush.msra.mxu0 0.0
  %111 = vmatpush.msra.mxu0 0.0
  %112 = vmatpush.msra.mxu0 0.0
  %113 = vmatpush.msra.mxu0 0.0
  %114 = vmatpush.msra.mxu0 0.0
  %115 = vmatpush.msra.mxu0 0.0
  %116 = vmatpush.msra.mxu0 0.0
  %117 = vmatpush.msra.mxu0 0.0
  %118 = vmatpush.msra.mxu0 0.0
  %119 = vmatpush.msra.mxu0 0.0
  %120 = vmatpush.msra.mxu0 0.0
  %121 = vmatpush.msra.mxu0 0.0
  %122 = vmatpush.msra.mxu0 0.0
  %123 = vmatpush.msra.mxu0 %v11
  %124 = vmatmul.f32.gmra.mxu0 %v85
  %v125 = vpop.f32.mrf.mxu0
  %v126 = vadd.f32 0.0, %v125
  %127 = vmatmul.f32.gmra.mxu0 %v88
  %v128 = vpop.f32.mrf.mxu0
  %v129 = vadd.f32 0.0, %v128
  %130 = vmatmul.f32.gmra.mxu0 %v91
  %v131 = vpop.f32.mrf.mxu0
  %v132 = vadd.f32 0.0, %v131
  %133 = vmatmul.f32.gmra.mxu0 %v94
  %v134 = vpop.f32.mrf.mxu0
  %v135 = vadd.f32 0.0, %v134
  %136 = vmatmul.f32.gmra.mxu0 %v97
  %v137 = vpop.f32.mrf.mxu0
  %v138 = vadd.f32 0.0, %v137
  %139 = vmatmul.f32.gmra.mxu0 %v100
  %v140 = vpop.f32.mrf.mxu0
  %v141 = vadd.f32 0.0, %v140
  %142 = vmatmul.f32.gmra.mxu0 %v103
  %v143 = vpop.f32.mrf.mxu0
  %v144 = vadd.f32 0.0, %v143
  %145 = vmatmul.f32.gmra.mxu0 %v106
  %v146 = vpop.f32.mrf.mxu0
  %v147 = vadd.f32 0.0, %v146
  %148 = vdwg.mxu0
  %v150 = vsel %vm83, %v27, 0
  %v153 = vsel %vm83, %v28, 0
  %v156 = vsel %vm83, %v29, 0
  %v159 = vsel %vm83, %v30, 0
  %v162 = vsel %vm83, %v31, 0
  %v165 = vsel %vm83, %v32, 0
  %v168 = vsel %vm83, %v33, 0
  %v171 = vsel %vm83, %v34, 0
  %173 = vmatpush.msra.mxu0 0.0
  %174 = vmatpush.msra.mxu0 0.0
  %175 = vmatpush.msra.mxu0 0.0
  %176 = vmatpush.msra.mxu0 0.0
  %177 = vmatpush.msra.mxu0 0.0
  %178 = vmatpush.msra.mxu0 0.0
  %179 = vmatpush.msra.mxu0 0.0
  %180 = vmatpush.msra.mxu0 0.0
  %181 = vmatpush.msra.mxu0 0.0
  %182 = vmatpush.msra.mxu0 0.0
  %183 = vmatpush.msra.mxu0 0.0
  %184 = vmatpush.msra.mxu0 0.0
  %185 = vmatpush.msra.mxu0 0.0
  %186 = vmatpush.msra.mxu0 0.0
  %187 = vmatpush.msra.mxu0 0.0
  %188 = vmatpush.msra.mxu0 %v12
  %189 = vmatmul.f32.gmra.mxu0 %v150
  %v190 = vpop.f32.mrf.mxu0
  %v191 = vadd.f32 0.0, %v190
  %192 = vmatmul.f32.gmra.mxu0 %v153
  %v193 = vpop.f32.mrf.mxu0
  %v194 = vadd.f32 0.0, %v193
  %195 = vmatmul.f32.gmra.mxu0 %v156
  %v196 = vpop.f32.mrf.mxu0
  %v197 = vadd.f32 0.0, %v196
  %198 = vmatmul.f32.gmra.mxu0 %v159
  %v199 = vpop.f32.mrf.mxu0
  %v200 = vadd.f32 0.0, %v199
  %201 = vmatmul.f32.gmra.mxu0 %v162
  %v202 = vpop.f32.mrf.mxu0
  %v203 = vadd.f32 0.0, %v202
  %204 = vmatmul.f32.gmra.mxu0 %v165
  %v205 = vpop.f32.mrf.mxu0
  %v206 = vadd.f32 0.0, %v205
  %207 = vmatmul.f32.gmra.mxu0 %v168
  %v208 = vpop.f32.mrf.mxu0
  %v209 = vadd.f32 0.0, %v208
  %210 = vmatmul.f32.gmra.mxu0 %v171
  %v211 = vpop.f32.mrf.mxu0
  %v212 = vadd.f32 0.0, %v211
  %213 = vdwg.mxu0
  %v215 = vsel %vm83, %v35, 0
  %v218 = vsel %vm83, %v36, 0
  %v221 = vsel %vm83, %v37, 0
  %v224 = vsel %vm83, %v38, 0
  %v227 = vsel %vm83, %v39, 0
  %v230 = vsel %vm83, %v40, 0
  %v233 = vsel %vm83, %v41, 0
  %v236 = vsel %vm83, %v42, 0
  %238 = vmatpush.msra.mxu0 0.0
  %239 = vmatpush.msra.mxu0 0.0
  %240 = vmatpush.msra.mxu0 0.0
  %241 = vmatpush.msra.mxu0 0.0
  %242 = vmatpush.msra.mxu0 0.0
  %243 = vmatpush.msra.mxu0 0.0
  %244 = vmatpush.msra.mxu0 0.0
  %245 = vmatpush.msra.mxu0 0.0
  %246 = vmatpush.msra.mxu0 0.0
  %247 = vmatpush.msra.mxu0 0.0
  %248 = vmatpush.msra.mxu0 0.0
  %249 = vmatpush.msra.mxu0 0.0
  %250 = vmatpush.msra.mxu0 0.0
  %251 = vmatpush.msra.mxu0 0.0
  %252 = vmatpush.msra.mxu0 0.0
  %253 = vmatpush.msra.mxu0 %v13
  %254 = vmatmul.f32.gmra.mxu0 %v215
  %v255 = vpop.f32.mrf.mxu0
  %v256 = vadd.f32 0.0, %v255
  %257 = vmatmul.f32.gmra.mxu0 %v218
  %v258 = vpop.f32.mrf.mxu0
  %v259 = vadd.f32 0.0, %v258
  %260 = vmatmul.f32.gmra.mxu0 %v221
  %v261 = vpop.f32.mrf.mxu0
  %v262 = vadd.f32 0.0, %v261
  %263 = vmatmul.f32.gmra.mxu0 %v224
  %v264 = vpop.f32.mrf.mxu0
  %v265 = vadd.f32 0.0, %v264
  %266 = vmatmul.f32.gmra.mxu0 %v227
  %v267 = vpop.f32.mrf.mxu0
  %v268 = vadd.f32 0.0, %v267
  %269 = vmatmul.f32.gmra.mxu0 %v230
  %v270 = vpop.f32.mrf.mxu0
  %v271 = vadd.f32 0.0, %v270
  %272 = vmatmul.f32.gmra.mxu0 %v233
  %v273 = vpop.f32.mrf.mxu0
  %v274 = vadd.f32 0.0, %v273
  %275 = vmatmul.f32.gmra.mxu0 %v236
  %v276 = vpop.f32.mrf.mxu0
  %v277 = vadd.f32 0.0, %v276
  %278 = vdwg.mxu0
  %v280 = vsel %vm83, %v43, 0
  %v283 = vsel %vm83, %v44, 0
  %v286 = vsel %vm83, %v45, 0
  %v289 = vsel %vm83, %v46, 0
  %v292 = vsel %vm83, %v47, 0
  %v295 = vsel %vm83, %v48, 0
  %v298 = vsel %vm83, %v49, 0
  %v301 = vsel %vm83, %v50, 0
  %303 = vmatpush.msra.mxu0 0.0
  %304 = vmatpush.msra.mxu0 0.0
  %305 = vmatpush.msra.mxu0 0.0
  %306 = vmatpush.msra.mxu0 0.0
  %307 = vmatpush.msra.mxu0 0.0
  %308 = vmatpush.msra.mxu0 0.0
  %309 = vmatpush.msra.mxu0 0.0
  %310 = vmatpush.msra.mxu0 0.0
  %311 = vmatpush.msra.mxu0 0.0
  %312 = vmatpush.msra.mxu0 0.0
  %313 = vmatpush.msra.mxu0 0.0
  %314 = vmatpush.msra.mxu0 0.0
  %315 = vmatpush.msra.mxu0 0.0
  %316 = vmatpush.msra.mxu0 0.0
  %317 = vmatpush.msra.mxu0 0.0
  %318 = vmatpush.msra.mxu0 %v14
  %319 = vmatmul.f32.gmra.mxu0 %v280
  %v320 = vpop.f32.mrf.mxu0
  %v321 = vadd.f32 0.0, %v320
  %322 = vmatmul.f32.gmra.mxu0 %v283
  %v323 = vpop.f32.mrf.mxu0
  %v324 = vadd.f32 0.0, %v323
  %325 = vmatmul.f32.gmra.mxu0 %v286
  %v326 = vpop.f32.mrf.mxu0
  %v327 = vadd.f32 0.0, %v326
  %328 = vmatmul.f32.gmra.mxu0 %v289
  %v329 = vpop.f32.mrf.mxu0
  %v330 = vadd.f32 0.0, %v329
  %331 = vmatmul.f32.gmra.mxu0 %v292
  %v332 = vpop.f32.mrf.mxu0
  %v333 = vadd.f32 0.0, %v332
  %334 = vmatmul.f32.gmra.mxu0 %v295
  %v335 = vpop.f32.mrf.mxu0
  %v336 = vadd.f32 0.0, %v335
  %337 = vmatmul.f32.gmra.mxu0 %v298
  %v338 = vpop.f32.mrf.mxu0
  %v339 = vadd.f32 0.0, %v338
  %340 = vmatmul.f32.gmra.mxu0 %v301
  %v341 = vpop.f32.mrf.mxu0
  %v342 = vadd.f32 0.0, %v341
  %343 = vdwg.mxu0
  %v345 = vsel %vm83, %v51, 0
  %v348 = vsel %vm83, %v52, 0
  %v351 = vsel %vm83, %v53, 0
  %v354 = vsel %vm83, %v54, 0
  %v357 = vsel %vm83, %v55, 0
  %v360 = vsel %vm83, %v56, 0
  %v363 = vsel %vm83, %v57, 0
  %v366 = vsel %vm83, %v58, 0
  %368 = vmatpush.msra.mxu0 0.0
  %369 = vmatpush.msra.mxu0 0.0
  %370 = vmatpush.msra.mxu0 0.0
  %371 = vmatpush.msra.mxu0 0.0
  %372 = vmatpush.msra.mxu0 0.0
  %373 = vmatpush.msra.mxu0 0.0
  %374 = vmatpush.msra.mxu0 0.0
  %375 = vmatpush.msra.mxu0 0.0
  %376 = vmatpush.msra.mxu0 0.0
  %377 = vmatpush.msra.mxu0 0.0
  %378 = vmatpush.msra.mxu0 0.0
  %379 = vmatpush.msra.mxu0 0.0
  %380 = vmatpush.msra.mxu0 0.0
  %381 = vmatpush.msra.mxu0 0.0
  %382 = vmatpush.msra.mxu0 0.0
  %383 = vmatpush.msra.mxu0 %v15
  %384 = vmatmul.f32.gmra.mxu0 %v345
  %v385 = vpop.f32.mrf.mxu0
  %v386 = vadd.f32 0.0, %v385
  %387 = vmatmul.f32.gmra.mxu0 %v348
  %v388 = vpop.f32.mrf.mxu0
  %v389 = vadd.f32 0.0, %v388
  %390 = vmatmul.f32.gmra.mxu0 %v351
  %v391 = vpop.f32.mrf.mxu0
  %v392 = vadd.f32 0.0, %v391
  %393 = vmatmul.f32.gmra.mxu0 %v354
  %v394 = vpop.f32.mrf.mxu0
  %v395 = vadd.f32 0.0, %v394
  %396 = vmatmul.f32.gmra.mxu0 %v357
  %v397 = vpop.f32.mrf.mxu0
  %v398 = vadd.f32 0.0, %v397
  %399 = vmatmul.f32.gmra.mxu0 %v360
  %v400 = vpop.f32.mrf.mxu0
  %v401 = vadd.f32 0.0, %v400
  %402 = vmatmul.f32.gmra.mxu0 %v363
  %v403 = vpop.f32.mrf.mxu0
  %v404 = vadd.f32 0.0, %v403
  %405 = vmatmul.f32.gmra.mxu0 %v366
  %v406 = vpop.f32.mrf.mxu0
  %v407 = vadd.f32 0.0, %v406
  %408 = vdwg.mxu0
  %v410 = vsel %vm83, %v59, 0
  %v413 = vsel %vm83, %v60, 0
  %v416 = vsel %vm83, %v61, 0
  %v419 = vsel %vm83, %v62, 0
  %v422 = vsel %vm83, %v63, 0
  %v425 = vsel %vm83, %v64, 0
  %v428 = vsel %vm83, %v65, 0
  %v431 = vsel %vm83, %v66, 0
  %433 = vmatpush.msra.mxu0 0.0
  %434 = vmatpush.msra.mxu0 0.0
  %435 = vmatpush.msra.mxu0 0.0
  %436 = vmatpush.msra.mxu0 0.0
  %437 = vmatpush.msra.mxu0 0.0
  %438 = vmatpush.msra.mxu0 0.0
  %439 = vmatpush.msra.mxu0 0.0
  %440 = vmatpush.msra.mxu0 0.0
  %441 = vmatpush.msra.mxu0 0.0
  %442 = vmatpush.msra.mxu0 0.0
  %443 = vmatpush.msra.mxu0 0.0
  %444 = vmatpush.msra.mxu0 0.0
  %445 = vmatpush.msra.mxu0 0.0
  %446 = vmatpush.msra.mxu0 0.0
  %447 = vmatpush.msra.mxu0 0.0
  %448 = vmatpush.msra.mxu0 %v16
  %449 = vmatmul.f32.gmra.mxu0 %v410
  %v450 = vpop.f32.mrf.mxu0
  %v451 = vadd.f32 0.0, %v450
  %452 = vmatmul.f32.gmra.mxu0 %v413
  %v453 = vpop.f32.mrf.mxu0
  %v454 = vadd.f32 0.0, %v453
  %455 = vmatmul.f32.gmra.mxu0 %v416
  %v456 = vpop.f32.mrf.mxu0
  %v457 = vadd.f32 0.0, %v456
  %458 = vmatmul.f32.gmra.mxu0 %v419
  %v459 = vpop.f32.mrf.mxu0
  %v460 = vadd.f32 0.0, %v459
  %461 = vmatmul.f32.gmra.mxu0 %v422
  %v462 = vpop.f32.mrf.mxu0
  %v463 = vadd.f32 0.0, %v462
  %464 = vmatmul.f32.gmra.mxu0 %v425
  %v465 = vpop.f32.mrf.mxu0
  %v466 = vadd.f32 0.0, %v465
  %467 = vmatmul.f32.gmra.mxu0 %v428
  %v468 = vpop.f32.mrf.mxu0
  %v469 = vadd.f32 0.0, %v468
  %470 = vmatmul.f32.gmra.mxu0 %v431
  %v471 = vpop.f32.mrf.mxu0
  %v472 = vadd.f32 0.0, %v471
  %473 = vdwg.mxu0
  %v475 = vsel %vm83, %v67, 0
  %v478 = vsel %vm83, %v68, 0
  %v481 = vsel %vm83, %v69, 0
  %v484 = vsel %vm83, %v70, 0
  %v487 = vsel %vm83, %v71, 0
  %v490 = vsel %vm83, %v72, 0
  %v493 = vsel %vm83, %v73, 0
  %v496 = vsel %vm83, %v74, 0
  %498 = vmatpush.msra.mxu0 0.0
  %499 = vmatpush.msra.mxu0 0.0
  %500 = vmatpush.msra.mxu0 0.0
  %501 = vmatpush.msra.mxu0 0.0
  %502 = vmatpush.msra.mxu0 0.0
  %503 = vmatpush.msra.mxu0 0.0
  %504 = vmatpush.msra.mxu0 0.0
  %505 = vmatpush.msra.mxu0 0.0
  %506 = vmatpush.msra.mxu0 0.0
  %507 = vmatpush.msra.mxu0 0.0
  %508 = vmatpush.msra.mxu0 0.0
  %509 = vmatpush.msra.mxu0 0.0
  %510 = vmatpush.msra.mxu0 0.0
  %511 = vmatpush.msra.mxu0 0.0
  %512 = vmatpush.msra.mxu0 0.0
  %513 = vmatpush.msra.mxu0 %v17
  %514 = vmatmul.f32.gmra.mxu0 %v475
  %v515 = vpop.f32.mrf.mxu0
  %v516 = vadd.f32 0.0, %v515
  %517 = vmatmul.f32.gmra.mxu0 %v478
  %v518 = vpop.f32.mrf.mxu0
  %v519 = vadd.f32 0.0, %v518
  %520 = vmatmul.f32.gmra.mxu0 %v481
  %v521 = vpop.f32.mrf.mxu0
  %v522 = vadd.f32 0.0, %v521
  %523 = vmatmul.f32.gmra.mxu0 %v484
  %v524 = vpop.f32.mrf.mxu0
  %v525 = vadd.f32 0.0, %v524
  %526 = vmatmul.f32.gmra.mxu0 %v487
  %v527 = vpop.f32.mrf.mxu0
  %v528 = vadd.f32 0.0, %v527
  %529 = vmatmul.f32.gmra.mxu0 %v490
  %v530 = vpop.f32.mrf.mxu0
  %v531 = vadd.f32 0.0, %v530
  %532 = vmatmul.f32.gmra.mxu0 %v493
  %v533 = vpop.f32.mrf.mxu0
  %v534 = vadd.f32 0.0, %v533
  %535 = vmatmul.f32.gmra.mxu0 %v496
  %v536 = vpop.f32.mrf.mxu0
  %v537 = vadd.f32 0.0, %v536
  %538 = vdwg.mxu0
  %v540 = vsel %vm83, %v75, 0
  %v543 = vsel %vm83, %v76, 0
  %v546 = vsel %vm83, %v77, 0
  %v549 = vsel %vm83, %v78, 0
  %v552 = vsel %vm83, %v79, 0
  %v555 = vsel %vm83, %v80, 0
  %v558 = vsel %vm83, %v81, 0
  %v561 = vsel %vm83, %v82, 0
  %563 = vmatpush.msra.mxu0 0.0
  %564 = vmatpush.msra.mxu0 0.0
  %565 = vmatpush.msra.mxu0 0.0
  %566 = vmatpush.msra.mxu0 0.0
  %567 = vmatpush.msra.mxu0 0.0
  %568 = vmatpush.msra.mxu0 0.0
  %569 = vmatpush.msra.mxu0 0.0
  %570 = vmatpush.msra.mxu0 0.0
  %571 = vmatpush.msra.mxu0 0.0
  %572 = vmatpush.msra.mxu0 0.0
  %573 = vmatpush.msra.mxu0 0.0
  %574 = vmatpush.msra.mxu0 0.0
  %575 = vmatpush.msra.mxu0 0.0
  %576 = vmatpush.msra.mxu0 0.0
  %577 = vmatpush.msra.mxu0 0.0
  %578 = vmatpush.msra.mxu0 %v18
  %579 = vmatmul.f32.gmra.mxu0 %v540
  %v580 = vpop.f32.mrf.mxu0
  %v581 = vadd.f32 0.0, %v580
  %582 = vmatmul.f32.gmra.mxu0 %v543
  %v583 = vpop.f32.mrf.mxu0
  %v584 = vadd.f32 0.0, %v583
  %585 = vmatmul.f32.gmra.mxu0 %v546
  %v586 = vpop.f32.mrf.mxu0
  %v587 = vadd.f32 0.0, %v586
  %588 = vmatmul.f32.gmra.mxu0 %v549
  %v589 = vpop.f32.mrf.mxu0
  %v590 = vadd.f32 0.0, %v589
  %591 = vmatmul.f32.gmra.mxu0 %v552
  %v592 = vpop.f32.mrf.mxu0
  %v593 = vadd.f32 0.0, %v592
  %594 = vmatmul.f32.gmra.mxu0 %v555
  %v595 = vpop.f32.mrf.mxu0
  %v596 = vadd.f32 0.0, %v595
  %597 = vmatmul.f32.gmra.mxu0 %v558
  %v598 = vpop.f32.mrf.mxu0
  %v599 = vadd.f32 0.0, %v598
  %600 = vmatmul.f32.gmra.mxu0 %v561
  %v601 = vpop.f32.mrf.mxu0
  %v602 = vadd.f32 0.0, %v601
  %603 = vdwg.mxu0
  %vm604 = vcmask 15360
  %v605 = vsel %vm604, %v126, 0.0
  %v606 = vsel %vm604, %v191, 0.0
  %v607 = vadd.f32 %v605, %v606
  %v608 = vsel %vm604, %v256, 0.0
  %v609 = vadd.f32 %v607, %v608
  %v610 = vsel %vm604, %v321, 0.0
  %v611 = vadd.f32 %v609, %v610
  %v612 = vsel %vm604, %v386, 0.0
  %v613 = vadd.f32 %v611, %v612
  %v614 = vsel %vm604, %v451, 0.0
  %v615 = vadd.f32 %v613, %v614
  %v616 = vsel %vm604, %v516, 0.0
  %v617 = vadd.f32 %v615, %v616
  %v618 = vsel %vm604, %v581, 0.0
  %v619 = vadd.f32 %v617, %v618
  %v620 = vsel %vm604, %v129, 0.0
  %v621 = vsel %vm604, %v194, 0.0
  %v622 = vadd.f32 %v620, %v621
  %v623 = vsel %vm604, %v259, 0.0
  %v624 = vadd.f32 %v622, %v623
  %v625 = vsel %vm604, %v324, 0.0
  %v626 = vadd.f32 %v624, %v625
  %v627 = vsel %vm604, %v389, 0.0
  %v628 = vadd.f32 %v626, %v627
  %v629 = vsel %vm604, %v454, 0.0
  %v630 = vadd.f32 %v628, %v629
  %v631 = vsel %vm604, %v519, 0.0
  %v632 = vadd.f32 %v630, %v631
  %v633 = vsel %vm604, %v584, 0.0
  %v634 = vadd.f32 %v632, %v633
  %v635 = vsel %vm604, %v132, 0.0
  %v636 = vsel %vm604, %v197, 0.0
  %v637 = vadd.f32 %v635, %v636
  %v638 = vsel %vm604, %v262, 0.0
  %v639 = vadd.f32 %v637, %v638
  %v640 = vsel %vm604, %v327, 0.0
  %v641 = vadd.f32 %v639, %v640
  %v642 = vsel %vm604, %v392, 0.0
  %v643 = vadd.f32 %v641, %v642
  %v644 = vsel %vm604, %v457, 0.0
  %v645 = vadd.f32 %v643, %v644
  %v646 = vsel %vm604, %v522, 0.0
  %v647 = vadd.f32 %v645, %v646
  %v648 = vsel %vm604, %v587, 0.0
  %v649 = vadd.f32 %v647, %v648
  %v650 = vsel %vm604, %v135, 0.0
  %v651 = vsel %vm604, %v200, 0.0
  %v652 = vadd.f32 %v650, %v651
  %v653 = vsel %vm604, %v265, 0.0
  %v654 = vadd.f32 %v652, %v653
  %v655 = vsel %vm604, %v330, 0.0
  %v656 = vadd.f32 %v654, %v655
  %v657 = vsel %vm604, %v395, 0.0
  %v658 = vadd.f32 %v656, %v657
  %v659 = vsel %vm604, %v460, 0.0
  %v660 = vadd.f32 %v658, %v659
  %v661 = vsel %vm604, %v525, 0.0
  %v662 = vadd.f32 %v660, %v661
  %v663 = vsel %vm604, %v590, 0.0
  %v664 = vadd.f32 %v662, %v663
  %v665 = vsel %vm604, %v138, 0.0
  %v666 = vsel %vm604, %v203, 0.0
  %v667 = vadd.f32 %v665, %v666
  %v668 = vsel %vm604, %v268, 0.0
  %v669 = vadd.f32 %v667, %v668
  %v670 = vsel %vm604, %v333, 0.0
  %v671 = vadd.f32 %v669, %v670
  %v672 = vsel %vm604, %v398, 0.0
  %v673 = vadd.f32 %v671, %v672
  %v674 = vsel %vm604, %v463, 0.0
  %v675 = vadd.f32 %v673, %v674
  %v676 = vsel %vm604, %v528, 0.0
  %v677 = vadd.f32 %v675, %v676
  %v678 = vsel %vm604, %v593, 0.0
  %v679 = vadd.f32 %v677, %v678
  %v680 = vsel %vm604, %v141, 0.0
  %v681 = vsel %vm604, %v206, 0.0
  %v682 = vadd.f32 %v680, %v681
  %v683 = vsel %vm604, %v271, 0.0
  %v684 = vadd.f32 %v682, %v683
  %v685 = vsel %vm604, %v336, 0.0
  %v686 = vadd.f32 %v684, %v685
  %v687 = vsel %vm604, %v401, 0.0
  %v688 = vadd.f32 %v686, %v687
  %v689 = vsel %vm604, %v466, 0.0
  %v690 = vadd.f32 %v688, %v689
  %v691 = vsel %vm604, %v531, 0.0
  %v692 = vadd.f32 %v690, %v691
  %v693 = vsel %vm604, %v596, 0.0
  %v694 = vadd.f32 %v692, %v693
  %v695 = vsel %vm604, %v144, 0.0
  %v696 = vsel %vm604, %v209, 0.0
  %v697 = vadd.f32 %v695, %v696
  %v698 = vsel %vm604, %v274, 0.0
  %v699 = vadd.f32 %v697, %v698
  %v700 = vsel %vm604, %v339, 0.0
  %v701 = vadd.f32 %v699, %v700
  %v702 = vsel %vm604, %v404, 0.0
  %v703 = vadd.f32 %v701, %v702
  %v704 = vsel %vm604, %v469, 0.0
  %v705 = vadd.f32 %v703, %v704
  %v706 = vsel %vm604, %v534, 0.0
  %v707 = vadd.f32 %v705, %v706
  %v708 = vsel %vm604, %v599, 0.0
  %v709 = vadd.f32 %v707, %v708
  %v710 = vsel %vm604, %v147, 0.0
  %v711 = vsel %vm604, %v212, 0.0
  %v712 = vadd.f32 %v710, %v711
  %v713 = vsel %vm604, %v277, 0.0
  %v714 = vadd.f32 %v712, %v713
  %v715 = vsel %vm604, %v342, 0.0
  %v716 = vadd.f32 %v714, %v715
  %v717 = vsel %vm604, %v407, 0.0
  %v718 = vadd.f32 %v716, %v717
  %v719 = vsel %vm604, %v472, 0.0
  %v720 = vadd.f32 %v718, %v719
  %v721 = vsel %vm604, %v537, 0.0
  %v722 = vadd.f32 %v720, %v721
  %v723 = vsel %vm604, %v602, 0.0
  %v724 = vadd.f32 %v722, %v723
  %v725 = vadd.f32 %v619, 0.0
  %v726 = vadd.f32 %v634, 0.0
  %v727 = vadd.f32 %v649, 0.0
  %v728 = vadd.f32 %v664, 0.0
  %v729 = vadd.f32 %v679, 0.0
  %v730 = vadd.f32 %v694, 0.0
  %v731 = vadd.f32 %v709, 0.0
  %v732 = vadd.f32 %v724, 0.0
  %v733 = vmul.f32 %v725, 0.25
  %v734 = vmul.f32 %v726, 0.25
  %v735 = vmul.f32 %v727, 0.25
  %v736 = vmul.f32 %v728, 0.25
  %v737 = vmul.f32 %v729, 0.25
  %v738 = vmul.f32 %v730, 0.25
  %v739 = vmul.f32 %v731, 0.25
  %v740 = vmul.f32 %v732, 0.25
  %v741 = vmul.f32 %v733, %v733
  %v742 = vmul.f32 %v734, %v734
  %v743 = vmul.f32 %v735, %v735
  %v744 = vmul.f32 %v736, %v736
  %v745 = vmul.f32 %v737, %v737
  %v746 = vmul.f32 %v738, %v738
  %v747 = vmul.f32 %v739, %v739
  %v748 = vmul.f32 %v740, %v740
  %v749 = vsel %vm604, %v741, 0.0
  %v750 = vsel %vm604, %v742, 0.0
  %v751 = vadd.f32 %v749, %v750
  %v752 = vrot.slane %v751, 4
  %v753 = vadd.f32 %v751, %v752
  %v754 = vrot.slane %v753, 2
  %v755 = vadd.f32 %v753, %v754
  %v756 = vrot.slane %v755, 1
  %v757 = vadd.f32 %v755, %v756
  %v758 = vsel %vm604, %v743, 0.0
  %v759 = vsel %vm604, %v744, 0.0
  %v760 = vadd.f32 %v758, %v759
  %v761 = vrot.slane %v760, 4
  %v762 = vadd.f32 %v760, %v761
  %v763 = vrot.slane %v762, 2
  %v764 = vadd.f32 %v762, %v763
  %v765 = vrot.slane %v764, 1
  %v766 = vadd.f32 %v764, %v765
  %v767 = vsel %vm604, %v745, 0.0
  %v768 = vsel %vm604, %v746, 0.0
  %v769 = vadd.f32 %v767, %v768
  %v770 = vrot.slane %v769, 4
  %v771 = vadd.f32 %v769, %v770
  %v772 = vrot.slane %v771, 2
  %v773 = vadd.f32 %v771, %v772
  %v774 = vrot.slane %v773, 1
  %v775 = vadd.f32 %v773, %v774
  %v776 = vsel %vm604, %v747, 0.0
  %v777 = vsel %vm604, %v748, 0.0
  %v778 = vadd.f32 %v776, %v777
  %v779 = vrot.slane %v778, 4
  %v780 = vadd.f32 %v778, %v779
  %v781 = vrot.slane %v780, 2
  %v782 = vadd.f32 %v780, %v781
  %v783 = vrot.slane %v782, 1
  %v784 = vadd.f32 %v782, %v783
  %v785 = vadd.f32 %v757, 1.0
  %v786 = vadd.f32 %v766, 1.0
  %v787 = vadd.f32 %v775, 1.0
  %v788 = vadd.f32 %v784, 1.0
  %v789 = vrcp.pop %v785
  %v790 = vmul.f32 %v785, %v789
  %v791 = vsub.f32 1.0, %v790
  %v792 = vmul.f32 %v789, %v791
  %v793 = vadd.f32 %v789, %v792
  %vm794 = vweird.f32 %v785
  %vm795 = vweird.f32 %v789
  %vm796 = vmor %vm794, %vm795
  %v797 = vsel %vm796, %v789, %v793
  %v798 = vand.u32 2147483647, %v785
  %vm799 = vcmp.eq.f32.partialorder %v798, 8.507059e+37
  %v800 = vand.u32 %v785, 2147483648
  %v801 = vor.u32 1.1754944e-38, %v800
  %v802 = vsel %vm799, %v801, %v797
  %v803 = vmul.f32 %v757, %v802
  %v804 = vrcp.pop %v786
  %v805 = vmul.f32 %v786, %v804
  %v806 = vsub.f32 1.0, %v805
  %v807 = vmul.f32 %v804, %v806
  %v808 = vadd.f32 %v804, %v807
  %vm809 = vweird.f32 %v786
  %vm810 = vweird.f32 %v804
  %vm811 = vmor %vm809, %vm810
  %v812 = vsel %vm811, %v804, %v808
  %v813 = vand.u32 2147483647, %v786
  %vm814 = vcmp.eq.f32.partialorder %v813, 8.507059e+37
  %v815 = vand.u32 %v786, 2147483648
  %v816 = vor.u32 1.1754944e-38, %v815
  %v817 = vsel %vm814, %v816, %v812
  %v818 = vmul.f32 %v766, %v817
  %v819 = vrcp.pop %v787
  %v820 = vmul.f32 %v787, %v819
  %v821 = vsub.f32 1.0, %v820
  %v822 = vmul.f32 %v819, %v821
  %v823 = vadd.f32 %v819, %v822
  %vm824 = vweird.f32 %v787
  %vm825 = vweird.f32 %v819
  %vm826 = vmor %vm824, %vm825
  %v827 = vsel %vm826, %v819, %v823
  %v828 = vand.u32 2147483647, %v787
  %vm829 = vcmp.eq.f32.partialorder %v828, 8.507059e+37
  %v830 = vand.u32 %v787, 2147483648
  %v831 = vor.u32 1.1754944e-38, %v830
  %v832 = vsel %vm829, %v831, %v827
  %v833 = vmul.f32 %v775, %v832
  %v834 = vrcp.pop %v788
  %v835 = vmul.f32 %v788, %v834
  %v836 = vsub.f32 1.0, %v835
  %v837 = vmul.f32 %v834, %v836
  %v838 = vadd.f32 %v834, %v837
  %vm839 = vweird.f32 %v788
  %vm840 = vweird.f32 %v834
  %vm841 = vmor %vm839, %vm840
  %v842 = vsel %vm841, %v834, %v838
  %v843 = vand.u32 2147483647, %v788
  %vm844 = vcmp.eq.f32.partialorder %v843, 8.507059e+37
  %v845 = vand.u32 %v788, 2147483648
  %v846 = vor.u32 1.1754944e-38, %v845
  %v847 = vsel %vm844, %v846, %v842
  %v848 = vmul.f32 %v784, %v847
  %v849 = vmul.f32 %v803, %v733
  %v850 = vmul.f32 %v803, %v734
  %v851 = vmul.f32 %v818, %v735
  %v852 = vmul.f32 %v818, %v736
  %v853 = vmul.f32 %v833, %v737
  %v854 = vmul.f32 %v833, %v738
  %v855 = vmul.f32 %v848, %v739
  %v856 = vmul.f32 %v848, %v740
  %v857 = vrsqrt.pop %v757
  %v858 = vmul.f32 %v857, %v757
  %v859 = vmul.f32 %v858, %v857
  %v860 = vmul.f32 0.5, %v859
  %v861 = vsub.f32 1.5, %v860
  %v862 = vmul.f32 %v857, %v861
  %v863 = vmul.f32 %v757, %v862
  %vm864 = vcmp.eq.f32.partialorder %v757, inf
  %v865 = vsel %vm864, %v757, %v863
  %vm866 = vcmp.eq.f32.partialorder %v757, 0.0
  %v867 = vand.u32 %v757, 2147483648
  %v868 = vsel %vm866, %v867, %v865
  %v869 = vrsqrt.pop %v766
  %v870 = vmul.f32 %v869, %v766
  %v871 = vmul.f32 %v870, %v869
  %v872 = vmul.f32 0.5, %v871
  %v873 = vsub.f32 1.5, %v872
  %v874 = vmul.f32 %v869, %v873
  %v875 = vmul.f32 %v766, %v874
  %vm876 = vcmp.eq.f32.partialorder %v766, inf
  %v877 = vsel %vm876, %v766, %v875
  %vm878 = vcmp.eq.f32.partialorder %v766, 0.0
  %v879 = vand.u32 %v766, 2147483648
  %v880 = vsel %vm878, %v879, %v877
  %v881 = vrsqrt.pop %v775
  %v882 = vmul.f32 %v881, %v775
  %v883 = vmul.f32 %v882, %v881
  %v884 = vmul.f32 0.5, %v883
  %v885 = vsub.f32 1.5, %v884
  %v886 = vmul.f32 %v881, %v885
  %v887 = vmul.f32 %v775, %v886
  %vm888 = vcmp.eq.f32.partialorder %v775, inf
  %v889 = vsel %vm888, %v775, %v887
  %vm890 = vcmp.eq.f32.partialorder %v775, 0.0
  %v891 = vand.u32 %v775, 2147483648
  %v892 = vsel %vm890, %v891, %v889
  %v893 = vrsqrt.pop %v784
  %v894 = vmul.f32 %v893, %v784
  %v895 = vmul.f32 %v894, %v893
  %v896 = vmul.f32 0.5, %v895
  %v897 = vsub.f32 1.5, %v896
  %v898 = vmul.f32 %v893, %v897
  %v899 = vmul.f32 %v784, %v898
  %vm900 = vcmp.eq.f32.partialorder %v784, inf
  %v901 = vsel %vm900, %v784, %v899
  %vm902 = vcmp.eq.f32.partialorder %v784, 0.0
  %v903 = vand.u32 %v784, 2147483648
  %v904 = vsel %vm902, %v903, %v901
  %v905 = vadd.f32 %v868, 1e-08
  %v906 = vadd.f32 %v880, 1e-08
  %v907 = vadd.f32 %v892, 1e-08
  %v908 = vadd.f32 %v904, 1e-08
  %v909 = vrcp.pop %v905
  %v910 = vmul.f32 %v905, %v909
  %v911 = vsub.f32 1.0, %v910
  %v912 = vmul.f32 %v909, %v911
  %v913 = vadd.f32 %v909, %v912
  %vm914 = vweird.f32 %v905
  %vm915 = vweird.f32 %v909
  %vm916 = vmor %vm914, %vm915
  %v917 = vsel %vm916, %v909, %v913
  %v918 = vand.u32 2147483647, %v905
  %vm919 = vcmp.eq.f32.partialorder %v918, 8.507059e+37
  %v920 = vand.u32 %v905, 2147483648
  %v921 = vor.u32 1.1754944e-38, %v920
  %v922 = vsel %vm919, %v921, %v917
  %v923 = vmul.f32 %v849, %v922
  %v924 = vmul.f32 %v850, %v922
  %v925 = vrcp.pop %v906
  %v926 = vmul.f32 %v906, %v925
  %v927 = vsub.f32 1.0, %v926
  %v928 = vmul.f32 %v925, %v927
  %v929 = vadd.f32 %v925, %v928
  %vm930 = vweird.f32 %v906
  %vm931 = vweird.f32 %v925
  %vm932 = vmor %vm930, %vm931
  %v933 = vsel %vm932, %v925, %v929
  %v934 = vand.u32 2147483647, %v906
  %vm935 = vcmp.eq.f32.partialorder %v934, 8.507059e+37
  %v936 = vand.u32 %v906, 2147483648
  %v937 = vor.u32 1.1754944e-38, %v936
  %v938 = vsel %vm935, %v937, %v933
  %v939 = vmul.f32 %v851, %v938
  %v940 = vmul.f32 %v852, %v938
  %v941 = vrcp.pop %v907
  %v942 = vmul.f32 %v907, %v941
  %v943 = vsub.f32 1.0, %v942
  %v944 = vmul.f32 %v941, %v943
  %v945 = vadd.f32 %v941, %v944
  %vm946 = vweird.f32 %v907
  %vm947 = vweird.f32 %v941
  %vm948 = vmor %vm946, %vm947
  %v949 = vsel %vm948, %v941, %v945
  %v950 = vand.u32 2147483647, %v907
  %vm951 = vcmp.eq.f32.partialorder %v950, 8.507059e+37
  %v952 = vand.u32 %v907, 2147483648
  %v953 = vor.u32 1.1754944e-38, %v952
  %v954 = vsel %vm951, %v953, %v949
  %v955 = vmul.f32 %v853, %v954
  %v956 = vmul.f32 %v854, %v954
  %v957 = vrcp.pop %v908
  %v958 = vmul.f32 %v908, %v957
  %v959 = vsub.f32 1.0, %v958
  %v960 = vmul.f32 %v957, %v959
  %v961 = vadd.f32 %v957, %v960
  %vm962 = vweird.f32 %v908
  %vm963 = vweird.f32 %v957
  %vm964 = vmor %vm962, %vm963
  %v965 = vsel %vm964, %v957, %v961
  %v966 = vand.u32 2147483647, %v908
  %vm967 = vcmp.eq.f32.partialorder %v966, 8.507059e+37
  %v968 = vand.u32 %v908, 2147483648
  %v969 = vor.u32 1.1754944e-38, %v968
  %v970 = vsel %vm967, %v969, %v965
  %v971 = vmul.f32 %v855, %v970
  %v972 = vmul.f32 %v856, %v970
  %v973 = vmul.f32 %v126, %v923
  %v974 = vmul.f32 %v129, %v924
  %v975 = vmul.f32 %v132, %v939
  %v976 = vmul.f32 %v135, %v940
  %v977 = vmul.f32 %v138, %v955
  %v978 = vmul.f32 %v141, %v956
  %v979 = vmul.f32 %v144, %v971
  %v980 = vmul.f32 %v147, %v972
  %v981 = vmul.f32 %v191, %v923
  %v982 = vmul.f32 %v194, %v924
  %v983 = vmul.f32 %v197, %v939
  %v984 = vmul.f32 %v200, %v940
  %v985 = vmul.f32 %v203, %v955
  %v986 = vmul.f32 %v206, %v956
  %v987 = vmul.f32 %v209, %v971
  %v988 = vmul.f32 %v212, %v972
  %v989 = vmul.f32 %v256, %v923
  %v990 = vmul.f32 %v259, %v924
  %v991 = vmul.f32 %v262, %v939
  %v992 = vmul.f32 %v265, %v940
  %v993 = vmul.f32 %v268, %v955
  %v994 = vmul.f32 %v271, %v956
  %v995 = vmul.f32 %v274, %v971
  %v996 = vmul.f32 %v277, %v972
  %v997 = vmul.f32 %v321, %v923
  %v998 = vmul.f32 %v324, %v924
  %v999 = vmul.f32 %v327, %v939
  %v1000 = vmul.f32 %v330, %v940
  %v1001 = vmul.f32 %v333, %v955
  %v1002 = vmul.f32 %v336, %v956
  %v1003 = vmul.f32 %v339, %v971
  %v1004 = vmul.f32 %v342, %v972
  %v1005 = vmul.f32 %v386, %v923
  %v1006 = vmul.f32 %v389, %v924
  %v1007 = vmul.f32 %v392, %v939
  %v1008 = vmul.f32 %v395, %v940
  %v1009 = vmul.f32 %v398, %v955
  %v1010 = vmul.f32 %v401, %v956
  %v1011 = vmul.f32 %v404, %v971
  %v1012 = vmul.f32 %v407, %v972
  %v1013 = vmul.f32 %v451, %v923
  %v1014 = vmul.f32 %v454, %v924
  %v1015 = vmul.f32 %v457, %v939
  %v1016 = vmul.f32 %v460, %v940
  %v1017 = vmul.f32 %v463, %v955
  %v1018 = vmul.f32 %v466, %v956
  %v1019 = vmul.f32 %v469, %v971
  %v1020 = vmul.f32 %v472, %v972
  %v1021 = vmul.f32 %v516, %v923
  %v1022 = vmul.f32 %v519, %v924
  %v1023 = vmul.f32 %v522, %v939
  %v1024 = vmul.f32 %v525, %v940
  %v1025 = vmul.f32 %v528, %v955
  %v1026 = vmul.f32 %v531, %v956
  %v1027 = vmul.f32 %v534, %v971
  %v1028 = vmul.f32 %v537, %v972
  %v1029 = vmul.f32 %v581, %v923
  %v1030 = vmul.f32 %v584, %v924
  %v1031 = vmul.f32 %v587, %v939
  %v1032 = vmul.f32 %v590, %v940
  %v1033 = vmul.f32 %v593, %v955
  %v1034 = vmul.f32 %v596, %v956
  %v1035 = vmul.f32 %v599, %v971
  %v1036 = vmul.f32 %v602, %v972
  %v1037 = vsel %vm604, %v973, 0.0
  %v1038 = vsel %vm604, %v974, 0.0
  %v1039 = vadd.f32 %v1037, %v1038
  %v1040 = vrot.slane %v1039, 4
  %v1041 = vadd.f32 %v1039, %v1040
  %v1042 = vrot.slane %v1041, 2
  %v1043 = vadd.f32 %v1041, %v1042
  %v1044 = vrot.slane %v1043, 1
  %v1045 = vadd.f32 %v1043, %v1044
  %v1046 = vsel %vm604, %v975, 0.0
  %v1047 = vsel %vm604, %v976, 0.0
  %v1048 = vadd.f32 %v1046, %v1047
  %v1049 = vrot.slane %v1048, 4
  %v1050 = vadd.f32 %v1048, %v1049
  %v1051 = vrot.slane %v1050, 2
  %v1052 = vadd.f32 %v1050, %v1051
  %v1053 = vrot.slane %v1052, 1
  %v1054 = vadd.f32 %v1052, %v1053
  %v1055 = vsel %vm604, %v977, 0.0
  %v1056 = vsel %vm604, %v978, 0.0
  %v1057 = vadd.f32 %v1055, %v1056
  %v1058 = vrot.slane %v1057, 4
  %v1059 = vadd.f32 %v1057, %v1058
  %v1060 = vrot.slane %v1059, 2
  %v1061 = vadd.f32 %v1059, %v1060
  %v1062 = vrot.slane %v1061, 1
  %v1063 = vadd.f32 %v1061, %v1062
  %v1064 = vsel %vm604, %v979, 0.0
  %v1065 = vsel %vm604, %v980, 0.0
  %v1066 = vadd.f32 %v1064, %v1065
  %v1067 = vrot.slane %v1066, 4
  %v1068 = vadd.f32 %v1066, %v1067
  %v1069 = vrot.slane %v1068, 2
  %v1070 = vadd.f32 %v1068, %v1069
  %v1071 = vrot.slane %v1070, 1
  %v1072 = vadd.f32 %v1070, %v1071
  %v1073 = vsel %vm604, %v981, 0.0
  %v1074 = vsel %vm604, %v982, 0.0
  %v1075 = vadd.f32 %v1073, %v1074
  %v1076 = vrot.slane %v1075, 4
  %v1077 = vadd.f32 %v1075, %v1076
  %v1078 = vrot.slane %v1077, 2
  %v1079 = vadd.f32 %v1077, %v1078
  %v1080 = vrot.slane %v1079, 1
  %v1081 = vadd.f32 %v1079, %v1080
  %v1082 = vsel %vm604, %v983, 0.0
  %v1083 = vsel %vm604, %v984, 0.0
  %v1084 = vadd.f32 %v1082, %v1083
  %v1085 = vrot.slane %v1084, 4
  %v1086 = vadd.f32 %v1084, %v1085
  %v1087 = vrot.slane %v1086, 2
  %v1088 = vadd.f32 %v1086, %v1087
  %v1089 = vrot.slane %v1088, 1
  %v1090 = vadd.f32 %v1088, %v1089
  %v1091 = vsel %vm604, %v985, 0.0
  %v1092 = vsel %vm604, %v986, 0.0
  %v1093 = vadd.f32 %v1091, %v1092
  %v1094 = vrot.slane %v1093, 4
  %v1095 = vadd.f32 %v1093, %v1094
  %v1096 = vrot.slane %v1095, 2
  %v1097 = vadd.f32 %v1095, %v1096
  %v1098 = vrot.slane %v1097, 1
  %v1099 = vadd.f32 %v1097, %v1098
  %v1100 = vsel %vm604, %v987, 0.0
  %v1101 = vsel %vm604, %v988, 0.0
  %v1102 = vadd.f32 %v1100, %v1101
  %v1103 = vrot.slane %v1102, 4
  %v1104 = vadd.f32 %v1102, %v1103
  %v1105 = vrot.slane %v1104, 2
  %v1106 = vadd.f32 %v1104, %v1105
  %v1107 = vrot.slane %v1106, 1
  %v1108 = vadd.f32 %v1106, %v1107
  %v1109 = vsel %vm604, %v989, 0.0
  %v1110 = vsel %vm604, %v990, 0.0
  %v1111 = vadd.f32 %v1109, %v1110
  %v1112 = vrot.slane %v1111, 4
  %v1113 = vadd.f32 %v1111, %v1112
  %v1114 = vrot.slane %v1113, 2
  %v1115 = vadd.f32 %v1113, %v1114
  %v1116 = vrot.slane %v1115, 1
  %v1117 = vadd.f32 %v1115, %v1116
  %v1118 = vsel %vm604, %v991, 0.0
  %v1119 = vsel %vm604, %v992, 0.0
  %v1120 = vadd.f32 %v1118, %v1119
  %v1121 = vrot.slane %v1120, 4
  %v1122 = vadd.f32 %v1120, %v1121
  %v1123 = vrot.slane %v1122, 2
  %v1124 = vadd.f32 %v1122, %v1123
  %v1125 = vrot.slane %v1124, 1
  %v1126 = vadd.f32 %v1124, %v1125
  %v1127 = vsel %vm604, %v993, 0.0
  %v1128 = vsel %vm604, %v994, 0.0
  %v1129 = vadd.f32 %v1127, %v1128
  %v1130 = vrot.slane %v1129, 4
  %v1131 = vadd.f32 %v1129, %v1130
  %v1132 = vrot.slane %v1131, 2
  %v1133 = vadd.f32 %v1131, %v1132
  %v1134 = vrot.slane %v1133, 1
  %v1135 = vadd.f32 %v1133, %v1134
  %v1136 = vsel %vm604, %v995, 0.0
  %v1137 = vsel %vm604, %v996, 0.0
  %v1138 = vadd.f32 %v1136, %v1137
  %v1139 = vrot.slane %v1138, 4
  %v1140 = vadd.f32 %v1138, %v1139
  %v1141 = vrot.slane %v1140, 2
  %v1142 = vadd.f32 %v1140, %v1141
  %v1143 = vrot.slane %v1142, 1
  %v1144 = vadd.f32 %v1142, %v1143
  %v1145 = vsel %vm604, %v997, 0.0
  %v1146 = vsel %vm604, %v998, 0.0
  %v1147 = vadd.f32 %v1145, %v1146
  %v1148 = vrot.slane %v1147, 4
  %v1149 = vadd.f32 %v1147, %v1148
  %v1150 = vrot.slane %v1149, 2
  %v1151 = vadd.f32 %v1149, %v1150
  %v1152 = vrot.slane %v1151, 1
  %v1153 = vadd.f32 %v1151, %v1152
  %v1154 = vsel %vm604, %v999, 0.0
  %v1155 = vsel %vm604, %v1000, 0.0
  %v1156 = vadd.f32 %v1154, %v1155
  %v1157 = vrot.slane %v1156, 4
  %v1158 = vadd.f32 %v1156, %v1157
  %v1159 = vrot.slane %v1158, 2
  %v1160 = vadd.f32 %v1158, %v1159
  %v1161 = vrot.slane %v1160, 1
  %v1162 = vadd.f32 %v1160, %v1161
  %v1163 = vsel %vm604, %v1001, 0.0
  %v1164 = vsel %vm604, %v1002, 0.0
  %v1165 = vadd.f32 %v1163, %v1164
  %v1166 = vrot.slane %v1165, 4
  %v1167 = vadd.f32 %v1165, %v1166
  %v1168 = vrot.slane %v1167, 2
  %v1169 = vadd.f32 %v1167, %v1168
  %v1170 = vrot.slane %v1169, 1
  %v1171 = vadd.f32 %v1169, %v1170
  %v1172 = vsel %vm604, %v1003, 0.0
  %v1173 = vsel %vm604, %v1004, 0.0
  %v1174 = vadd.f32 %v1172, %v1173
  %v1175 = vrot.slane %v1174, 4
  %v1176 = vadd.f32 %v1174, %v1175
  %v1177 = vrot.slane %v1176, 2
  %v1178 = vadd.f32 %v1176, %v1177
  %v1179 = vrot.slane %v1178, 1
  %v1180 = vadd.f32 %v1178, %v1179
  %v1181 = vsel %vm604, %v1005, 0.0
  %v1182 = vsel %vm604, %v1006, 0.0
  %v1183 = vadd.f32 %v1181, %v1182
  %v1184 = vrot.slane %v1183, 4
  %v1185 = vadd.f32 %v1183, %v1184
  %v1186 = vrot.slane %v1185, 2
  %v1187 = vadd.f32 %v1185, %v1186
  %v1188 = vrot.slane %v1187, 1
  %v1189 = vadd.f32 %v1187, %v1188
  %v1190 = vsel %vm604, %v1007, 0.0
  %v1191 = vsel %vm604, %v1008, 0.0
  %v1192 = vadd.f32 %v1190, %v1191
  %v1193 = vrot.slane %v1192, 4
  %v1194 = vadd.f32 %v1192, %v1193
  %v1195 = vrot.slane %v1194, 2
  %v1196 = vadd.f32 %v1194, %v1195
  %v1197 = vrot.slane %v1196, 1
  %v1198 = vadd.f32 %v1196, %v1197
  %v1199 = vsel %vm604, %v1009, 0.0
  %v1200 = vsel %vm604, %v1010, 0.0
  %v1201 = vadd.f32 %v1199, %v1200
  %v1202 = vrot.slane %v1201, 4
  %v1203 = vadd.f32 %v1201, %v1202
  %v1204 = vrot.slane %v1203, 2
  %v1205 = vadd.f32 %v1203, %v1204
  %v1206 = vrot.slane %v1205, 1
  %v1207 = vadd.f32 %v1205, %v1206
  %v1208 = vsel %vm604, %v1011, 0.0
  %v1209 = vsel %vm604, %v1012, 0.0
  %v1210 = vadd.f32 %v1208, %v1209
  %v1211 = vrot.slane %v1210, 4
  %v1212 = vadd.f32 %v1210, %v1211
  %v1213 = vrot.slane %v1212, 2
  %v1214 = vadd.f32 %v1212, %v1213
  %v1215 = vrot.slane %v1214, 1
  %v1216 = vadd.f32 %v1214, %v1215
  %v1217 = vsel %vm604, %v1013, 0.0
  %v1218 = vsel %vm604, %v1014, 0.0
  %v1219 = vadd.f32 %v1217, %v1218
  %v1220 = vrot.slane %v1219, 4
  %v1221 = vadd.f32 %v1219, %v1220
  %v1222 = vrot.slane %v1221, 2
  %v1223 = vadd.f32 %v1221, %v1222
  %v1224 = vrot.slane %v1223, 1
  %v1225 = vadd.f32 %v1223, %v1224
  %v1226 = vsel %vm604, %v1015, 0.0
  %v1227 = vsel %vm604, %v1016, 0.0
  %v1228 = vadd.f32 %v1226, %v1227
  %v1229 = vrot.slane %v1228, 4
  %v1230 = vadd.f32 %v1228, %v1229
  %v1231 = vrot.slane %v1230, 2
  %v1232 = vadd.f32 %v1230, %v1231
  %v1233 = vrot.slane %v1232, 1
  %v1234 = vadd.f32 %v1232, %v1233
  %v1235 = vsel %vm604, %v1017, 0.0
  %v1236 = vsel %vm604, %v1018, 0.0
  %v1237 = vadd.f32 %v1235, %v1236
  %v1238 = vrot.slane %v1237, 4
  %v1239 = vadd.f32 %v1237, %v1238
  %v1240 = vrot.slane %v1239, 2
  %v1241 = vadd.f32 %v1239, %v1240
  %v1242 = vrot.slane %v1241, 1
  %v1243 = vadd.f32 %v1241, %v1242
  %v1244 = vsel %vm604, %v1019, 0.0
  %v1245 = vsel %vm604, %v1020, 0.0
  %v1246 = vadd.f32 %v1244, %v1245
  %v1247 = vrot.slane %v1246, 4
  %v1248 = vadd.f32 %v1246, %v1247
  %v1249 = vrot.slane %v1248, 2
  %v1250 = vadd.f32 %v1248, %v1249
  %v1251 = vrot.slane %v1250, 1
  %v1252 = vadd.f32 %v1250, %v1251
  %v1253 = vsel %vm604, %v1021, 0.0
  %v1254 = vsel %vm604, %v1022, 0.0
  %v1255 = vadd.f32 %v1253, %v1254
  %v1256 = vrot.slane %v1255, 4
  %v1257 = vadd.f32 %v1255, %v1256
  %v1258 = vrot.slane %v1257, 2
  %v1259 = vadd.f32 %v1257, %v1258
  %v1260 = vrot.slane %v1259, 1
  %v1261 = vadd.f32 %v1259, %v1260
  %v1262 = vsel %vm604, %v1023, 0.0
  %v1263 = vsel %vm604, %v1024, 0.0
  %v1264 = vadd.f32 %v1262, %v1263
  %v1265 = vrot.slane %v1264, 4
  %v1266 = vadd.f32 %v1264, %v1265
  %v1267 = vrot.slane %v1266, 2
  %v1268 = vadd.f32 %v1266, %v1267
  %v1269 = vrot.slane %v1268, 1
  %v1270 = vadd.f32 %v1268, %v1269
  %v1271 = vsel %vm604, %v1025, 0.0
  %v1272 = vsel %vm604, %v1026, 0.0
  %v1273 = vadd.f32 %v1271, %v1272
  %v1274 = vrot.slane %v1273, 4
  %v1275 = vadd.f32 %v1273, %v1274
  %v1276 = vrot.slane %v1275, 2
  %v1277 = vadd.f32 %v1275, %v1276
  %v1278 = vrot.slane %v1277, 1
  %v1279 = vadd.f32 %v1277, %v1278
  %v1280 = vsel %vm604, %v1027, 0.0
  %v1281 = vsel %vm604, %v1028, 0.0
  %v1282 = vadd.f32 %v1280, %v1281
  %v1283 = vrot.slane %v1282, 4
  %v1284 = vadd.f32 %v1282, %v1283
  %v1285 = vrot.slane %v1284, 2
  %v1286 = vadd.f32 %v1284, %v1285
  %v1287 = vrot.slane %v1286, 1
  %v1288 = vadd.f32 %v1286, %v1287
  %v1289 = vsel %vm604, %v1029, 0.0
  %v1290 = vsel %vm604, %v1030, 0.0
  %v1291 = vadd.f32 %v1289, %v1290
  %v1292 = vrot.slane %v1291, 4
  %v1293 = vadd.f32 %v1291, %v1292
  %v1294 = vrot.slane %v1293, 2
  %v1295 = vadd.f32 %v1293, %v1294
  %v1296 = vrot.slane %v1295, 1
  %v1297 = vadd.f32 %v1295, %v1296
  %v1298 = vsel %vm604, %v1031, 0.0
  %v1299 = vsel %vm604, %v1032, 0.0
  %v1300 = vadd.f32 %v1298, %v1299
  %v1301 = vrot.slane %v1300, 4
  %v1302 = vadd.f32 %v1300, %v1301
  %v1303 = vrot.slane %v1302, 2
  %v1304 = vadd.f32 %v1302, %v1303
  %v1305 = vrot.slane %v1304, 1
  %v1306 = vadd.f32 %v1304, %v1305
  %v1307 = vsel %vm604, %v1033, 0.0
  %v1308 = vsel %vm604, %v1034, 0.0
  %v1309 = vadd.f32 %v1307, %v1308
  %v1310 = vrot.slane %v1309, 4
  %v1311 = vadd.f32 %v1309, %v1310
  %v1312 = vrot.slane %v1311, 2
  %v1313 = vadd.f32 %v1311, %v1312
  %v1314 = vrot.slane %v1313, 1
  %v1315 = vadd.f32 %v1313, %v1314
  %v1316 = vsel %vm604, %v1035, 0.0
  %v1317 = vsel %vm604, %v1036, 0.0
  %v1318 = vadd.f32 %v1316, %v1317
  %v1319 = vrot.slane %v1318, 4
  %v1320 = vadd.f32 %v1318, %v1319
  %v1321 = vrot.slane %v1320, 2
  %v1322 = vadd.f32 %v1320, %v1321
  %v1323 = vrot.slane %v1322, 1
  %v1324 = vadd.f32 %v1322, %v1323
  %v1325 = vsel %vm604, %v1045, -inf
  %v1326 = vsel %vm604, %v1054, -inf
  %v1327 = vmax.f32 %v1325, %v1326
  %v1328 = vsel %vm604, %v1063, -inf
  %v1329 = vmax.f32 %v1327, %v1328
  %v1330 = vsel %vm604, %v1072, -inf
  %v1331 = vmax.f32 %v1329, %v1330
  %v1332 = vsel %vm604, %v1081, -inf
  %v1333 = vsel %vm604, %v1090, -inf
  %v1334 = vmax.f32 %v1332, %v1333
  %v1335 = vsel %vm604, %v1099, -inf
  %v1336 = vmax.f32 %v1334, %v1335
  %v1337 = vsel %vm604, %v1108, -inf
  %v1338 = vmax.f32 %v1336, %v1337
  %v1339 = vsel %vm604, %v1117, -inf
  %v1340 = vsel %vm604, %v1126, -inf
  %v1341 = vmax.f32 %v1339, %v1340
  %v1342 = vsel %vm604, %v1135, -inf
  %v1343 = vmax.f32 %v1341, %v1342
  %v1344 = vsel %vm604, %v1144, -inf
  %v1345 = vmax.f32 %v1343, %v1344
  %v1346 = vsel %vm604, %v1153, -inf
  %v1347 = vsel %vm604, %v1162, -inf
  %v1348 = vmax.f32 %v1346, %v1347
  %v1349 = vsel %vm604, %v1171, -inf
  %v1350 = vmax.f32 %v1348, %v1349
  %v1351 = vsel %vm604, %v1180, -inf
  %v1352 = vmax.f32 %v1350, %v1351
  %v1353 = vsel %vm604, %v1189, -inf
  %v1354 = vsel %vm604, %v1198, -inf
  %v1355 = vmax.f32 %v1353, %v1354
  %v1356 = vsel %vm604, %v1207, -inf
  %v1357 = vmax.f32 %v1355, %v1356
  %v1358 = vsel %vm604, %v1216, -inf
  %v1359 = vmax.f32 %v1357, %v1358
  %v1360 = vsel %vm604, %v1225, -inf
  %v1361 = vsel %vm604, %v1234, -inf
  %v1362 = vmax.f32 %v1360, %v1361
  %v1363 = vsel %vm604, %v1243, -inf
  %v1364 = vmax.f32 %v1362, %v1363
  %v1365 = vsel %vm604, %v1252, -inf
  %v1366 = vmax.f32 %v1364, %v1365
  %v1367 = vsel %vm604, %v1261, -inf
  %v1368 = vsel %vm604, %v1270, -inf
  %v1369 = vmax.f32 %v1367, %v1368
  %v1370 = vsel %vm604, %v1279, -inf
  %v1371 = vmax.f32 %v1369, %v1370
  %v1372 = vsel %vm604, %v1288, -inf
  %v1373 = vmax.f32 %v1371, %v1372
  %v1374 = vsel %vm604, %v1297, -inf
  %v1375 = vsel %vm604, %v1306, -inf
  %v1376 = vmax.f32 %v1374, %v1375
  %v1377 = vsel %vm604, %v1315, -inf
  %v1378 = vmax.f32 %v1376, %v1377
  %v1379 = vsel %vm604, %v1324, -inf
  %v1380 = vmax.f32 %v1378, %v1379
  %v1381 = vsub.f32 %v1045, %v1331
  %v1382 = vsub.f32 %v1054, %v1331
  %v1383 = vsub.f32 %v1063, %v1331
  %v1384 = vsub.f32 %v1072, %v1331
  %v1385 = vsub.f32 %v1081, %v1338
  %v1386 = vsub.f32 %v1090, %v1338
  %v1387 = vsub.f32 %v1099, %v1338
  %v1388 = vsub.f32 %v1108, %v1338
  %v1389 = vsub.f32 %v1117, %v1345
  %v1390 = vsub.f32 %v1126, %v1345
  %v1391 = vsub.f32 %v1135, %v1345
  %v1392 = vsub.f32 %v1144, %v1345
  %v1393 = vsub.f32 %v1153, %v1352
  %v1394 = vsub.f32 %v1162, %v1352
  %v1395 = vsub.f32 %v1171, %v1352
  %v1396 = vsub.f32 %v1180, %v1352
  %v1397 = vsub.f32 %v1189, %v1359
  %v1398 = vsub.f32 %v1198, %v1359
  %v1399 = vsub.f32 %v1207, %v1359
  %v1400 = vsub.f32 %v1216, %v1359
  %v1401 = vsub.f32 %v1225, %v1366
  %v1402 = vsub.f32 %v1234, %v1366
  %v1403 = vsub.f32 %v1243, %v1366
  %v1404 = vsub.f32 %v1252, %v1366
  %v1405 = vsub.f32 %v1261, %v1373
  %v1406 = vsub.f32 %v1270, %v1373
  %v1407 = vsub.f32 %v1279, %v1373
  %v1408 = vsub.f32 %v1288, %v1373
  %v1409 = vsub.f32 %v1297, %v1380
  %v1410 = vsub.f32 %v1306, %v1380
  %v1411 = vsub.f32 %v1315, %v1380
  %v1412 = vsub.f32 %v1324, %v1380
  %v1413 = vmul.f32 %v1381, 1.442695
  %v1414 = vpow.pop %v1413
  %v1415 = vmul.f32 %v1382, 1.442695
  %v1416 = vpow.pop %v1415
  %v1417 = vmul.f32 %v1383, 1.442695
  %v1418 = vpow.pop %v1417
  %v1419 = vmul.f32 %v1384, 1.442695
  %v1420 = vpow.pop %v1419
  %v1421 = vmul.f32 %v1385, 1.442695
  %v1422 = vpow.pop %v1421
  %v1423 = vmul.f32 %v1386, 1.442695
  %v1424 = vpow.pop %v1423
  %v1425 = vmul.f32 %v1387, 1.442695
  %v1426 = vpow.pop %v1425
  %v1427 = vmul.f32 %v1388, 1.442695
  %v1428 = vpow.pop %v1427
  %v1429 = vmul.f32 %v1389, 1.442695
  %v1430 = vpow.pop %v1429
  %v1431 = vmul.f32 %v1390, 1.442695
  %v1432 = vpow.pop %v1431
  %v1433 = vmul.f32 %v1391, 1.442695
  %v1434 = vpow.pop %v1433
  %v1435 = vmul.f32 %v1392, 1.442695
  %v1436 = vpow.pop %v1435
  %v1437 = vmul.f32 %v1393, 1.442695
  %v1438 = vpow.pop %v1437
  %v1439 = vmul.f32 %v1394, 1.442695
  %v1440 = vpow.pop %v1439
  %v1441 = vmul.f32 %v1395, 1.442695
  %v1442 = vpow.pop %v1441
  %v1443 = vmul.f32 %v1396, 1.442695
  %v1444 = vpow.pop %v1443
  %v1445 = vmul.f32 %v1397, 1.442695
  %v1446 = vpow.pop %v1445
  %v1447 = vmul.f32 %v1398, 1.442695
  %v1448 = vpow.pop %v1447
  %v1449 = vmul.f32 %v1399, 1.442695
  %v1450 = vpow.pop %v1449
  %v1451 = vmul.f32 %v1400, 1.442695
  %v1452 = vpow.pop %v1451
  %v1453 = vmul.f32 %v1401, 1.442695
  %v1454 = vpow.pop %v1453
  %v1455 = vmul.f32 %v1402, 1.442695
  %v1456 = vpow.pop %v1455
  %v1457 = vmul.f32 %v1403, 1.442695
  %v1458 = vpow.pop %v1457
  %v1459 = vmul.f32 %v1404, 1.442695
  %v1460 = vpow.pop %v1459
  %v1461 = vmul.f32 %v1405, 1.442695
  %v1462 = vpow.pop %v1461
  %v1463 = vmul.f32 %v1406, 1.442695
  %v1464 = vpow.pop %v1463
  %v1465 = vmul.f32 %v1407, 1.442695
  %v1466 = vpow.pop %v1465
  %v1467 = vmul.f32 %v1408, 1.442695
  %v1468 = vpow.pop %v1467
  %v1469 = vmul.f32 %v1409, 1.442695
  %v1470 = vpow.pop %v1469
  %v1471 = vmul.f32 %v1410, 1.442695
  %v1472 = vpow.pop %v1471
  %v1473 = vmul.f32 %v1411, 1.442695
  %v1474 = vpow.pop %v1473
  %v1475 = vmul.f32 %v1412, 1.442695
  %v1476 = vpow.pop %v1475
  %v1509 = vrot.slane %v1416, 7
  %vm1510 = vcmask 1041409
  %v1511 = vsel %vm1510, %v1509, %v1414
  %v1512 = vrot.slane %v1418, 6
  %vm1513 = vcmask 1042434
  %v1514 = vsel %vm1513, %v1512, %v1511
  %v1515 = vrot.slane %v1420, 5
  %vm1516 = vcmask 1043459
  %v1517 = vsel %vm1516, %v1515, %v1514
  %v1518 = vrot.slane %v1424, 7
  %v1519 = vsel %vm1510, %v1518, %v1422
  %v1520 = vrot.slane %v1426, 6
  %v1521 = vsel %vm1513, %v1520, %v1519
  %v1522 = vrot.slane %v1428, 5
  %v1523 = vsel %vm1516, %v1522, %v1521
  %v1524 = vrot.slane %v1432, 7
  %v1525 = vsel %vm1510, %v1524, %v1430
  %v1526 = vrot.slane %v1434, 6
  %v1527 = vsel %vm1513, %v1526, %v1525
  %v1528 = vrot.slane %v1436, 5
  %v1529 = vsel %vm1516, %v1528, %v1527
  %v1530 = vrot.slane %v1440, 7
  %v1531 = vsel %vm1510, %v1530, %v1438
  %v1532 = vrot.slane %v1442, 6
  %v1533 = vsel %vm1513, %v1532, %v1531
  %v1534 = vrot.slane %v1444, 5
  %v1535 = vsel %vm1516, %v1534, %v1533
  %v1536 = vrot.slane %v1448, 7
  %v1537 = vsel %vm1510, %v1536, %v1446
  %v1538 = vrot.slane %v1450, 6
  %v1539 = vsel %vm1513, %v1538, %v1537
  %v1540 = vrot.slane %v1452, 5
  %v1541 = vsel %vm1516, %v1540, %v1539
  %v1542 = vrot.slane %v1456, 7
  %v1543 = vsel %vm1510, %v1542, %v1454
  %v1544 = vrot.slane %v1458, 6
  %v1545 = vsel %vm1513, %v1544, %v1543
  %v1546 = vrot.slane %v1460, 5
  %v1547 = vsel %vm1516, %v1546, %v1545
  %v1548 = vrot.slane %v1464, 7
  %v1549 = vsel %vm1510, %v1548, %v1462
  %v1550 = vrot.slane %v1466, 6
  %v1551 = vsel %vm1513, %v1550, %v1549
  %v1552 = vrot.slane %v1468, 5
  %v1553 = vsel %vm1516, %v1552, %v1551
  %v1554 = vrot.slane %v1472, 7
  %v1555 = vsel %vm1510, %v1554, %v1470
  %v1556 = vrot.slane %v1474, 6
  %v1557 = vsel %vm1513, %v1556, %v1555
  %v1558 = vrot.slane %v1476, 5
  %v1559 = vsel %vm1516, %v1558, %v1557
  %vm1568 = vcmask 11264
  %v1569 = vsel %vm1568, %v1517, 0.0
  %v1570 = vrot.slane %v1569, 4
  %v1571 = vadd.f32 %v1569, %v1570
  %v1572 = vrot.slane %v1571, 2
  %v1573 = vadd.f32 %v1571, %v1572
  %v1574 = vrot.slane %v1573, 1
  %v1575 = vadd.f32 %v1573, %v1574
  %v1576 = vsel %vm1568, %v1523, 0.0
  %v1577 = vrot.slane %v1576, 4
  %v1578 = vadd.f32 %v1576, %v1577
  %v1579 = vrot.slane %v1578, 2
  %v1580 = vadd.f32 %v1578, %v1579
  %v1581 = vrot.slane %v1580, 1
  %v1582 = vadd.f32 %v1580, %v1581
  %v1583 = vsel %vm1568, %v1529, 0.0
  %v1584 = vrot.slane %v1583, 4
  %v1585 = vadd.f32 %v1583, %v1584
  %v1586 = vrot.slane %v1585, 2
  %v1587 = vadd.f32 %v1585, %v1586
  %v1588 = vrot.slane %v1587, 1
  %v1589 = vadd.f32 %v1587, %v1588
  %v1590 = vsel %vm1568, %v1535, 0.0
  %v1591 = vrot.slane %v1590, 4
  %v1592 = vadd.f32 %v1590, %v1591
  %v1593 = vrot.slane %v1592, 2
  %v1594 = vadd.f32 %v1592, %v1593
  %v1595 = vrot.slane %v1594, 1
  %v1596 = vadd.f32 %v1594, %v1595
  %v1597 = vsel %vm1568, %v1541, 0.0
  %v1598 = vrot.slane %v1597, 4
  %v1599 = vadd.f32 %v1597, %v1598
  %v1600 = vrot.slane %v1599, 2
  %v1601 = vadd.f32 %v1599, %v1600
  %v1602 = vrot.slane %v1601, 1
  %v1603 = vadd.f32 %v1601, %v1602
  %v1604 = vsel %vm1568, %v1547, 0.0
  %v1605 = vrot.slane %v1604, 4
  %v1606 = vadd.f32 %v1604, %v1605
  %v1607 = vrot.slane %v1606, 2
  %v1608 = vadd.f32 %v1606, %v1607
  %v1609 = vrot.slane %v1608, 1
  %v1610 = vadd.f32 %v1608, %v1609
  %v1611 = vsel %vm1568, %v1553, 0.0
  %v1612 = vrot.slane %v1611, 4
  %v1613 = vadd.f32 %v1611, %v1612
  %v1614 = vrot.slane %v1613, 2
  %v1615 = vadd.f32 %v1613, %v1614
  %v1616 = vrot.slane %v1615, 1
  %v1617 = vadd.f32 %v1615, %v1616
  %v1618 = vsel %vm1568, %v1559, 0.0
  %v1619 = vrot.slane %v1618, 4
  %v1620 = vadd.f32 %v1618, %v1619
  %v1621 = vrot.slane %v1620, 2
  %v1622 = vadd.f32 %v1620, %v1621
  %v1623 = vrot.slane %v1622, 1
  %v1624 = vadd.f32 %v1622, %v1623
  %v1625 = vrcp.pop %v1575
  %v1626 = vrcp.pop %v1582
  %v1627 = vrcp.pop %v1589
  %v1628 = vrcp.pop %v1596
  %v1629 = vrcp.pop %v1603
  %v1630 = vrcp.pop %v1610
  %v1631 = vrcp.pop %v1617
  %v1632 = vrcp.pop %v1624
  %v1633 = vperm.slane %v1625, 0
  %v1634 = vperm.slane %v1626, 0
  %v1635 = vperm.slane %v1627, 0
  %v1636 = vperm.slane %v1628, 0
  %v1637 = vperm.slane %v1629, 0
  %v1638 = vperm.slane %v1630, 0
  %v1639 = vperm.slane %v1631, 0
  %v1640 = vperm.slane %v1632, 0
  %v1641 = vmul.f32 %v1414, %v1633
  %v1642 = vmul.f32 %v1416, %v1633
  %v1643 = vmul.f32 %v1418, %v1633
  %v1644 = vmul.f32 %v1420, %v1633
  %v1645 = vmul.f32 %v1422, %v1634
  %v1646 = vmul.f32 %v1424, %v1634
  %v1647 = vmul.f32 %v1426, %v1634
  %v1648 = vmul.f32 %v1428, %v1634
  %v1649 = vmul.f32 %v1430, %v1635
  %v1650 = vmul.f32 %v1432, %v1635
  %v1651 = vmul.f32 %v1434, %v1635
  %v1652 = vmul.f32 %v1436, %v1635
  %v1653 = vmul.f32 %v1438, %v1636
  %v1654 = vmul.f32 %v1440, %v1636
  %v1655 = vmul.f32 %v1442, %v1636
  %v1656 = vmul.f32 %v1444, %v1636
  %v1657 = vmul.f32 %v1446, %v1637
  %v1658 = vmul.f32 %v1448, %v1637
  %v1659 = vmul.f32 %v1450, %v1637
  %v1660 = vmul.f32 %v1452, %v1637
  %v1661 = vmul.f32 %v1454, %v1638
  %v1662 = vmul.f32 %v1456, %v1638
  %v1663 = vmul.f32 %v1458, %v1638
  %v1664 = vmul.f32 %v1460, %v1638
  %v1665 = vmul.f32 %v1462, %v1639
  %v1666 = vmul.f32 %v1464, %v1639
  %v1667 = vmul.f32 %v1466, %v1639
  %v1668 = vmul.f32 %v1468, %v1639
  %v1669 = vmul.f32 %v1470, %v1640
  %v1670 = vmul.f32 %v1472, %v1640
  %v1671 = vmul.f32 %v1474, %v1640
  %v1672 = vmul.f32 %v1476, %v1640
  %v1673 = vperm.slane %v1641, 0
  %v1674 = vperm.slane %v1642, 0
  %v1675 = vperm.slane %v1643, 0
  %v1676 = vperm.slane %v1644, 0
  %v1677 = vperm.slane %v1645, 0
  %v1678 = vperm.slane %v1646, 0
  %v1679 = vperm.slane %v1647, 0
  %v1680 = vperm.slane %v1648, 0
  %v1681 = vperm.slane %v1649, 0
  %v1682 = vperm.slane %v1650, 0
  %v1683 = vperm.slane %v1651, 0
  %v1684 = vperm.slane %v1652, 0
  %v1685 = vperm.slane %v1653, 0
  %v1686 = vperm.slane %v1654, 0
  %v1687 = vperm.slane %v1655, 0
  %v1688 = vperm.slane %v1656, 0
  %v1689 = vperm.slane %v1657, 0
  %v1690 = vperm.slane %v1658, 0
  %v1691 = vperm.slane %v1659, 0
  %v1692 = vperm.slane %v1660, 0
  %v1693 = vperm.slane %v1661, 0
  %v1694 = vperm.slane %v1662, 0
  %v1695 = vperm.slane %v1663, 0
  %v1696 = vperm.slane %v1664, 0
  %v1697 = vperm.slane %v1665, 0
  %v1698 = vperm.slane %v1666, 0
  %v1699 = vperm.slane %v1667, 0
  %v1700 = vperm.slane %v1668, 0
  %v1701 = vperm.slane %v1669, 0
  %v1702 = vperm.slane %v1670, 0
  %v1703 = vperm.slane %v1671, 0
  %v1704 = vperm.slane %v1672, 0
  %v1705 = vmul.f32 %v1673, %v126
  %v1706 = vmul.f32 %v1673, %v129
  %v1707 = vmul.f32 %v1674, %v132
  %v1708 = vmul.f32 %v1674, %v135
  %v1709 = vmul.f32 %v1675, %v138
  %v1710 = vmul.f32 %v1675, %v141
  %v1711 = vmul.f32 %v1676, %v144
  %v1712 = vmul.f32 %v1676, %v147
  %v1713 = vmul.f32 %v1677, %v191
  %v1714 = vmul.f32 %v1677, %v194
  %v1715 = vmul.f32 %v1678, %v197
  %v1716 = vmul.f32 %v1678, %v200
  %v1717 = vmul.f32 %v1679, %v203
  %v1718 = vmul.f32 %v1679, %v206
  %v1719 = vmul.f32 %v1680, %v209
  %v1720 = vmul.f32 %v1680, %v212
  %v1721 = vmul.f32 %v1681, %v256
  %v1722 = vmul.f32 %v1681, %v259
  %v1723 = vmul.f32 %v1682, %v262
  %v1724 = vmul.f32 %v1682, %v265
  %v1725 = vmul.f32 %v1683, %v268
  %v1726 = vmul.f32 %v1683, %v271
  %v1727 = vmul.f32 %v1684, %v274
  %v1728 = vmul.f32 %v1684, %v277
  %v1729 = vmul.f32 %v1685, %v321
  %v1730 = vmul.f32 %v1685, %v324
  %v1731 = vmul.f32 %v1686, %v327
  %v1732 = vmul.f32 %v1686, %v330
  %v1733 = vmul.f32 %v1687, %v333
  %v1734 = vmul.f32 %v1687, %v336
  %v1735 = vmul.f32 %v1688, %v339
  %v1736 = vmul.f32 %v1688, %v342
  %v1737 = vmul.f32 %v1689, %v386
  %v1738 = vmul.f32 %v1689, %v389
  %v1739 = vmul.f32 %v1690, %v392
  %v1740 = vmul.f32 %v1690, %v395
  %v1741 = vmul.f32 %v1691, %v398
  %v1742 = vmul.f32 %v1691, %v401
  %v1743 = vmul.f32 %v1692, %v404
  %v1744 = vmul.f32 %v1692, %v407
  %v1745 = vmul.f32 %v1693, %v451
  %v1746 = vmul.f32 %v1693, %v454
  %v1747 = vmul.f32 %v1694, %v457
  %v1748 = vmul.f32 %v1694, %v460
  %v1749 = vmul.f32 %v1695, %v463
  %v1750 = vmul.f32 %v1695, %v466
  %v1751 = vmul.f32 %v1696, %v469
  %v1752 = vmul.f32 %v1696, %v472
  %v1753 = vmul.f32 %v1697, %v516
  %v1754 = vmul.f32 %v1697, %v519
  %v1755 = vmul.f32 %v1698, %v522
  %v1756 = vmul.f32 %v1698, %v525
  %v1757 = vmul.f32 %v1699, %v528
  %v1758 = vmul.f32 %v1699, %v531
  %v1759 = vmul.f32 %v1700, %v534
  %v1760 = vmul.f32 %v1700, %v537
  %v1761 = vmul.f32 %v1701, %v581
  %v1762 = vmul.f32 %v1701, %v584
  %v1763 = vmul.f32 %v1702, %v587
  %v1764 = vmul.f32 %v1702, %v590
  %v1765 = vmul.f32 %v1703, %v593
  %v1766 = vmul.f32 %v1703, %v596
  %v1767 = vmul.f32 %v1704, %v599
  %v1768 = vmul.f32 %v1704, %v602
  %v1769 = vsel %vm604, %v1705, 0.0
  %v1770 = vsel %vm604, %v1713, 0.0
  %v1771 = vadd.f32 %v1769, %v1770
  %v1772 = vsel %vm604, %v1721, 0.0
  %v1773 = vadd.f32 %v1771, %v1772
  %v1774 = vsel %vm604, %v1729, 0.0
  %v1775 = vadd.f32 %v1773, %v1774
  %v1776 = vsel %vm604, %v1737, 0.0
  %v1777 = vadd.f32 %v1775, %v1776
  %v1778 = vsel %vm604, %v1745, 0.0
  %v1779 = vadd.f32 %v1777, %v1778
  %v1780 = vsel %vm604, %v1753, 0.0
  %v1781 = vadd.f32 %v1779, %v1780
  %v1782 = vsel %vm604, %v1761, 0.0
  %v1783 = vadd.f32 %v1781, %v1782
  %v1784 = vsel %vm604, %v1706, 0.0
  %v1785 = vsel %vm604, %v1714, 0.0
  %v1786 = vadd.f32 %v1784, %v1785
  %v1787 = vsel %vm604, %v1722, 0.0
  %v1788 = vadd.f32 %v1786, %v1787
  %v1789 = vsel %vm604, %v1730, 0.0
  %v1790 = vadd.f32 %v1788, %v1789
  %v1791 = vsel %vm604, %v1738, 0.0
  %v1792 = vadd.f32 %v1790, %v1791
  %v1793 = vsel %vm604, %v1746, 0.0
  %v1794 = vadd.f32 %v1792, %v1793
  %v1795 = vsel %vm604, %v1754, 0.0
  %v1796 = vadd.f32 %v1794, %v1795
  %v1797 = vsel %vm604, %v1762, 0.0
  %v1798 = vadd.f32 %v1796, %v1797
  %v1799 = vsel %vm604, %v1707, 0.0
  %v1800 = vsel %vm604, %v1715, 0.0
  %v1801 = vadd.f32 %v1799, %v1800
  %v1802 = vsel %vm604, %v1723, 0.0
  %v1803 = vadd.f32 %v1801, %v1802
  %v1804 = vsel %vm604, %v1731, 0.0
  %v1805 = vadd.f32 %v1803, %v1804
  %v1806 = vsel %vm604, %v1739, 0.0
  %v1807 = vadd.f32 %v1805, %v1806
  %v1808 = vsel %vm604, %v1747, 0.0
  %v1809 = vadd.f32 %v1807, %v1808
  %v1810 = vsel %vm604, %v1755, 0.0
  %v1811 = vadd.f32 %v1809, %v1810
  %v1812 = vsel %vm604, %v1763, 0.0
  %v1813 = vadd.f32 %v1811, %v1812
  %v1814 = vsel %vm604, %v1708, 0.0
  %v1815 = vsel %vm604, %v1716, 0.0
  %v1816 = vadd.f32 %v1814, %v1815
  %v1817 = vsel %vm604, %v1724, 0.0
  %v1818 = vadd.f32 %v1816, %v1817
  %v1819 = vsel %vm604, %v1732, 0.0
  %v1820 = vadd.f32 %v1818, %v1819
  %v1821 = vsel %vm604, %v1740, 0.0
  %v1822 = vadd.f32 %v1820, %v1821
  %v1823 = vsel %vm604, %v1748, 0.0
  %v1824 = vadd.f32 %v1822, %v1823
  %v1825 = vsel %vm604, %v1756, 0.0
  %v1826 = vadd.f32 %v1824, %v1825
  %v1827 = vsel %vm604, %v1764, 0.0
  %v1828 = vadd.f32 %v1826, %v1827
  %v1829 = vsel %vm604, %v1709, 0.0
  %v1830 = vsel %vm604, %v1717, 0.0
  %v1831 = vadd.f32 %v1829, %v1830
  %v1832 = vsel %vm604, %v1725, 0.0
  %v1833 = vadd.f32 %v1831, %v1832
  %v1834 = vsel %vm604, %v1733, 0.0
  %v1835 = vadd.f32 %v1833, %v1834
  %v1836 = vsel %vm604, %v1741, 0.0
  %v1837 = vadd.f32 %v1835, %v1836
  %v1838 = vsel %vm604, %v1749, 0.0
  %v1839 = vadd.f32 %v1837, %v1838
  %v1840 = vsel %vm604, %v1757, 0.0
  %v1841 = vadd.f32 %v1839, %v1840
  %v1842 = vsel %vm604, %v1765, 0.0
  %v1843 = vadd.f32 %v1841, %v1842
  %v1844 = vsel %vm604, %v1710, 0.0
  %v1845 = vsel %vm604, %v1718, 0.0
  %v1846 = vadd.f32 %v1844, %v1845
  %v1847 = vsel %vm604, %v1726, 0.0
  %v1848 = vadd.f32 %v1846, %v1847
  %v1849 = vsel %vm604, %v1734, 0.0
  %v1850 = vadd.f32 %v1848, %v1849
  %v1851 = vsel %vm604, %v1742, 0.0
  %v1852 = vadd.f32 %v1850, %v1851
  %v1853 = vsel %vm604, %v1750, 0.0
  %v1854 = vadd.f32 %v1852, %v1853
  %v1855 = vsel %vm604, %v1758, 0.0
  %v1856 = vadd.f32 %v1854, %v1855
  %v1857 = vsel %vm604, %v1766, 0.0
  %v1858 = vadd.f32 %v1856, %v1857
  %v1859 = vsel %vm604, %v1711, 0.0
  %v1860 = vsel %vm604, %v1719, 0.0
  %v1861 = vadd.f32 %v1859, %v1860
  %v1862 = vsel %vm604, %v1727, 0.0
  %v1863 = vadd.f32 %v1861, %v1862
  %v1864 = vsel %vm604, %v1735, 0.0
  %v1865 = vadd.f32 %v1863, %v1864
  %v1866 = vsel %vm604, %v1743, 0.0
  %v1867 = vadd.f32 %v1865, %v1866
  %v1868 = vsel %vm604, %v1751, 0.0
  %v1869 = vadd.f32 %v1867, %v1868
  %v1870 = vsel %vm604, %v1759, 0.0
  %v1871 = vadd.f32 %v1869, %v1870
  %v1872 = vsel %vm604, %v1767, 0.0
  %v1873 = vadd.f32 %v1871, %v1872
  %v1874 = vsel %vm604, %v1712, 0.0
  %v1875 = vsel %vm604, %v1720, 0.0
  %v1876 = vadd.f32 %v1874, %v1875
  %v1877 = vsel %vm604, %v1728, 0.0
  %v1878 = vadd.f32 %v1876, %v1877
  %v1879 = vsel %vm604, %v1736, 0.0
  %v1880 = vadd.f32 %v1878, %v1879
  %v1881 = vsel %vm604, %v1744, 0.0
  %v1882 = vadd.f32 %v1880, %v1881
  %v1883 = vsel %vm604, %v1752, 0.0
  %v1884 = vadd.f32 %v1882, %v1883
  %v1885 = vsel %vm604, %v1760, 0.0
  %v1886 = vadd.f32 %v1884, %v1885
  %v1887 = vsel %vm604, %v1768, 0.0
  %v1888 = vadd.f32 %v1886, %v1887
  %v1889 = vadd.f32 %v1783, 0.0
  %v1890 = vadd.f32 %v1798, 0.0
  %v1891 = vadd.f32 %v1813, 0.0
  %v1892 = vadd.f32 %v1828, 0.0
  %v1893 = vadd.f32 %v1843, 0.0
  %v1894 = vadd.f32 %v1858, 0.0
  %v1895 = vadd.f32 %v1873, 0.0
  %v1896 = vadd.f32 %v1888, 0.0
  %v1897 = vmul.f32 %v1889, %v1889
  %v1898 = vmul.f32 %v1890, %v1890
  %v1899 = vmul.f32 %v1891, %v1891
  %v1900 = vmul.f32 %v1892, %v1892
  %v1901 = vmul.f32 %v1893, %v1893
  %v1902 = vmul.f32 %v1894, %v1894
  %v1903 = vmul.f32 %v1895, %v1895
  %v1904 = vmul.f32 %v1896, %v1896
  %v1905 = vsel %vm604, %v1897, 0.0
  %v1906 = vsel %vm604, %v1898, 0.0
  %v1907 = vadd.f32 %v1905, %v1906
  %v1908 = vrot.slane %v1907, 4
  %v1909 = vadd.f32 %v1907, %v1908
  %v1910 = vrot.slane %v1909, 2
  %v1911 = vadd.f32 %v1909, %v1910
  %v1912 = vrot.slane %v1911, 1
  %v1913 = vadd.f32 %v1911, %v1912
  %v1914 = vsel %vm604, %v1899, 0.0
  %v1915 = vsel %vm604, %v1900, 0.0
  %v1916 = vadd.f32 %v1914, %v1915
  %v1917 = vrot.slane %v1916, 4
  %v1918 = vadd.f32 %v1916, %v1917
  %v1919 = vrot.slane %v1918, 2
  %v1920 = vadd.f32 %v1918, %v1919
  %v1921 = vrot.slane %v1920, 1
  %v1922 = vadd.f32 %v1920, %v1921
  %v1923 = vsel %vm604, %v1901, 0.0
  %v1924 = vsel %vm604, %v1902, 0.0
  %v1925 = vadd.f32 %v1923, %v1924
  %v1926 = vrot.slane %v1925, 4
  %v1927 = vadd.f32 %v1925, %v1926
  %v1928 = vrot.slane %v1927, 2
  %v1929 = vadd.f32 %v1927, %v1928
  %v1930 = vrot.slane %v1929, 1
  %v1931 = vadd.f32 %v1929, %v1930
  %v1932 = vsel %vm604, %v1903, 0.0
  %v1933 = vsel %vm604, %v1904, 0.0
  %v1934 = vadd.f32 %v1932, %v1933
  %v1935 = vrot.slane %v1934, 4
  %v1936 = vadd.f32 %v1934, %v1935
  %v1937 = vrot.slane %v1936, 2
  %v1938 = vadd.f32 %v1936, %v1937
  %v1939 = vrot.slane %v1938, 1
  %v1940 = vadd.f32 %v1938, %v1939
  %v1941 = vadd.f32 %v1913, 1.0
  %v1942 = vadd.f32 %v1922, 1.0
  %v1943 = vadd.f32 %v1931, 1.0
  %v1944 = vadd.f32 %v1940, 1.0
  %v1945 = vrcp.pop %v1941
  %v1946 = vmul.f32 %v1941, %v1945
  %v1947 = vsub.f32 1.0, %v1946
  %v1948 = vmul.f32 %v1945, %v1947
  %v1949 = vadd.f32 %v1945, %v1948
  %vm1950 = vweird.f32 %v1941
  %vm1951 = vweird.f32 %v1945
  %vm1952 = vmor %vm1950, %vm1951
  %v1953 = vsel %vm1952, %v1945, %v1949
  %v1954 = vand.u32 2147483647, %v1941
  %vm1955 = vcmp.eq.f32.partialorder %v1954, 8.507059e+37
  %v1956 = vand.u32 %v1941, 2147483648
  %v1957 = vor.u32 1.1754944e-38, %v1956
  %v1958 = vsel %vm1955, %v1957, %v1953
  %v1959 = vmul.f32 %v1913, %v1958
  %v1960 = vrcp.pop %v1942
  %v1961 = vmul.f32 %v1942, %v1960
  %v1962 = vsub.f32 1.0, %v1961
  %v1963 = vmul.f32 %v1960, %v1962
  %v1964 = vadd.f32 %v1960, %v1963
  %vm1965 = vweird.f32 %v1942
  %vm1966 = vweird.f32 %v1960
  %vm1967 = vmor %vm1965, %vm1966
  %v1968 = vsel %vm1967, %v1960, %v1964
  %v1969 = vand.u32 2147483647, %v1942
  %vm1970 = vcmp.eq.f32.partialorder %v1969, 8.507059e+37
  %v1971 = vand.u32 %v1942, 2147483648
  %v1972 = vor.u32 1.1754944e-38, %v1971
  %v1973 = vsel %vm1970, %v1972, %v1968
  %v1974 = vmul.f32 %v1922, %v1973
  %v1975 = vrcp.pop %v1943
  %v1976 = vmul.f32 %v1943, %v1975
  %v1977 = vsub.f32 1.0, %v1976
  %v1978 = vmul.f32 %v1975, %v1977
  %v1979 = vadd.f32 %v1975, %v1978
  %vm1980 = vweird.f32 %v1943
  %vm1981 = vweird.f32 %v1975
  %vm1982 = vmor %vm1980, %vm1981
  %v1983 = vsel %vm1982, %v1975, %v1979
  %v1984 = vand.u32 2147483647, %v1943
  %vm1985 = vcmp.eq.f32.partialorder %v1984, 8.507059e+37
  %v1986 = vand.u32 %v1943, 2147483648
  %v1987 = vor.u32 1.1754944e-38, %v1986
  %v1988 = vsel %vm1985, %v1987, %v1983
  %v1989 = vmul.f32 %v1931, %v1988
  %v1990 = vrcp.pop %v1944
  %v1991 = vmul.f32 %v1944, %v1990
  %v1992 = vsub.f32 1.0, %v1991
  %v1993 = vmul.f32 %v1990, %v1992
  %v1994 = vadd.f32 %v1990, %v1993
  %vm1995 = vweird.f32 %v1944
  %vm1996 = vweird.f32 %v1990
  %vm1997 = vmor %vm1995, %vm1996
  %v1998 = vsel %vm1997, %v1990, %v1994
  %v1999 = vand.u32 2147483647, %v1944
  %vm2000 = vcmp.eq.f32.partialorder %v1999, 8.507059e+37
  %v2001 = vand.u32 %v1944, 2147483648
  %v2002 = vor.u32 1.1754944e-38, %v2001
  %v2003 = vsel %vm2000, %v2002, %v1998
  %v2004 = vmul.f32 %v1940, %v2003
  %v2005 = vmul.f32 %v1959, %v1889
  %v2006 = vmul.f32 %v1959, %v1890
  %v2007 = vmul.f32 %v1974, %v1891
  %v2008 = vmul.f32 %v1974, %v1892
  %v2009 = vmul.f32 %v1989, %v1893
  %v2010 = vmul.f32 %v1989, %v1894
  %v2011 = vmul.f32 %v2004, %v1895
  %v2012 = vmul.f32 %v2004, %v1896
  %v2013 = vrsqrt.pop %v1913
  %v2014 = vmul.f32 %v2013, %v1913
  %v2015 = vmul.f32 %v2014, %v2013
  %v2016 = vmul.f32 0.5, %v2015
  %v2017 = vsub.f32 1.5, %v2016
  %v2018 = vmul.f32 %v2013, %v2017
  %v2019 = vmul.f32 %v1913, %v2018
  %vm2020 = vcmp.eq.f32.partialorder %v1913, inf
  %v2021 = vsel %vm2020, %v1913, %v2019
  %vm2022 = vcmp.eq.f32.partialorder %v1913, 0.0
  %v2023 = vand.u32 %v1913, 2147483648
  %v2024 = vsel %vm2022, %v2023, %v2021
  %v2025 = vrsqrt.pop %v1922
  %v2026 = vmul.f32 %v2025, %v1922
  %v2027 = vmul.f32 %v2026, %v2025
  %v2028 = vmul.f32 0.5, %v2027
  %v2029 = vsub.f32 1.5, %v2028
  %v2030 = vmul.f32 %v2025, %v2029
  %v2031 = vmul.f32 %v1922, %v2030
  %vm2032 = vcmp.eq.f32.partialorder %v1922, inf
  %v2033 = vsel %vm2032, %v1922, %v2031
  %vm2034 = vcmp.eq.f32.partialorder %v1922, 0.0
  %v2035 = vand.u32 %v1922, 2147483648
  %v2036 = vsel %vm2034, %v2035, %v2033
  %v2037 = vrsqrt.pop %v1931
  %v2038 = vmul.f32 %v2037, %v1931
  %v2039 = vmul.f32 %v2038, %v2037
  %v2040 = vmul.f32 0.5, %v2039
  %v2041 = vsub.f32 1.5, %v2040
  %v2042 = vmul.f32 %v2037, %v2041
  %v2043 = vmul.f32 %v1931, %v2042
  %vm2044 = vcmp.eq.f32.partialorder %v1931, inf
  %v2045 = vsel %vm2044, %v1931, %v2043
  %vm2046 = vcmp.eq.f32.partialorder %v1931, 0.0
  %v2047 = vand.u32 %v1931, 2147483648
  %v2048 = vsel %vm2046, %v2047, %v2045
  %v2049 = vrsqrt.pop %v1940
  %v2050 = vmul.f32 %v2049, %v1940
  %v2051 = vmul.f32 %v2050, %v2049
  %v2052 = vmul.f32 0.5, %v2051
  %v2053 = vsub.f32 1.5, %v2052
  %v2054 = vmul.f32 %v2049, %v2053
  %v2055 = vmul.f32 %v1940, %v2054
  %vm2056 = vcmp.eq.f32.partialorder %v1940, inf
  %v2057 = vsel %vm2056, %v1940, %v2055
  %vm2058 = vcmp.eq.f32.partialorder %v1940, 0.0
  %v2059 = vand.u32 %v1940, 2147483648
  %v2060 = vsel %vm2058, %v2059, %v2057
  %v2061 = vadd.f32 %v2024, 1e-08
  %v2062 = vadd.f32 %v2036, 1e-08
  %v2063 = vadd.f32 %v2048, 1e-08
  %v2064 = vadd.f32 %v2060, 1e-08
  %v2065 = vrcp.pop %v2061
  %v2066 = vmul.f32 %v2061, %v2065
  %v2067 = vsub.f32 1.0, %v2066
  %v2068 = vmul.f32 %v2065, %v2067
  %v2069 = vadd.f32 %v2065, %v2068
  %vm2070 = vweird.f32 %v2061
  %vm2071 = vweird.f32 %v2065
  %vm2072 = vmor %vm2070, %vm2071
  %v2073 = vsel %vm2072, %v2065, %v2069
  %v2074 = vand.u32 2147483647, %v2061
  %vm2075 = vcmp.eq.f32.partialorder %v2074, 8.507059e+37
  %v2076 = vand.u32 %v2061, 2147483648
  %v2077 = vor.u32 1.1754944e-38, %v2076
  %v2078 = vsel %vm2075, %v2077, %v2073
  %v2079 = vmul.f32 %v2005, %v2078
  %v2080 = vmul.f32 %v2006, %v2078
  %v2081 = vrcp.pop %v2062
  %v2082 = vmul.f32 %v2062, %v2081
  %v2083 = vsub.f32 1.0, %v2082
  %v2084 = vmul.f32 %v2081, %v2083
  %v2085 = vadd.f32 %v2081, %v2084
  %vm2086 = vweird.f32 %v2062
  %vm2087 = vweird.f32 %v2081
  %vm2088 = vmor %vm2086, %vm2087
  %v2089 = vsel %vm2088, %v2081, %v2085
  %v2090 = vand.u32 2147483647, %v2062
  %vm2091 = vcmp.eq.f32.partialorder %v2090, 8.507059e+37
  %v2092 = vand.u32 %v2062, 2147483648
  %v2093 = vor.u32 1.1754944e-38, %v2092
  %v2094 = vsel %vm2091, %v2093, %v2089
  %v2095 = vmul.f32 %v2007, %v2094
  %v2096 = vmul.f32 %v2008, %v2094
  %v2097 = vrcp.pop %v2063
  %v2098 = vmul.f32 %v2063, %v2097
  %v2099 = vsub.f32 1.0, %v2098
  %v2100 = vmul.f32 %v2097, %v2099
  %v2101 = vadd.f32 %v2097, %v2100
  %vm2102 = vweird.f32 %v2063
  %vm2103 = vweird.f32 %v2097
  %vm2104 = vmor %vm2102, %vm2103
  %v2105 = vsel %vm2104, %v2097, %v2101
  %v2106 = vand.u32 2147483647, %v2063
  %vm2107 = vcmp.eq.f32.partialorder %v2106, 8.507059e+37
  %v2108 = vand.u32 %v2063, 2147483648
  %v2109 = vor.u32 1.1754944e-38, %v2108
  %v2110 = vsel %vm2107, %v2109, %v2105
  %v2111 = vmul.f32 %v2009, %v2110
  %v2112 = vmul.f32 %v2010, %v2110
  %v2113 = vrcp.pop %v2064
  %v2114 = vmul.f32 %v2064, %v2113
  %v2115 = vsub.f32 1.0, %v2114
  %v2116 = vmul.f32 %v2113, %v2115
  %v2117 = vadd.f32 %v2113, %v2116
  %vm2118 = vweird.f32 %v2064
  %vm2119 = vweird.f32 %v2113
  %vm2120 = vmor %vm2118, %vm2119
  %v2121 = vsel %vm2120, %v2113, %v2117
  %v2122 = vand.u32 2147483647, %v2064
  %vm2123 = vcmp.eq.f32.partialorder %v2122, 8.507059e+37
  %v2124 = vand.u32 %v2064, 2147483648
  %v2125 = vor.u32 1.1754944e-38, %v2124
  %v2126 = vsel %vm2123, %v2125, %v2121
  %v2127 = vmul.f32 %v2011, %v2126
  %v2128 = vmul.f32 %v2012, %v2126
  %v2129 = vmul.f32 %v126, %v2079
  %v2130 = vmul.f32 %v129, %v2080
  %v2131 = vmul.f32 %v132, %v2095
  %v2132 = vmul.f32 %v135, %v2096
  %v2133 = vmul.f32 %v138, %v2111
  %v2134 = vmul.f32 %v141, %v2112
  %v2135 = vmul.f32 %v144, %v2127
  %v2136 = vmul.f32 %v147, %v2128
  %v2137 = vmul.f32 %v191, %v2079
  %v2138 = vmul.f32 %v194, %v2080
  %v2139 = vmul.f32 %v197, %v2095
  %v2140 = vmul.f32 %v200, %v2096
  %v2141 = vmul.f32 %v203, %v2111
  %v2142 = vmul.f32 %v206, %v2112
  %v2143 = vmul.f32 %v209, %v2127
  %v2144 = vmul.f32 %v212, %v2128
  %v2145 = vmul.f32 %v256, %v2079
  %v2146 = vmul.f32 %v259, %v2080
  %v2147 = vmul.f32 %v262, %v2095
  %v2148 = vmul.f32 %v265, %v2096
  %v2149 = vmul.f32 %v268, %v2111
  %v2150 = vmul.f32 %v271, %v2112
  %v2151 = vmul.f32 %v274, %v2127
  %v2152 = vmul.f32 %v277, %v2128
  %v2153 = vmul.f32 %v321, %v2079
  %v2154 = vmul.f32 %v324, %v2080
  %v2155 = vmul.f32 %v327, %v2095
  %v2156 = vmul.f32 %v330, %v2096
  %v2157 = vmul.f32 %v333, %v2111
  %v2158 = vmul.f32 %v336, %v2112
  %v2159 = vmul.f32 %v339, %v2127
  %v2160 = vmul.f32 %v342, %v2128
  %v2161 = vmul.f32 %v386, %v2079
  %v2162 = vmul.f32 %v389, %v2080
  %v2163 = vmul.f32 %v392, %v2095
  %v2164 = vmul.f32 %v395, %v2096
  %v2165 = vmul.f32 %v398, %v2111
  %v2166 = vmul.f32 %v401, %v2112
  %v2167 = vmul.f32 %v404, %v2127
  %v2168 = vmul.f32 %v407, %v2128
  %v2169 = vmul.f32 %v451, %v2079
  %v2170 = vmul.f32 %v454, %v2080
  %v2171 = vmul.f32 %v457, %v2095
  %v2172 = vmul.f32 %v460, %v2096
  %v2173 = vmul.f32 %v463, %v2111
  %v2174 = vmul.f32 %v466, %v2112
  %v2175 = vmul.f32 %v469, %v2127
  %v2176 = vmul.f32 %v472, %v2128
  %v2177 = vmul.f32 %v516, %v2079
  %v2178 = vmul.f32 %v519, %v2080
  %v2179 = vmul.f32 %v522, %v2095
  %v2180 = vmul.f32 %v525, %v2096
  %v2181 = vmul.f32 %v528, %v2111
  %v2182 = vmul.f32 %v531, %v2112
  %v2183 = vmul.f32 %v534, %v2127
  %v2184 = vmul.f32 %v537, %v2128
  %v2185 = vmul.f32 %v581, %v2079
  %v2186 = vmul.f32 %v584, %v2080
  %v2187 = vmul.f32 %v587, %v2095
  %v2188 = vmul.f32 %v590, %v2096
  %v2189 = vmul.f32 %v593, %v2111
  %v2190 = vmul.f32 %v596, %v2112
  %v2191 = vmul.f32 %v599, %v2127
  %v2192 = vmul.f32 %v602, %v2128
  %v2193 = vsel %vm604, %v2129, 0.0
  %v2194 = vsel %vm604, %v2130, 0.0
  %v2195 = vadd.f32 %v2193, %v2194
  %v2196 = vrot.slane %v2195, 4
  %v2197 = vadd.f32 %v2195, %v2196
  %v2198 = vrot.slane %v2197, 2
  %v2199 = vadd.f32 %v2197, %v2198
  %v2200 = vrot.slane %v2199, 1
  %v2201 = vadd.f32 %v2199, %v2200
  %v2202 = vsel %vm604, %v2131, 0.0
  %v2203 = vsel %vm604, %v2132, 0.0
  %v2204 = vadd.f32 %v2202, %v2203
  %v2205 = vrot.slane %v2204, 4
  %v2206 = vadd.f32 %v2204, %v2205
  %v2207 = vrot.slane %v2206, 2
  %v2208 = vadd.f32 %v2206, %v2207
  %v2209 = vrot.slane %v2208, 1
  %v2210 = vadd.f32 %v2208, %v2209
  %v2211 = vsel %vm604, %v2133, 0.0
  %v2212 = vsel %vm604, %v2134, 0.0
  %v2213 = vadd.f32 %v2211, %v2212
  %v2214 = vrot.slane %v2213, 4
  %v2215 = vadd.f32 %v2213, %v2214
  %v2216 = vrot.slane %v2215, 2
  %v2217 = vadd.f32 %v2215, %v2216
  %v2218 = vrot.slane %v2217, 1
  %v2219 = vadd.f32 %v2217, %v2218
  %v2220 = vsel %vm604, %v2135, 0.0
  %v2221 = vsel %vm604, %v2136, 0.0
  %v2222 = vadd.f32 %v2220, %v2221
  %v2223 = vrot.slane %v2222, 4
  %v2224 = vadd.f32 %v2222, %v2223
  %v2225 = vrot.slane %v2224, 2
  %v2226 = vadd.f32 %v2224, %v2225
  %v2227 = vrot.slane %v2226, 1
  %v2228 = vadd.f32 %v2226, %v2227
  %v2229 = vsel %vm604, %v2137, 0.0
  %v2230 = vsel %vm604, %v2138, 0.0
  %v2231 = vadd.f32 %v2229, %v2230
  %v2232 = vrot.slane %v2231, 4
  %v2233 = vadd.f32 %v2231, %v2232
  %v2234 = vrot.slane %v2233, 2
  %v2235 = vadd.f32 %v2233, %v2234
  %v2236 = vrot.slane %v2235, 1
  %v2237 = vadd.f32 %v2235, %v2236
  %v2238 = vsel %vm604, %v2139, 0.0
  %v2239 = vsel %vm604, %v2140, 0.0
  %v2240 = vadd.f32 %v2238, %v2239
  %v2241 = vrot.slane %v2240, 4
  %v2242 = vadd.f32 %v2240, %v2241
  %v2243 = vrot.slane %v2242, 2
  %v2244 = vadd.f32 %v2242, %v2243
  %v2245 = vrot.slane %v2244, 1
  %v2246 = vadd.f32 %v2244, %v2245
  %v2247 = vsel %vm604, %v2141, 0.0
  %v2248 = vsel %vm604, %v2142, 0.0
  %v2249 = vadd.f32 %v2247, %v2248
  %v2250 = vrot.slane %v2249, 4
  %v2251 = vadd.f32 %v2249, %v2250
  %v2252 = vrot.slane %v2251, 2
  %v2253 = vadd.f32 %v2251, %v2252
  %v2254 = vrot.slane %v2253, 1
  %v2255 = vadd.f32 %v2253, %v2254
  %v2256 = vsel %vm604, %v2143, 0.0
  %v2257 = vsel %vm604, %v2144, 0.0
  %v2258 = vadd.f32 %v2256, %v2257
  %v2259 = vrot.slane %v2258, 4
  %v2260 = vadd.f32 %v2258, %v2259
  %v2261 = vrot.slane %v2260, 2
  %v2262 = vadd.f32 %v2260, %v2261
  %v2263 = vrot.slane %v2262, 1
  %v2264 = vadd.f32 %v2262, %v2263
  %v2265 = vsel %vm604, %v2145, 0.0
  %v2266 = vsel %vm604, %v2146, 0.0
  %v2267 = vadd.f32 %v2265, %v2266
  %v2268 = vrot.slane %v2267, 4
  %v2269 = vadd.f32 %v2267, %v2268
  %v2270 = vrot.slane %v2269, 2
  %v2271 = vadd.f32 %v2269, %v2270
  %v2272 = vrot.slane %v2271, 1
  %v2273 = vadd.f32 %v2271, %v2272
  %v2274 = vsel %vm604, %v2147, 0.0
  %v2275 = vsel %vm604, %v2148, 0.0
  %v2276 = vadd.f32 %v2274, %v2275
  %v2277 = vrot.slane %v2276, 4
  %v2278 = vadd.f32 %v2276, %v2277
  %v2279 = vrot.slane %v2278, 2
  %v2280 = vadd.f32 %v2278, %v2279
  %v2281 = vrot.slane %v2280, 1
  %v2282 = vadd.f32 %v2280, %v2281
  %v2283 = vsel %vm604, %v2149, 0.0
  %v2284 = vsel %vm604, %v2150, 0.0
  %v2285 = vadd.f32 %v2283, %v2284
  %v2286 = vrot.slane %v2285, 4
  %v2287 = vadd.f32 %v2285, %v2286
  %v2288 = vrot.slane %v2287, 2
  %v2289 = vadd.f32 %v2287, %v2288
  %v2290 = vrot.slane %v2289, 1
  %v2291 = vadd.f32 %v2289, %v2290
  %v2292 = vsel %vm604, %v2151, 0.0
  %v2293 = vsel %vm604, %v2152, 0.0
  %v2294 = vadd.f32 %v2292, %v2293
  %v2295 = vrot.slane %v2294, 4
  %v2296 = vadd.f32 %v2294, %v2295
  %v2297 = vrot.slane %v2296, 2
  %v2298 = vadd.f32 %v2296, %v2297
  %v2299 = vrot.slane %v2298, 1
  %v2300 = vadd.f32 %v2298, %v2299
  %v2301 = vsel %vm604, %v2153, 0.0
  %v2302 = vsel %vm604, %v2154, 0.0
  %v2303 = vadd.f32 %v2301, %v2302
  %v2304 = vrot.slane %v2303, 4
  %v2305 = vadd.f32 %v2303, %v2304
  %v2306 = vrot.slane %v2305, 2
  %v2307 = vadd.f32 %v2305, %v2306
  %v2308 = vrot.slane %v2307, 1
  %v2309 = vadd.f32 %v2307, %v2308
  %v2310 = vsel %vm604, %v2155, 0.0
  %v2311 = vsel %vm604, %v2156, 0.0
  %v2312 = vadd.f32 %v2310, %v2311
  %v2313 = vrot.slane %v2312, 4
  %v2314 = vadd.f32 %v2312, %v2313
  %v2315 = vrot.slane %v2314, 2
  %v2316 = vadd.f32 %v2314, %v2315
  %v2317 = vrot.slane %v2316, 1
  %v2318 = vadd.f32 %v2316, %v2317
  %v2319 = vsel %vm604, %v2157, 0.0
  %v2320 = vsel %vm604, %v2158, 0.0
  %v2321 = vadd.f32 %v2319, %v2320
  %v2322 = vrot.slane %v2321, 4
  %v2323 = vadd.f32 %v2321, %v2322
  %v2324 = vrot.slane %v2323, 2
  %v2325 = vadd.f32 %v2323, %v2324
  %v2326 = vrot.slane %v2325, 1
  %v2327 = vadd.f32 %v2325, %v2326
  %v2328 = vsel %vm604, %v2159, 0.0
  %v2329 = vsel %vm604, %v2160, 0.0
  %v2330 = vadd.f32 %v2328, %v2329
  %v2331 = vrot.slane %v2330, 4
  %v2332 = vadd.f32 %v2330, %v2331
  %v2333 = vrot.slane %v2332, 2
  %v2334 = vadd.f32 %v2332, %v2333
  %v2335 = vrot.slane %v2334, 1
  %v2336 = vadd.f32 %v2334, %v2335
  %v2337 = vsel %vm604, %v2161, 0.0
  %v2338 = vsel %vm604, %v2162, 0.0
  %v2339 = vadd.f32 %v2337, %v2338
  %v2340 = vrot.slane %v2339, 4
  %v2341 = vadd.f32 %v2339, %v2340
  %v2342 = vrot.slane %v2341, 2
  %v2343 = vadd.f32 %v2341, %v2342
  %v2344 = vrot.slane %v2343, 1
  %v2345 = vadd.f32 %v2343, %v2344
  %v2346 = vsel %vm604, %v2163, 0.0
  %v2347 = vsel %vm604, %v2164, 0.0
  %v2348 = vadd.f32 %v2346, %v2347
  %v2349 = vrot.slane %v2348, 4
  %v2350 = vadd.f32 %v2348, %v2349
  %v2351 = vrot.slane %v2350, 2
  %v2352 = vadd.f32 %v2350, %v2351
  %v2353 = vrot.slane %v2352, 1
  %v2354 = vadd.f32 %v2352, %v2353
  %v2355 = vsel %vm604, %v2165, 0.0
  %v2356 = vsel %vm604, %v2166, 0.0
  %v2357 = vadd.f32 %v2355, %v2356
  %v2358 = vrot.slane %v2357, 4
  %v2359 = vadd.f32 %v2357, %v2358
  %v2360 = vrot.slane %v2359, 2
  %v2361 = vadd.f32 %v2359, %v2360
  %v2362 = vrot.slane %v2361, 1
  %v2363 = vadd.f32 %v2361, %v2362
  %v2364 = vsel %vm604, %v2167, 0.0
  %v2365 = vsel %vm604, %v2168, 0.0
  %v2366 = vadd.f32 %v2364, %v2365
  %v2367 = vrot.slane %v2366, 4
  %v2368 = vadd.f32 %v2366, %v2367
  %v2369 = vrot.slane %v2368, 2
  %v2370 = vadd.f32 %v2368, %v2369
  %v2371 = vrot.slane %v2370, 1
  %v2372 = vadd.f32 %v2370, %v2371
  %v2373 = vsel %vm604, %v2169, 0.0
  %v2374 = vsel %vm604, %v2170, 0.0
  %v2375 = vadd.f32 %v2373, %v2374
  %v2376 = vrot.slane %v2375, 4
  %v2377 = vadd.f32 %v2375, %v2376
  %v2378 = vrot.slane %v2377, 2
  %v2379 = vadd.f32 %v2377, %v2378
  %v2380 = vrot.slane %v2379, 1
  %v2381 = vadd.f32 %v2379, %v2380
  %v2382 = vsel %vm604, %v2171, 0.0
  %v2383 = vsel %vm604, %v2172, 0.0
  %v2384 = vadd.f32 %v2382, %v2383
  %v2385 = vrot.slane %v2384, 4
  %v2386 = vadd.f32 %v2384, %v2385
  %v2387 = vrot.slane %v2386, 2
  %v2388 = vadd.f32 %v2386, %v2387
  %v2389 = vrot.slane %v2388, 1
  %v2390 = vadd.f32 %v2388, %v2389
  %v2391 = vsel %vm604, %v2173, 0.0
  %v2392 = vsel %vm604, %v2174, 0.0
  %v2393 = vadd.f32 %v2391, %v2392
  %v2394 = vrot.slane %v2393, 4
  %v2395 = vadd.f32 %v2393, %v2394
  %v2396 = vrot.slane %v2395, 2
  %v2397 = vadd.f32 %v2395, %v2396
  %v2398 = vrot.slane %v2397, 1
  %v2399 = vadd.f32 %v2397, %v2398
  %v2400 = vsel %vm604, %v2175, 0.0
  %v2401 = vsel %vm604, %v2176, 0.0
  %v2402 = vadd.f32 %v2400, %v2401
  %v2403 = vrot.slane %v2402, 4
  %v2404 = vadd.f32 %v2402, %v2403
  %v2405 = vrot.slane %v2404, 2
  %v2406 = vadd.f32 %v2404, %v2405
  %v2407 = vrot.slane %v2406, 1
  %v2408 = vadd.f32 %v2406, %v2407
  %v2409 = vsel %vm604, %v2177, 0.0
  %v2410 = vsel %vm604, %v2178, 0.0
  %v2411 = vadd.f32 %v2409, %v2410
  %v2412 = vrot.slane %v2411, 4
  %v2413 = vadd.f32 %v2411, %v2412
  %v2414 = vrot.slane %v2413, 2
  %v2415 = vadd.f32 %v2413, %v2414
  %v2416 = vrot.slane %v2415, 1
  %v2417 = vadd.f32 %v2415, %v2416
  %v2418 = vsel %vm604, %v2179, 0.0
  %v2419 = vsel %vm604, %v2180, 0.0
  %v2420 = vadd.f32 %v2418, %v2419
  %v2421 = vrot.slane %v2420, 4
  %v2422 = vadd.f32 %v2420, %v2421
  %v2423 = vrot.slane %v2422, 2
  %v2424 = vadd.f32 %v2422, %v2423
  %v2425 = vrot.slane %v2424, 1
  %v2426 = vadd.f32 %v2424, %v2425
  %v2427 = vsel %vm604, %v2181, 0.0
  %v2428 = vsel %vm604, %v2182, 0.0
  %v2429 = vadd.f32 %v2427, %v2428
  %v2430 = vrot.slane %v2429, 4
  %v2431 = vadd.f32 %v2429, %v2430
  %v2432 = vrot.slane %v2431, 2
  %v2433 = vadd.f32 %v2431, %v2432
  %v2434 = vrot.slane %v2433, 1
  %v2435 = vadd.f32 %v2433, %v2434
  %v2436 = vsel %vm604, %v2183, 0.0
  %v2437 = vsel %vm604, %v2184, 0.0
  %v2438 = vadd.f32 %v2436, %v2437
  %v2439 = vrot.slane %v2438, 4
  %v2440 = vadd.f32 %v2438, %v2439
  %v2441 = vrot.slane %v2440, 2
  %v2442 = vadd.f32 %v2440, %v2441
  %v2443 = vrot.slane %v2442, 1
  %v2444 = vadd.f32 %v2442, %v2443
  %v2445 = vsel %vm604, %v2185, 0.0
  %v2446 = vsel %vm604, %v2186, 0.0
  %v2447 = vadd.f32 %v2445, %v2446
  %v2448 = vrot.slane %v2447, 4
  %v2449 = vadd.f32 %v2447, %v2448
  %v2450 = vrot.slane %v2449, 2
  %v2451 = vadd.f32 %v2449, %v2450
  %v2452 = vrot.slane %v2451, 1
  %v2453 = vadd.f32 %v2451, %v2452
  %v2454 = vsel %vm604, %v2187, 0.0
  %v2455 = vsel %vm604, %v2188, 0.0
  %v2456 = vadd.f32 %v2454, %v2455
  %v2457 = vrot.slane %v2456, 4
  %v2458 = vadd.f32 %v2456, %v2457
  %v2459 = vrot.slane %v2458, 2
  %v2460 = vadd.f32 %v2458, %v2459
  %v2461 = vrot.slane %v2460, 1
  %v2462 = vadd.f32 %v2460, %v2461
  %v2463 = vsel %vm604, %v2189, 0.0
  %v2464 = vsel %vm604, %v2190, 0.0
  %v2465 = vadd.f32 %v2463, %v2464
  %v2466 = vrot.slane %v2465, 4
  %v2467 = vadd.f32 %v2465, %v2466
  %v2468 = vrot.slane %v2467, 2
  %v2469 = vadd.f32 %v2467, %v2468
  %v2470 = vrot.slane %v2469, 1
  %v2471 = vadd.f32 %v2469, %v2470
  %v2472 = vsel %vm604, %v2191, 0.0
  %v2473 = vsel %vm604, %v2192, 0.0
  %v2474 = vadd.f32 %v2472, %v2473
  %v2475 = vrot.slane %v2474, 4
  %v2476 = vadd.f32 %v2474, %v2475
  %v2477 = vrot.slane %v2476, 2
  %v2478 = vadd.f32 %v2476, %v2477
  %v2479 = vrot.slane %v2478, 1
  %v2480 = vadd.f32 %v2478, %v2479
  %v2481 = vadd.f32 %v1045, %v2201
  %v2482 = vadd.f32 %v1054, %v2210
  %v2483 = vadd.f32 %v1063, %v2219
  %v2484 = vadd.f32 %v1072, %v2228
  %v2485 = vadd.f32 %v1081, %v2237
  %v2486 = vadd.f32 %v1090, %v2246
  %v2487 = vadd.f32 %v1099, %v2255
  %v2488 = vadd.f32 %v1108, %v2264
  %v2489 = vadd.f32 %v1117, %v2273
  %v2490 = vadd.f32 %v1126, %v2282
  %v2491 = vadd.f32 %v1135, %v2291
  %v2492 = vadd.f32 %v1144, %v2300
  %v2493 = vadd.f32 %v1153, %v2309
  %v2494 = vadd.f32 %v1162, %v2318
  %v2495 = vadd.f32 %v1171, %v2327
  %v2496 = vadd.f32 %v1180, %v2336
  %v2497 = vadd.f32 %v1189, %v2345
  %v2498 = vadd.f32 %v1198, %v2354
  %v2499 = vadd.f32 %v1207, %v2363
  %v2500 = vadd.f32 %v1216, %v2372
  %v2501 = vadd.f32 %v1225, %v2381
  %v2502 = vadd.f32 %v1234, %v2390
  %v2503 = vadd.f32 %v1243, %v2399
  %v2504 = vadd.f32 %v1252, %v2408
  %v2505 = vadd.f32 %v1261, %v2417
  %v2506 = vadd.f32 %v1270, %v2426
  %v2507 = vadd.f32 %v1279, %v2435
  %v2508 = vadd.f32 %v1288, %v2444
  %v2509 = vadd.f32 %v1297, %v2453
  %v2510 = vadd.f32 %v1306, %v2462
  %v2511 = vadd.f32 %v1315, %v2471
  %v2512 = vadd.f32 %v1324, %v2480
  %v2513 = vsel %vm604, %v2481, -inf
  %v2514 = vsel %vm604, %v2482, -inf
  %v2515 = vmax.f32 %v2513, %v2514
  %v2516 = vsel %vm604, %v2483, -inf
  %v2517 = vmax.f32 %v2515, %v2516
  %v2518 = vsel %vm604, %v2484, -inf
  %v2519 = vmax.f32 %v2517, %v2518
  %v2520 = vsel %vm604, %v2485, -inf
  %v2521 = vsel %vm604, %v2486, -inf
  %v2522 = vmax.f32 %v2520, %v2521
  %v2523 = vsel %vm604, %v2487, -inf
  %v2524 = vmax.f32 %v2522, %v2523
  %v2525 = vsel %vm604, %v2488, -inf
  %v2526 = vmax.f32 %v2524, %v2525
  %v2527 = vsel %vm604, %v2489, -inf
  %v2528 = vsel %vm604, %v2490, -inf
  %v2529 = vmax.f32 %v2527, %v2528
  %v2530 = vsel %vm604, %v2491, -inf
  %v2531 = vmax.f32 %v2529, %v2530
  %v2532 = vsel %vm604, %v2492, -inf
  %v2533 = vmax.f32 %v2531, %v2532
  %v2534 = vsel %vm604, %v2493, -inf
  %v2535 = vsel %vm604, %v2494, -inf
  %v2536 = vmax.f32 %v2534, %v2535
  %v2537 = vsel %vm604, %v2495, -inf
  %v2538 = vmax.f32 %v2536, %v2537
  %v2539 = vsel %vm604, %v2496, -inf
  %v2540 = vmax.f32 %v2538, %v2539
  %v2541 = vsel %vm604, %v2497, -inf
  %v2542 = vsel %vm604, %v2498, -inf
  %v2543 = vmax.f32 %v2541, %v2542
  %v2544 = vsel %vm604, %v2499, -inf
  %v2545 = vmax.f32 %v2543, %v2544
  %v2546 = vsel %vm604, %v2500, -inf
  %v2547 = vmax.f32 %v2545, %v2546
  %v2548 = vsel %vm604, %v2501, -inf
  %v2549 = vsel %vm604, %v2502, -inf
  %v2550 = vmax.f32 %v2548, %v2549
  %v2551 = vsel %vm604, %v2503, -inf
  %v2552 = vmax.f32 %v2550, %v2551
  %v2553 = vsel %vm604, %v2504, -inf
  %v2554 = vmax.f32 %v2552, %v2553
  %v2555 = vsel %vm604, %v2505, -inf
  %v2556 = vsel %vm604, %v2506, -inf
  %v2557 = vmax.f32 %v2555, %v2556
  %v2558 = vsel %vm604, %v2507, -inf
  %v2559 = vmax.f32 %v2557, %v2558
  %v2560 = vsel %vm604, %v2508, -inf
  %v2561 = vmax.f32 %v2559, %v2560
  %v2562 = vsel %vm604, %v2509, -inf
  %v2563 = vsel %vm604, %v2510, -inf
  %v2564 = vmax.f32 %v2562, %v2563
  %v2565 = vsel %vm604, %v2511, -inf
  %v2566 = vmax.f32 %v2564, %v2565
  %v2567 = vsel %vm604, %v2512, -inf
  %v2568 = vmax.f32 %v2566, %v2567
  %v2569 = vsub.f32 %v2481, %v2519
  %v2570 = vsub.f32 %v2482, %v2519
  %v2571 = vsub.f32 %v2483, %v2519
  %v2572 = vsub.f32 %v2484, %v2519
  %v2573 = vsub.f32 %v2485, %v2526
  %v2574 = vsub.f32 %v2486, %v2526
  %v2575 = vsub.f32 %v2487, %v2526
  %v2576 = vsub.f32 %v2488, %v2526
  %v2577 = vsub.f32 %v2489, %v2533
  %v2578 = vsub.f32 %v2490, %v2533
  %v2579 = vsub.f32 %v2491, %v2533
  %v2580 = vsub.f32 %v2492, %v2533
  %v2581 = vsub.f32 %v2493, %v2540
  %v2582 = vsub.f32 %v2494, %v2540
  %v2583 = vsub.f32 %v2495, %v2540
  %v2584 = vsub.f32 %v2496, %v2540
  %v2585 = vsub.f32 %v2497, %v2547
  %v2586 = vsub.f32 %v2498, %v2547
  %v2587 = vsub.f32 %v2499, %v2547
  %v2588 = vsub.f32 %v2500, %v2547
  %v2589 = vsub.f32 %v2501, %v2554
  %v2590 = vsub.f32 %v2502, %v2554
  %v2591 = vsub.f32 %v2503, %v2554
  %v2592 = vsub.f32 %v2504, %v2554
  %v2593 = vsub.f32 %v2505, %v2561
  %v2594 = vsub.f32 %v2506, %v2561
  %v2595 = vsub.f32 %v2507, %v2561
  %v2596 = vsub.f32 %v2508, %v2561
  %v2597 = vsub.f32 %v2509, %v2568
  %v2598 = vsub.f32 %v2510, %v2568
  %v2599 = vsub.f32 %v2511, %v2568
  %v2600 = vsub.f32 %v2512, %v2568
  %v2601 = vmul.f32 %v2569, 1.442695
  %v2602 = vpow.pop %v2601
  %v2603 = vmul.f32 %v2570, 1.442695
  %v2604 = vpow.pop %v2603
  %v2605 = vmul.f32 %v2571, 1.442695
  %v2606 = vpow.pop %v2605
  %v2607 = vmul.f32 %v2572, 1.442695
  %v2608 = vpow.pop %v2607
  %v2609 = vmul.f32 %v2573, 1.442695
  %v2610 = vpow.pop %v2609
  %v2611 = vmul.f32 %v2574, 1.442695
  %v2612 = vpow.pop %v2611
  %v2613 = vmul.f32 %v2575, 1.442695
  %v2614 = vpow.pop %v2613
  %v2615 = vmul.f32 %v2576, 1.442695
  %v2616 = vpow.pop %v2615
  %v2617 = vmul.f32 %v2577, 1.442695
  %v2618 = vpow.pop %v2617
  %v2619 = vmul.f32 %v2578, 1.442695
  %v2620 = vpow.pop %v2619
  %v2621 = vmul.f32 %v2579, 1.442695
  %v2622 = vpow.pop %v2621
  %v2623 = vmul.f32 %v2580, 1.442695
  %v2624 = vpow.pop %v2623
  %v2625 = vmul.f32 %v2581, 1.442695
  %v2626 = vpow.pop %v2625
  %v2627 = vmul.f32 %v2582, 1.442695
  %v2628 = vpow.pop %v2627
  %v2629 = vmul.f32 %v2583, 1.442695
  %v2630 = vpow.pop %v2629
  %v2631 = vmul.f32 %v2584, 1.442695
  %v2632 = vpow.pop %v2631
  %v2633 = vmul.f32 %v2585, 1.442695
  %v2634 = vpow.pop %v2633
  %v2635 = vmul.f32 %v2586, 1.442695
  %v2636 = vpow.pop %v2635
  %v2637 = vmul.f32 %v2587, 1.442695
  %v2638 = vpow.pop %v2637
  %v2639 = vmul.f32 %v2588, 1.442695
  %v2640 = vpow.pop %v2639
  %v2641 = vmul.f32 %v2589, 1.442695
  %v2642 = vpow.pop %v2641
  %v2643 = vmul.f32 %v2590, 1.442695
  %v2644 = vpow.pop %v2643
  %v2645 = vmul.f32 %v2591, 1.442695
  %v2646 = vpow.pop %v2645
  %v2647 = vmul.f32 %v2592, 1.442695
  %v2648 = vpow.pop %v2647
  %v2649 = vmul.f32 %v2593, 1.442695
  %v2650 = vpow.pop %v2649
  %v2651 = vmul.f32 %v2594, 1.442695
  %v2652 = vpow.pop %v2651
  %v2653 = vmul.f32 %v2595, 1.442695
  %v2654 = vpow.pop %v2653
  %v2655 = vmul.f32 %v2596, 1.442695
  %v2656 = vpow.pop %v2655
  %v2657 = vmul.f32 %v2597, 1.442695
  %v2658 = vpow.pop %v2657
  %v2659 = vmul.f32 %v2598, 1.442695
  %v2660 = vpow.pop %v2659
  %v2661 = vmul.f32 %v2599, 1.442695
  %v2662 = vpow.pop %v2661
  %v2663 = vmul.f32 %v2600, 1.442695
  %v2664 = vpow.pop %v2663
  %v2697 = vrot.slane %v2604, 7
  %v2698 = vsel %vm1510, %v2697, %v2602
  %v2699 = vrot.slane %v2606, 6
  %v2700 = vsel %vm1513, %v2699, %v2698
  %v2701 = vrot.slane %v2608, 5
  %v2702 = vsel %vm1516, %v2701, %v2700
  %v2703 = vrot.slane %v2612, 7
  %v2704 = vsel %vm1510, %v2703, %v2610
  %v2705 = vrot.slane %v2614, 6
  %v2706 = vsel %vm1513, %v2705, %v2704
  %v2707 = vrot.slane %v2616, 5
  %v2708 = vsel %vm1516, %v2707, %v2706
  %v2709 = vrot.slane %v2620, 7
  %v2710 = vsel %vm1510, %v2709, %v2618
  %v2711 = vrot.slane %v2622, 6
  %v2712 = vsel %vm1513, %v2711, %v2710
  %v2713 = vrot.slane %v2624, 5
  %v2714 = vsel %vm1516, %v2713, %v2712
  %v2715 = vrot.slane %v2628, 7
  %v2716 = vsel %vm1510, %v2715, %v2626
  %v2717 = vrot.slane %v2630, 6
  %v2718 = vsel %vm1513, %v2717, %v2716
  %v2719 = vrot.slane %v2632, 5
  %v2720 = vsel %vm1516, %v2719, %v2718
  %v2721 = vrot.slane %v2636, 7
  %v2722 = vsel %vm1510, %v2721, %v2634
  %v2723 = vrot.slane %v2638, 6
  %v2724 = vsel %vm1513, %v2723, %v2722
  %v2725 = vrot.slane %v2640, 5
  %v2726 = vsel %vm1516, %v2725, %v2724
  %v2727 = vrot.slane %v2644, 7
  %v2728 = vsel %vm1510, %v2727, %v2642
  %v2729 = vrot.slane %v2646, 6
  %v2730 = vsel %vm1513, %v2729, %v2728
  %v2731 = vrot.slane %v2648, 5
  %v2732 = vsel %vm1516, %v2731, %v2730
  %v2733 = vrot.slane %v2652, 7
  %v2734 = vsel %vm1510, %v2733, %v2650
  %v2735 = vrot.slane %v2654, 6
  %v2736 = vsel %vm1513, %v2735, %v2734
  %v2737 = vrot.slane %v2656, 5
  %v2738 = vsel %vm1516, %v2737, %v2736
  %v2739 = vrot.slane %v2660, 7
  %v2740 = vsel %vm1510, %v2739, %v2658
  %v2741 = vrot.slane %v2662, 6
  %v2742 = vsel %vm1513, %v2741, %v2740
  %v2743 = vrot.slane %v2664, 5
  %v2744 = vsel %vm1516, %v2743, %v2742
  %v2753 = vsel %vm1568, %v2702, 0.0
  %v2754 = vrot.slane %v2753, 4
  %v2755 = vadd.f32 %v2753, %v2754
  %v2756 = vrot.slane %v2755, 2
  %v2757 = vadd.f32 %v2755, %v2756
  %v2758 = vrot.slane %v2757, 1
  %v2759 = vadd.f32 %v2757, %v2758
  %v2760 = vsel %vm1568, %v2708, 0.0
  %v2761 = vrot.slane %v2760, 4
  %v2762 = vadd.f32 %v2760, %v2761
  %v2763 = vrot.slane %v2762, 2
  %v2764 = vadd.f32 %v2762, %v2763
  %v2765 = vrot.slane %v2764, 1
  %v2766 = vadd.f32 %v2764, %v2765
  %v2767 = vsel %vm1568, %v2714, 0.0
  %v2768 = vrot.slane %v2767, 4
  %v2769 = vadd.f32 %v2767, %v2768
  %v2770 = vrot.slane %v2769, 2
  %v2771 = vadd.f32 %v2769, %v2770
  %v2772 = vrot.slane %v2771, 1
  %v2773 = vadd.f32 %v2771, %v2772
  %v2774 = vsel %vm1568, %v2720, 0.0
  %v2775 = vrot.slane %v2774, 4
  %v2776 = vadd.f32 %v2774, %v2775
  %v2777 = vrot.slane %v2776, 2
  %v2778 = vadd.f32 %v2776, %v2777
  %v2779 = vrot.slane %v2778, 1
  %v2780 = vadd.f32 %v2778, %v2779
  %v2781 = vsel %vm1568, %v2726, 0.0
  %v2782 = vrot.slane %v2781, 4
  %v2783 = vadd.f32 %v2781, %v2782
  %v2784 = vrot.slane %v2783, 2
  %v2785 = vadd.f32 %v2783, %v2784
  %v2786 = vrot.slane %v2785, 1
  %v2787 = vadd.f32 %v2785, %v2786
  %v2788 = vsel %vm1568, %v2732, 0.0
  %v2789 = vrot.slane %v2788, 4
  %v2790 = vadd.f32 %v2788, %v2789
  %v2791 = vrot.slane %v2790, 2
  %v2792 = vadd.f32 %v2790, %v2791
  %v2793 = vrot.slane %v2792, 1
  %v2794 = vadd.f32 %v2792, %v2793
  %v2795 = vsel %vm1568, %v2738, 0.0
  %v2796 = vrot.slane %v2795, 4
  %v2797 = vadd.f32 %v2795, %v2796
  %v2798 = vrot.slane %v2797, 2
  %v2799 = vadd.f32 %v2797, %v2798
  %v2800 = vrot.slane %v2799, 1
  %v2801 = vadd.f32 %v2799, %v2800
  %v2802 = vsel %vm1568, %v2744, 0.0
  %v2803 = vrot.slane %v2802, 4
  %v2804 = vadd.f32 %v2802, %v2803
  %v2805 = vrot.slane %v2804, 2
  %v2806 = vadd.f32 %v2804, %v2805
  %v2807 = vrot.slane %v2806, 1
  %v2808 = vadd.f32 %v2806, %v2807
  %v2809 = vperm.slane %v2759, 0
  %v2810 = vperm.slane %v2766, 0
  %v2811 = vperm.slane %v2773, 0
  %v2812 = vperm.slane %v2780, 0
  %v2813 = vperm.slane %v2787, 0
  %v2814 = vperm.slane %v2794, 0
  %v2815 = vperm.slane %v2801, 0
  %v2816 = vperm.slane %v2808, 0
  %v2817 = vrcp.pop %v2809
  %v2818 = vmul.f32 %v2809, %v2817
  %v2819 = vsub.f32 1.0, %v2818
  %v2820 = vmul.f32 %v2817, %v2819
  %v2821 = vadd.f32 %v2817, %v2820
  %vm2822 = vweird.f32 %v2809
  %vm2823 = vweird.f32 %v2817
  %vm2824 = vmor %vm2822, %vm2823
  %v2825 = vsel %vm2824, %v2817, %v2821
  %v2826 = vand.u32 2147483647, %v2809
  %vm2827 = vcmp.eq.f32.partialorder %v2826, 8.507059e+37
  %v2828 = vand.u32 %v2809, 2147483648
  %v2829 = vor.u32 1.1754944e-38, %v2828
  %v2830 = vsel %vm2827, %v2829, %v2825
  %v2831 = vmul.f32 %v2602, %v2830
  %v2832 = vmul.f32 %v2604, %v2830
  %v2833 = vmul.f32 %v2606, %v2830
  %v2834 = vmul.f32 %v2608, %v2830
  %v2835 = vrcp.pop %v2810
  %v2836 = vmul.f32 %v2810, %v2835
  %v2837 = vsub.f32 1.0, %v2836
  %v2838 = vmul.f32 %v2835, %v2837
  %v2839 = vadd.f32 %v2835, %v2838
  %vm2840 = vweird.f32 %v2810
  %vm2841 = vweird.f32 %v2835
  %vm2842 = vmor %vm2840, %vm2841
  %v2843 = vsel %vm2842, %v2835, %v2839
  %v2844 = vand.u32 2147483647, %v2810
  %vm2845 = vcmp.eq.f32.partialorder %v2844, 8.507059e+37
  %v2846 = vand.u32 %v2810, 2147483648
  %v2847 = vor.u32 1.1754944e-38, %v2846
  %v2848 = vsel %vm2845, %v2847, %v2843
  %v2849 = vmul.f32 %v2610, %v2848
  %v2850 = vmul.f32 %v2612, %v2848
  %v2851 = vmul.f32 %v2614, %v2848
  %v2852 = vmul.f32 %v2616, %v2848
  %v2853 = vrcp.pop %v2811
  %v2854 = vmul.f32 %v2811, %v2853
  %v2855 = vsub.f32 1.0, %v2854
  %v2856 = vmul.f32 %v2853, %v2855
  %v2857 = vadd.f32 %v2853, %v2856
  %vm2858 = vweird.f32 %v2811
  %vm2859 = vweird.f32 %v2853
  %vm2860 = vmor %vm2858, %vm2859
  %v2861 = vsel %vm2860, %v2853, %v2857
  %v2862 = vand.u32 2147483647, %v2811
  %vm2863 = vcmp.eq.f32.partialorder %v2862, 8.507059e+37
  %v2864 = vand.u32 %v2811, 2147483648
  %v2865 = vor.u32 1.1754944e-38, %v2864
  %v2866 = vsel %vm2863, %v2865, %v2861
  %v2867 = vmul.f32 %v2618, %v2866
  %v2868 = vmul.f32 %v2620, %v2866
  %v2869 = vmul.f32 %v2622, %v2866
  %v2870 = vmul.f32 %v2624, %v2866
  %v2871 = vrcp.pop %v2812
  %v2872 = vmul.f32 %v2812, %v2871
  %v2873 = vsub.f32 1.0, %v2872
  %v2874 = vmul.f32 %v2871, %v2873
  %v2875 = vadd.f32 %v2871, %v2874
  %vm2876 = vweird.f32 %v2812
  %vm2877 = vweird.f32 %v2871
  %vm2878 = vmor %vm2876, %vm2877
  %v2879 = vsel %vm2878, %v2871, %v2875
  %v2880 = vand.u32 2147483647, %v2812
  %vm2881 = vcmp.eq.f32.partialorder %v2880, 8.507059e+37
  %v2882 = vand.u32 %v2812, 2147483648
  %v2883 = vor.u32 1.1754944e-38, %v2882
  %v2884 = vsel %vm2881, %v2883, %v2879
  %v2885 = vmul.f32 %v2626, %v2884
  %v2886 = vmul.f32 %v2628, %v2884
  %v2887 = vmul.f32 %v2630, %v2884
  %v2888 = vmul.f32 %v2632, %v2884
  %v2889 = vrcp.pop %v2813
  %v2890 = vmul.f32 %v2813, %v2889
  %v2891 = vsub.f32 1.0, %v2890
  %v2892 = vmul.f32 %v2889, %v2891
  %v2893 = vadd.f32 %v2889, %v2892
  %vm2894 = vweird.f32 %v2813
  %vm2895 = vweird.f32 %v2889
  %vm2896 = vmor %vm2894, %vm2895
  %v2897 = vsel %vm2896, %v2889, %v2893
  %v2898 = vand.u32 2147483647, %v2813
  %vm2899 = vcmp.eq.f32.partialorder %v2898, 8.507059e+37
  %v2900 = vand.u32 %v2813, 2147483648
  %v2901 = vor.u32 1.1754944e-38, %v2900
  %v2902 = vsel %vm2899, %v2901, %v2897
  %v2903 = vmul.f32 %v2634, %v2902
  %v2904 = vmul.f32 %v2636, %v2902
  %v2905 = vmul.f32 %v2638, %v2902
  %v2906 = vmul.f32 %v2640, %v2902
  %v2907 = vrcp.pop %v2814
  %v2908 = vmul.f32 %v2814, %v2907
  %v2909 = vsub.f32 1.0, %v2908
  %v2910 = vmul.f32 %v2907, %v2909
  %v2911 = vadd.f32 %v2907, %v2910
  %vm2912 = vweird.f32 %v2814
  %vm2913 = vweird.f32 %v2907
  %vm2914 = vmor %vm2912, %vm2913
  %v2915 = vsel %vm2914, %v2907, %v2911
  %v2916 = vand.u32 2147483647, %v2814
  %vm2917 = vcmp.eq.f32.partialorder %v2916, 8.507059e+37
  %v2918 = vand.u32 %v2814, 2147483648
  %v2919 = vor.u32 1.1754944e-38, %v2918
  %v2920 = vsel %vm2917, %v2919, %v2915
  %v2921 = vmul.f32 %v2642, %v2920
  %v2922 = vmul.f32 %v2644, %v2920
  %v2923 = vmul.f32 %v2646, %v2920
  %v2924 = vmul.f32 %v2648, %v2920
  %v2925 = vrcp.pop %v2815
  %v2926 = vmul.f32 %v2815, %v2925
  %v2927 = vsub.f32 1.0, %v2926
  %v2928 = vmul.f32 %v2925, %v2927
  %v2929 = vadd.f32 %v2925, %v2928
  %vm2930 = vweird.f32 %v2815
  %vm2931 = vweird.f32 %v2925
  %vm2932 = vmor %vm2930, %vm2931
  %v2933 = vsel %vm2932, %v2925, %v2929
  %v2934 = vand.u32 2147483647, %v2815
  %vm2935 = vcmp.eq.f32.partialorder %v2934, 8.507059e+37
  %v2936 = vand.u32 %v2815, 2147483648
  %v2937 = vor.u32 1.1754944e-38, %v2936
  %v2938 = vsel %vm2935, %v2937, %v2933
  %v2939 = vmul.f32 %v2650, %v2938
  %v2940 = vmul.f32 %v2652, %v2938
  %v2941 = vmul.f32 %v2654, %v2938
  %v2942 = vmul.f32 %v2656, %v2938
  %v2943 = vrcp.pop %v2816
  %v2944 = vmul.f32 %v2816, %v2943
  %v2945 = vsub.f32 1.0, %v2944
  %v2946 = vmul.f32 %v2943, %v2945
  %v2947 = vadd.f32 %v2943, %v2946
  %vm2948 = vweird.f32 %v2816
  %vm2949 = vweird.f32 %v2943
  %vm2950 = vmor %vm2948, %vm2949
  %v2951 = vsel %vm2950, %v2943, %v2947
  %v2952 = vand.u32 2147483647, %v2816
  %vm2953 = vcmp.eq.f32.partialorder %v2952, 8.507059e+37
  %v2954 = vand.u32 %v2816, 2147483648
  %v2955 = vor.u32 1.1754944e-38, %v2954
  %v2956 = vsel %vm2953, %v2955, %v2951
  %v2957 = vmul.f32 %v2658, %v2956
  %v2958 = vmul.f32 %v2660, %v2956
  %v2959 = vmul.f32 %v2662, %v2956
  %v2960 = vmul.f32 %v2664, %v2956
  %v2961 = vperm.slane %v2831, 0
  %v2962 = vperm.slane %v2832, 0
  %v2963 = vperm.slane %v2833, 0
  %v2964 = vperm.slane %v2834, 0
  %v2965 = vperm.slane %v2849, 0
  %v2966 = vperm.slane %v2850, 0
  %v2967 = vperm.slane %v2851, 0
  %v2968 = vperm.slane %v2852, 0
  %v2969 = vperm.slane %v2867, 0
  %v2970 = vperm.slane %v2868, 0
  %v2971 = vperm.slane %v2869, 0
  %v2972 = vperm.slane %v2870, 0
  %v2973 = vperm.slane %v2885, 0
  %v2974 = vperm.slane %v2886, 0
  %v2975 = vperm.slane %v2887, 0
  %v2976 = vperm.slane %v2888, 0
  %v2977 = vperm.slane %v2903, 0
  %v2978 = vperm.slane %v2904, 0
  %v2979 = vperm.slane %v2905, 0
  %v2980 = vperm.slane %v2906, 0
  %v2981 = vperm.slane %v2921, 0
  %v2982 = vperm.slane %v2922, 0
  %v2983 = vperm.slane %v2923, 0
  %v2984 = vperm.slane %v2924, 0
  %v2985 = vperm.slane %v2939, 0
  %v2986 = vperm.slane %v2940, 0
  %v2987 = vperm.slane %v2941, 0
  %v2988 = vperm.slane %v2942, 0
  %v2989 = vperm.slane %v2957, 0
  %v2990 = vperm.slane %v2958, 0
  %v2991 = vperm.slane %v2959, 0
  %v2992 = vperm.slane %v2960, 0
  %v2993 = vmul.f32 %v2961, %v126
  %v2994 = vmul.f32 %v2961, %v129
  %v2995 = vmul.f32 %v2962, %v132
  %v2996 = vmul.f32 %v2962, %v135
  %v2997 = vmul.f32 %v2963, %v138
  %v2998 = vmul.f32 %v2963, %v141
  %v2999 = vmul.f32 %v2964, %v144
  %v3000 = vmul.f32 %v2964, %v147
  %v3001 = vmul.f32 %v2965, %v191
  %v3002 = vmul.f32 %v2965, %v194
  %v3003 = vmul.f32 %v2966, %v197
  %v3004 = vmul.f32 %v2966, %v200
  %v3005 = vmul.f32 %v2967, %v203
  %v3006 = vmul.f32 %v2967, %v206
  %v3007 = vmul.f32 %v2968, %v209
  %v3008 = vmul.f32 %v2968, %v212
  %v3009 = vmul.f32 %v2969, %v256
  %v3010 = vmul.f32 %v2969, %v259
  %v3011 = vmul.f32 %v2970, %v262
  %v3012 = vmul.f32 %v2970, %v265
  %v3013 = vmul.f32 %v2971, %v268
  %v3014 = vmul.f32 %v2971, %v271
  %v3015 = vmul.f32 %v2972, %v274
  %v3016 = vmul.f32 %v2972, %v277
  %v3017 = vmul.f32 %v2973, %v321
  %v3018 = vmul.f32 %v2973, %v324
  %v3019 = vmul.f32 %v2974, %v327
  %v3020 = vmul.f32 %v2974, %v330
  %v3021 = vmul.f32 %v2975, %v333
  %v3022 = vmul.f32 %v2975, %v336
  %v3023 = vmul.f32 %v2976, %v339
  %v3024 = vmul.f32 %v2976, %v342
  %v3025 = vmul.f32 %v2977, %v386
  %v3026 = vmul.f32 %v2977, %v389
  %v3027 = vmul.f32 %v2978, %v392
  %v3028 = vmul.f32 %v2978, %v395
  %v3029 = vmul.f32 %v2979, %v398
  %v3030 = vmul.f32 %v2979, %v401
  %v3031 = vmul.f32 %v2980, %v404
  %v3032 = vmul.f32 %v2980, %v407
  %v3033 = vmul.f32 %v2981, %v451
  %v3034 = vmul.f32 %v2981, %v454
  %v3035 = vmul.f32 %v2982, %v457
  %v3036 = vmul.f32 %v2982, %v460
  %v3037 = vmul.f32 %v2983, %v463
  %v3038 = vmul.f32 %v2983, %v466
  %v3039 = vmul.f32 %v2984, %v469
  %v3040 = vmul.f32 %v2984, %v472
  %v3041 = vmul.f32 %v2985, %v516
  %v3042 = vmul.f32 %v2985, %v519
  %v3043 = vmul.f32 %v2986, %v522
  %v3044 = vmul.f32 %v2986, %v525
  %v3045 = vmul.f32 %v2987, %v528
  %v3046 = vmul.f32 %v2987, %v531
  %v3047 = vmul.f32 %v2988, %v534
  %v3048 = vmul.f32 %v2988, %v537
  %v3049 = vmul.f32 %v2989, %v581
  %v3050 = vmul.f32 %v2989, %v584
  %v3051 = vmul.f32 %v2990, %v587
  %v3052 = vmul.f32 %v2990, %v590
  %v3053 = vmul.f32 %v2991, %v593
  %v3054 = vmul.f32 %v2991, %v596
  %v3055 = vmul.f32 %v2992, %v599
  %v3056 = vmul.f32 %v2992, %v602
  %v3057 = vsel %vm604, %v2993, 0.0
  %v3058 = vsel %vm604, %v3001, 0.0
  %v3059 = vadd.f32 %v3057, %v3058
  %v3060 = vsel %vm604, %v3009, 0.0
  %v3061 = vadd.f32 %v3059, %v3060
  %v3062 = vsel %vm604, %v3017, 0.0
  %v3063 = vadd.f32 %v3061, %v3062
  %v3064 = vsel %vm604, %v3025, 0.0
  %v3065 = vadd.f32 %v3063, %v3064
  %v3066 = vsel %vm604, %v3033, 0.0
  %v3067 = vadd.f32 %v3065, %v3066
  %v3068 = vsel %vm604, %v3041, 0.0
  %v3069 = vadd.f32 %v3067, %v3068
  %v3070 = vsel %vm604, %v3049, 0.0
  %v3071 = vadd.f32 %v3069, %v3070
  %v3072 = vsel %vm604, %v2994, 0.0
  %v3073 = vsel %vm604, %v3002, 0.0
  %v3074 = vadd.f32 %v3072, %v3073
  %v3075 = vsel %vm604, %v3010, 0.0
  %v3076 = vadd.f32 %v3074, %v3075
  %v3077 = vsel %vm604, %v3018, 0.0
  %v3078 = vadd.f32 %v3076, %v3077
  %v3079 = vsel %vm604, %v3026, 0.0
  %v3080 = vadd.f32 %v3078, %v3079
  %v3081 = vsel %vm604, %v3034, 0.0
  %v3082 = vadd.f32 %v3080, %v3081
  %v3083 = vsel %vm604, %v3042, 0.0
  %v3084 = vadd.f32 %v3082, %v3083
  %v3085 = vsel %vm604, %v3050, 0.0
  %v3086 = vadd.f32 %v3084, %v3085
  %v3087 = vsel %vm604, %v2995, 0.0
  %v3088 = vsel %vm604, %v3003, 0.0
  %v3089 = vadd.f32 %v3087, %v3088
  %v3090 = vsel %vm604, %v3011, 0.0
  %v3091 = vadd.f32 %v3089, %v3090
  %v3092 = vsel %vm604, %v3019, 0.0
  %v3093 = vadd.f32 %v3091, %v3092
  %v3094 = vsel %vm604, %v3027, 0.0
  %v3095 = vadd.f32 %v3093, %v3094
  %v3096 = vsel %vm604, %v3035, 0.0
  %v3097 = vadd.f32 %v3095, %v3096
  %v3098 = vsel %vm604, %v3043, 0.0
  %v3099 = vadd.f32 %v3097, %v3098
  %v3100 = vsel %vm604, %v3051, 0.0
  %v3101 = vadd.f32 %v3099, %v3100
  %v3102 = vsel %vm604, %v2996, 0.0
  %v3103 = vsel %vm604, %v3004, 0.0
  %v3104 = vadd.f32 %v3102, %v3103
  %v3105 = vsel %vm604, %v3012, 0.0
  %v3106 = vadd.f32 %v3104, %v3105
  %v3107 = vsel %vm604, %v3020, 0.0
  %v3108 = vadd.f32 %v3106, %v3107
  %v3109 = vsel %vm604, %v3028, 0.0
  %v3110 = vadd.f32 %v3108, %v3109
  %v3111 = vsel %vm604, %v3036, 0.0
  %v3112 = vadd.f32 %v3110, %v3111
  %v3113 = vsel %vm604, %v3044, 0.0
  %v3114 = vadd.f32 %v3112, %v3113
  %v3115 = vsel %vm604, %v3052, 0.0
  %v3116 = vadd.f32 %v3114, %v3115
  %v3117 = vsel %vm604, %v2997, 0.0
  %v3118 = vsel %vm604, %v3005, 0.0
  %v3119 = vadd.f32 %v3117, %v3118
  %v3120 = vsel %vm604, %v3013, 0.0
  %v3121 = vadd.f32 %v3119, %v3120
  %v3122 = vsel %vm604, %v3021, 0.0
  %v3123 = vadd.f32 %v3121, %v3122
  %v3124 = vsel %vm604, %v3029, 0.0
  %v3125 = vadd.f32 %v3123, %v3124
  %v3126 = vsel %vm604, %v3037, 0.0
  %v3127 = vadd.f32 %v3125, %v3126
  %v3128 = vsel %vm604, %v3045, 0.0
  %v3129 = vadd.f32 %v3127, %v3128
  %v3130 = vsel %vm604, %v3053, 0.0
  %v3131 = vadd.f32 %v3129, %v3130
  %v3132 = vsel %vm604, %v2998, 0.0
  %v3133 = vsel %vm604, %v3006, 0.0
  %v3134 = vadd.f32 %v3132, %v3133
  %v3135 = vsel %vm604, %v3014, 0.0
  %v3136 = vadd.f32 %v3134, %v3135
  %v3137 = vsel %vm604, %v3022, 0.0
  %v3138 = vadd.f32 %v3136, %v3137
  %v3139 = vsel %vm604, %v3030, 0.0
  %v3140 = vadd.f32 %v3138, %v3139
  %v3141 = vsel %vm604, %v3038, 0.0
  %v3142 = vadd.f32 %v3140, %v3141
  %v3143 = vsel %vm604, %v3046, 0.0
  %v3144 = vadd.f32 %v3142, %v3143
  %v3145 = vsel %vm604, %v3054, 0.0
  %v3146 = vadd.f32 %v3144, %v3145
  %v3147 = vsel %vm604, %v2999, 0.0
  %v3148 = vsel %vm604, %v3007, 0.0
  %v3149 = vadd.f32 %v3147, %v3148
  %v3150 = vsel %vm604, %v3015, 0.0
  %v3151 = vadd.f32 %v3149, %v3150
  %v3152 = vsel %vm604, %v3023, 0.0
  %v3153 = vadd.f32 %v3151, %v3152
  %v3154 = vsel %vm604, %v3031, 0.0
  %v3155 = vadd.f32 %v3153, %v3154
  %v3156 = vsel %vm604, %v3039, 0.0
  %v3157 = vadd.f32 %v3155, %v3156
  %v3158 = vsel %vm604, %v3047, 0.0
  %v3159 = vadd.f32 %v3157, %v3158
  %v3160 = vsel %vm604, %v3055, 0.0
  %v3161 = vadd.f32 %v3159, %v3160
  %v3162 = vsel %vm604, %v3000, 0.0
  %v3163 = vsel %vm604, %v3008, 0.0
  %v3164 = vadd.f32 %v3162, %v3163
  %v3165 = vsel %vm604, %v3016, 0.0
  %v3166 = vadd.f32 %v3164, %v3165
  %v3167 = vsel %vm604, %v3024, 0.0
  %v3168 = vadd.f32 %v3166, %v3167
  %v3169 = vsel %vm604, %v3032, 0.0
  %v3170 = vadd.f32 %v3168, %v3169
  %v3171 = vsel %vm604, %v3040, 0.0
  %v3172 = vadd.f32 %v3170, %v3171
  %v3173 = vsel %vm604, %v3048, 0.0
  %v3174 = vadd.f32 %v3172, %v3173
  %v3175 = vsel %vm604, %v3056, 0.0
  %v3176 = vadd.f32 %v3174, %v3175
  %v3177 = vadd.f32 %v3071, 0.0
  %v3178 = vadd.f32 %v3086, 0.0
  %v3179 = vadd.f32 %v3101, 0.0
  %v3180 = vadd.f32 %v3116, 0.0
  %v3181 = vadd.f32 %v3131, 0.0
  %v3182 = vadd.f32 %v3146, 0.0
  %v3183 = vadd.f32 %v3161, 0.0
  %v3184 = vadd.f32 %v3176, 0.0
  %3185 = vst.msk [vmem:[%s2] sm:$0xff] %vm604, %v3177
  %3186 = vst.msk [vmem:[%s2 + $0x8] sm:$0xff] %vm604, %v3178
  %3187 = vst.msk [vmem:[%s2 + $0x10] sm:$0xff] %vm604, %v3179
  %3188 = vst.msk [vmem:[%s2 + $0x18] sm:$0xff] %vm604, %v3180
  %3189 = vst.msk [vmem:[%s2 + $0x20] sm:$0xff] %vm604, %v3181
  %3190 = vst.msk [vmem:[%s2 + $0x28] sm:$0xff] %vm604, %v3182
  %3191 = vst.msk [vmem:[%s2 + $0x30] sm:$0xff] %vm604, %v3183
  %3192 = vst.msk [vmem:[%s2 + $0x38] sm:$0xff] %vm604, %v3184
  // Predicated region
  $region10: #{tpu_custom_call.1} parent=0 // pred_check
    _
  $region11: #{tpu_custom_call.1} parent=0 // pred_check_branch
    %3194 = sbr.rel (0) target = $region13
  $region12: #{tpu_custom_call.1} parent=0 // pred_region
    _
  $region13: #{tpu_custom_call.1} parent=0 // pred_fallthru
    _
  // Predicated region
  $region14: #{tpu_custom_call.1} parent=0 // pred_check
    _
  $region15: #{tpu_custom_call.1} parent=0 // pred_check_branch
    %3196 = sbr.rel (0) target = $region17
  $region16: #{tpu_custom_call.1} parent=0 // pred_region
    _
  $region17: #{tpu_custom_call.1} parent=0 // pred_fallthru
    _

</llo_original>
